<compile_context>
chip_gen: v5e
topology: v5e:2x2
jax: 0.10.0
libtpu: 0.0.40
codegen_flags: <defaults>
</compile_context>

<pallas_src>
import math
import jax
import jax.numpy as jnp
from jax.experimental import pallas as pl
from jax.experimental.pallas import tpu as pltpu

INPUT_DIM = 784
HIDDEN_DIM = 400
LATENT_DIM = 200
Z_DIM = 2
OUT_PAD = 896  # 7 * 128 — lane-dense padded output width


def _leaky_relu(h, slope=0.2):
    # max(h, slope*h) == LeakyReLU(slope) for 0 < slope < 1
    return jnp.maximum(h, slope * h)


def vae_kernel(x_ref, eps_ref,
               w1_ref, b1_ref, w2_ref, b2_ref,
               wml_ref, bml_ref,
               wd1_ref, bd1_ref, wd2_ref, bd2_ref, wd3_ref, bd3_ref,
               xhat_ref, ml_ref):
    bf16 = jnp.bfloat16

    # ---- encoder: Linear(784->400)+LReLU(0.2), Linear(400->200)+LReLU(0.2)
    x = x_ref[...].astype(bf16)  # in-kernel cast (rides free VPU slack, no wrapper op)
    h = jnp.dot(x, w1_ref[...], preferred_element_type=jnp.float32) + b1_ref[...]
    h = _leaky_relu(h)
    h = jnp.dot(h.astype(bf16), w2_ref[...], preferred_element_type=jnp.float32) + b2_ref[...]
    h = _leaky_relu(h)

    # ---- fused mean/logvar head: single Linear(200 -> 2*Z_DIM), stored packed
    ml = jnp.dot(h.astype(bf16), wml_ref[...], preferred_element_type=jnp.float32) + bml_ref[...]
    ml_ref[...] = ml
    mean = ml[:, 0:Z_DIM]
    logvar = ml[:, Z_DIM:2 * Z_DIM]

    # ---- reparameterization: z = mean + exp(0.5*logvar) * eps
    z = mean + jnp.exp(0.5 * logvar) * eps_ref[...]

    # ---- decoder layer 1, Linear(2->200): K=2 contraction as a VPU outer product
    wd1 = wd1_ref[...].astype(jnp.float32)          # (2, 200)
    d = z[:, 0:1] * wd1[0:1, :] + z[:, 1:2] * wd1[1:2, :] + bd1_ref[...]
    d = _leaky_relu(d)

    # ---- decoder: Linear(200->400)+LReLU, Linear(400->784 padded to 896)+Sigmoid
    d = jnp.dot(d.astype(bf16), wd2_ref[...], preferred_element_type=jnp.float32) + bd2_ref[...]
    d = _leaky_relu(d)
    logits = jnp.dot(d.astype(bf16), wd3_ref[...], preferred_element_type=jnp.float32) + bd3_ref[...]
    # sigmoid(x) = 0.5*(tanh(0.5*x)+1): one EUP push per element
    xhat_ref[...] = (0.5 * (jnp.tanh(0.5 * logits) + 1.0)).astype(xhat_ref.dtype)


def _round_up(n, m):
    return ((n + m - 1) // m) * m


def _cost_estimate(bp):
    mm_terms = (INPUT_DIM * HIDDEN_DIM + HIDDEN_DIM * LATENT_DIM
                + LATENT_DIM * 2 * Z_DIM + Z_DIM * LATENT_DIM
                + LATENT_DIM * HIDDEN_DIM + HIDDEN_DIM * OUT_PAD)
    weight_bytes = 2 * mm_terms  # bf16 weights
    bias_bytes = 4 * (HIDDEN_DIM + LATENT_DIM + 2 * Z_DIM + LATENT_DIM + HIDDEN_DIM + OUT_PAD)
    per_row_bytes = 4 * INPUT_DIM + 4 * Z_DIM + 2 * OUT_PAD + 4 * 2 * Z_DIM
    return pl.CostEstimate(
        flops=bp * 2 * mm_terms,
        transcendentals=bp * (OUT_PAD + Z_DIM),   # tanh on x_hat, exp in reparam
        bytes_accessed=weight_bytes + bias_bytes + bp * per_row_bytes,
    )


def vae_forward(x, eps, kernel_params, *, tm=256):
    """VAE forward as one Pallas call with a batch grid and VMEM-resident weights.

    Returns raw kernel outputs (no wrapper-side slice ops — consumers index them):
      x_hat_pad : (Bp, OUT_PAD) bf16, valid columns [:INPUT_DIM], valid rows [:B]
      ml        : (Bp, 2*Z_DIM) f32, mean = ml[:, :Z_DIM], log_var = ml[:, Z_DIM:]

    TM guidance: 128 on v5e (4x128^2 MXU), 256 on v6e / per-core on v7x.
    """
    B = x.shape[0]
    if x.dtype != jnp.float32:
        x = x.astype(jnp.float32)
    if eps.dtype != jnp.float32:
        eps = eps.astype(jnp.float32)

    TM = min(tm, _round_up(B, 8))
    Bp = _round_up(B, TM)
    if Bp != B:
        x = jnp.pad(x, ((0, Bp - B), (0, 0)))
        eps = jnp.pad(eps, ((0, Bp - B), (0, 0)))

    def resident(p):
        # Full-array block, constant block index -> fetched once, stays in VMEM.
        return pl.BlockSpec(p.shape, lambda i: (0, 0))

    in_specs = [
        pl.BlockSpec((TM, INPUT_DIM), lambda i: (i, 0)),
        pl.BlockSpec((TM, Z_DIM), lambda i: (i, 0)),
    ] + [resident(p) for p in kernel_params]

    out_specs = (
        pl.BlockSpec((TM, OUT_PAD), lambda i: (i, 0)),
        pl.BlockSpec((TM, 2 * Z_DIM), lambda i: (i, 0)),
    )
    out_shape = (
        jax.ShapeDtypeStruct((Bp, OUT_PAD), jnp.bfloat16),   # x_hat, lane-dense padded
        jax.ShapeDtypeStruct((Bp, 2 * Z_DIM), jnp.float32),  # packed mean | log_var
    )

    fn = pl.pallas_call(
        vae_kernel,
        out_shape=out_shape,
        grid_spec=pltpu.PrefetchScalarGridSpec(
            num_scalar_prefetch=0,
            grid=(Bp // TM,),
            in_specs=in_specs,
            out_specs=out_specs,
        ),
        compiler_params=pltpu.CompilerParams(
            dimension_semantics=("parallel",),
            vmem_limit_bytes=24 * 1024 * 1024,
        ),
        cost_estimate=_cost_estimate(Bp),
    )
    return fn(x, eps, *kernel_params)


def init_linear(key, fan_in, fan_out):
    """PyTorch-like init: U(-1/sqrt(fan_in), 1/sqrt(fan_in)).
    Weight as (fan_in, fan_out), bias as (1, fan_out)."""
    kw, kb = jax.random.split(key)
    bound = 1.0 / math.sqrt(fan_in)
    w = jax.random.uniform(kw, (fan_in, fan_out), jnp.float32, -bound, bound)
    b = jax.random.uniform(kb, (1, fan_out), jnp.float32, -bound, bound)
    return w, b


def make_params(key):
    keys = jax.random.split(key, 8)
    w1, b1 = init_linear(keys[0], INPUT_DIM, HIDDEN_DIM)     # encoder[0]
    w2, b2 = init_linear(keys[1], HIDDEN_DIM, LATENT_DIM)    # encoder[2]
    wm, bm = init_linear(keys[2], LATENT_DIM, Z_DIM)         # mean_layer
    wl, bl = init_linear(keys[3], LATENT_DIM, Z_DIM)         # logvar_layer
    wd1, bd1 = init_linear(keys[4], Z_DIM, LATENT_DIM)       # decoder[0]
    wd2, bd2 = init_linear(keys[5], LATENT_DIM, HIDDEN_DIM)  # decoder[2]
    wd3, bd3 = init_linear(keys[6], HIDDEN_DIM, INPUT_DIM)   # decoder[4]
    return (w1, b1, w2, b2, wm, bm, wl, bl, wd1, bd1, wd2, bd2, wd3, bd3)


def pack_kernel_params(p):
    """bf16 weights, f32 biases, fused mean/logvar head, lane-padded last layer."""
    (w1, b1, w2, b2, wm, bm, wl, bl, wd1, bd1, wd2, bd2, wd3, bd3) = p
    bf = jnp.bfloat16
    wml = jnp.concatenate([wm, wl], axis=1)                     # (200, 4)
    bml = jnp.concatenate([bm, bl], axis=1)                     # (1, 4)
    wd3p = jnp.zeros((HIDDEN_DIM, OUT_PAD), jnp.float32).at[:, :INPUT_DIM].set(wd3)
    bd3p = jnp.zeros((1, OUT_PAD), jnp.float32).at[:, :INPUT_DIM].set(bd3)
    return (w1.astype(bf), b1,
            w2.astype(bf), b2,
            wml.astype(bf), bml,
            wd1.astype(bf), bd1,
            wd2.astype(bf), bd2,
            wd3p.astype(bf), bd3p)


def reference_forward(x, eps, p):
    """Pure-JAX reference mirroring the kernel's bf16-weight / f32-accumulate math."""
    bf = jnp.bfloat16
    (w1, b1, w2, b2, wm, bm, wl, bl, wd1, bd1, wd2, bd2, wd3, bd3) = p

    def mm(a, w):
        return jnp.dot(a.astype(bf), w.astype(bf), preferred_element_type=jnp.float32)

    h = _leaky_relu(mm(x, w1) + b1)
    h = _leaky_relu(mm(h, w2) + b2)
    mean = mm(h, wm) + bm
    logvar = mm(h, wl) + bl
    z = mean + jnp.exp(0.5 * logvar) * eps
    wd1q = wd1.astype(bf).astype(jnp.float32)
    d = _leaky_relu(z[:, 0:1] * wd1q[0:1, :] + z[:, 1:2] * wd1q[1:2, :] + bd1)
    d = _leaky_relu(mm(d, wd2) + bd2)
    x_hat = jax.nn.sigmoid(mm(d, wd3) + bd3)
    return x_hat, mean, logvar


if __name__ == "__main__":
    key = jax.random.PRNGKey(0)
    k_params, k_x, k_eps = jax.random.split(key, 3)

    B = 8
    x = jax.random.uniform(k_x, (B, INPUT_DIM), jnp.float32)   # flattened image batch
    # TODO(synk): torch.randn_like is modeled by caller-supplied eps; could be drawn
    # in-kernel via pltpu.prng_seed / stateful_normal if fully fused RNG is desired.
    eps = jax.random.normal(k_eps, (B, Z_DIM), jnp.float32)

    params = make_params(k_params)
    kparams = pack_kernel_params(params)

    xhat_pad, ml = vae_forward(x, eps, kparams)
    jax.block_until_ready((xhat_pad, ml))

    # Consumer-side indexing (kept out of the kernel wrapper on purpose).
    x_hat = xhat_pad[:B, :INPUT_DIM].astype(jnp.float32)
    mean = ml[:B, :Z_DIM]
    log_var = ml[:B, Z_DIM:2 * Z_DIM]

    # sanity check against a pure-JAX reference with matching bf16 quantization
    rx, rm, rl = reference_forward(x, eps, params)
    assert x_hat.shape == (B, INPUT_DIM)
    assert jnp.allclose(x_hat, rx, atol=3e-2, rtol=3e-2), "x_hat mismatch"
    assert jnp.allclose(mean, rm, atol=3e-2, rtol=3e-2), "mean mismatch"
    assert jnp.allclose(log_var, rl, atol=3e-2, rtol=3e-2), "log_var mismatch"

    print("KERNEL_OK")
</pallas_src>

<mosaic_0001>
module attributes {stable_mosaic.version = 11 : i64} {
  func.func @vae_kernel(%arg0: i32, %arg1: memref<8x784xf32, #tpu.memory_space<vmem>>, %arg2: memref<8x2xf32, #tpu.memory_space<vmem>>, %arg3: memref<784x400xbf16, #tpu.memory_space<vmem>>, %arg4: memref<1x400xf32, #tpu.memory_space<vmem>>, %arg5: memref<400x200xbf16, #tpu.memory_space<vmem>>, %arg6: memref<1x200xf32, #tpu.memory_space<vmem>>, %arg7: memref<200x4xbf16, #tpu.memory_space<vmem>>, %arg8: memref<1x4xf32, #tpu.memory_space<vmem>>, %arg9: memref<2x200xbf16, #tpu.memory_space<vmem>>, %arg10: memref<1x200xf32, #tpu.memory_space<vmem>>, %arg11: memref<200x400xbf16, #tpu.memory_space<vmem>>, %arg12: memref<1x400xf32, #tpu.memory_space<vmem>>, %arg13: memref<400x896xbf16, #tpu.memory_space<vmem>>, %arg14: memref<1x896xf32, #tpu.memory_space<vmem>>, %arg15: memref<8x896xbf16, #tpu.memory_space<vmem>>, %arg16: memref<8x4xf32, #tpu.memory_space<vmem>>) attributes {dimension_semantics = [#tpu.dimension_semantics<parallel>], iteration_bounds = array<i64: 1>, scalar_prefetch = 0 : i64, scratch_operands = 0 : i64, tpu.core_type = #tpu.core_type<tc>, window_params = [{transform_indices = @transform_0, window_bounds = array<i64: 8, 784>}, {transform_indices = @transform_1, window_bounds = array<i64: 8, 2>}, {pipeline_mode = #tpu.pipeline_mode<synchronous>, transform_indices = @transform_2, window_bounds = array<i64: 784, 400>}, {pipeline_mode = #tpu.pipeline_mode<synchronous>, transform_indices = @transform_3, window_bounds = array<i64: 1, 400>}, {pipeline_mode = #tpu.pipeline_mode<synchronous>, transform_indices = @transform_4, window_bounds = array<i64: 400, 200>}, {pipeline_mode = #tpu.pipeline_mode<synchronous>, transform_indices = @transform_5, window_bounds = array<i64: 1, 200>}, {pipeline_mode = #tpu.pipeline_mode<synchronous>, transform_indices = @transform_6, window_bounds = array<i64: 200, 4>}, {pipeline_mode = #tpu.pipeline_mode<synchronous>, transform_indices = @transform_7, window_bounds = array<i64: 1, 4>}, {pipeline_mode = #tpu.pipeline_mode<synchronous>, transform_indices = @transform_8, window_bounds = array<i64: 2, 200>}, {pipeline_mode = #tpu.pipeline_mode<synchronous>, transform_indices = @transform_9, window_bounds = array<i64: 1, 200>}, {pipeline_mode = #tpu.pipeline_mode<synchronous>, transform_indices = @transform_10, window_bounds = array<i64: 200, 400>}, {pipeline_mode = #tpu.pipeline_mode<synchronous>, transform_indices = @transform_11, window_bounds = array<i64: 1, 400>}, {pipeline_mode = #tpu.pipeline_mode<synchronous>, transform_indices = @transform_12, window_bounds = array<i64: 400, 896>}, {pipeline_mode = #tpu.pipeline_mode<synchronous>, transform_indices = @transform_13, window_bounds = array<i64: 1, 896>}, {transform_indices = @transform_14, window_bounds = array<i64: 8, 896>}, {transform_indices = @transform_15, window_bounds = array<i64: 8, 4>}]} {
    %c0 = arith.constant 0 : index
    %c0_0 = arith.constant 0 : index
    %0 = vector.load %arg1[%c0, %c0_0] : memref<8x784xf32, #tpu.memory_space<vmem>>, vector<8x784xf32>
    %1 = arith.truncf %0 : vector<8x784xf32> to vector<8x784xbf16>
    %c0_1 = arith.constant 0 : index
    %c0_2 = arith.constant 0 : index
    %2 = vector.load %arg3[%c0_1, %c0_2] : memref<784x400xbf16, #tpu.memory_space<vmem>>, vector<784x400xbf16>
    %cst = arith.constant dense<0.000000e+00> : vector<8x400xf32>
    %3 = tpu.matmul %1, %2, %cst {dimension_numbers = #tpu.dot_dimension_numbers<[1], [0], [0], [1], [0, 0, 1, 1], [], []>} : vector<8x784xbf16>, vector<784x400xbf16>, vector<8x400xf32> -> vector<8x400xf32>
    %c0_3 = arith.constant 0 : index
    %c0_4 = arith.constant 0 : index
    %4 = vector.load %arg4[%c0_3, %c0_4] : memref<1x400xf32, #tpu.memory_space<vmem>>, vector<1x400xf32>
    %5 = vector.broadcast %4 : vector<1x400xf32> to vector<8x400xf32>
    %6 = arith.addf %3, %5 : vector<8x400xf32>
    %cst_5 = arith.constant 2.000000e-01 : f32
    %7 = vector.broadcast %cst_5 : f32 to vector<8x400xf32>
    %8 = arith.mulf %7, %6 : vector<8x400xf32>
    %9 = arith.maximumf %6, %8 : vector<8x400xf32>
    %10 = arith.truncf %9 : vector<8x400xf32> to vector<8x400xbf16>
    %c0_6 = arith.constant 0 : index
    %c0_7 = arith.constant 0 : index
    %11 = vector.load %arg5[%c0_6, %c0_7] : memref<400x200xbf16, #tpu.memory_space<vmem>>, vector<400x200xbf16>
    %cst_8 = arith.constant dense<0.000000e+00> : vector<8x200xf32>
    %12 = tpu.matmul %10, %11, %cst_8 {dimension_numbers = #tpu.dot_dimension_numbers<[1], [0], [0], [1], [0, 0, 1, 1], [], []>} : vector<8x400xbf16>, vector<400x200xbf16>, vector<8x200xf32> -> vector<8x200xf32>
    %c0_9 = arith.constant 0 : index
    %c0_10 = arith.constant 0 : index
    %13 = vector.load %arg6[%c0_9, %c0_10] : memref<1x200xf32, #tpu.memory_space<vmem>>, vector<1x200xf32>
    %14 = vector.broadcast %13 : vector<1x200xf32> to vector<8x200xf32>
    %15 = arith.addf %12, %14 : vector<8x200xf32>
    %cst_11 = arith.constant 2.000000e-01 : f32
    %16 = vector.broadcast %cst_11 : f32 to vector<8x200xf32>
    %17 = arith.mulf %16, %15 : vector<8x200xf32>
    %18 = arith.maximumf %15, %17 : vector<8x200xf32>
    %19 = arith.truncf %18 : vector<8x200xf32> to vector<8x200xbf16>
    %c0_12 = arith.constant 0 : index
    %c0_13 = arith.constant 0 : index
    %20 = vector.load %arg7[%c0_12, %c0_13] : memref<200x4xbf16, #tpu.memory_space<vmem>>, vector<200x4xbf16>
    %cst_14 = arith.constant dense<0.000000e+00> : vector<8x4xf32>
    %21 = tpu.matmul %19, %20, %cst_14 {dimension_numbers = #tpu.dot_dimension_numbers<[1], [0], [0], [1], [0, 0, 1, 1], [], []>} : vector<8x200xbf16>, vector<200x4xbf16>, vector<8x4xf32> -> vector<8x4xf32>
    %c0_15 = arith.constant 0 : index
    %c0_16 = arith.constant 0 : index
    %22 = vector.load %arg8[%c0_15, %c0_16] : memref<1x4xf32, #tpu.memory_space<vmem>>, vector<1x4xf32>
    %23 = vector.broadcast %22 : vector<1x4xf32> to vector<8x4xf32>
    %24 = arith.addf %21, %23 : vector<8x4xf32>
    %c0_17 = arith.constant 0 : index
    %c0_18 = arith.constant 0 : index
    %25 = vector.load %arg16[%c0_17, %c0_18] : memref<8x4xf32, #tpu.memory_space<vmem>>, vector<8x4xf32>
    tpu.vector_store %arg16[%c0_17, %c0_18], %24 {strides = array<i32>} : memref<8x4xf32, #tpu.memory_space<vmem>>, vector<8x4xf32>,
    %26 = vector.extract_strided_slice %24 {offsets = [0, 0], sizes = [8, 2], strides = [1, 1]} : vector<8x4xf32> to vector<8x2xf32>
    %27 = vector.extract_strided_slice %24 {offsets = [0, 2], sizes = [8, 2], strides = [1, 1]} : vector<8x4xf32> to vector<8x2xf32>
    %cst_19 = arith.constant 5.000000e-01 : f32
    %28 = vector.broadcast %cst_19 : f32 to vector<8x2xf32>
    %29 = arith.mulf %28, %27 : vector<8x2xf32>
    %30 = math.exp %29 : vector<8x2xf32>
    %c0_20 = arith.constant 0 : index
    %c0_21 = arith.constant 0 : index
    %31 = vector.load %arg2[%c0_20, %c0_21] : memref<8x2xf32, #tpu.memory_space<vmem>>, vector<8x2xf32>
    %32 = arith.mulf %30, %31 : vector<8x2xf32>
    %33 = arith.addf %26, %32 : vector<8x2xf32>
    %c0_22 = arith.constant 0 : index
    %c0_23 = arith.constant 0 : index
    %34 = vector.load %arg9[%c0_22, %c0_23] : memref<2x200xbf16, #tpu.memory_space<vmem>>, vector<2x200xbf16>
    %35 = arith.extf %34 : vector<2x200xbf16> to vector<2x200xf32>
    %36 = vector.extract_strided_slice %33 {offsets = [0, 0], sizes = [8, 1], strides = [1, 1]} : vector<8x2xf32> to vector<8x1xf32>
    %37 = vector.extract_strided_slice %35 {offsets = [0, 0], sizes = [1, 200], strides = [1, 1]} : vector<2x200xf32> to vector<1x200xf32>
    %38 = vector.broadcast %36 : vector<8x1xf32> to vector<8x200xf32>
    %39 = vector.broadcast %37 : vector<1x200xf32> to vector<8x200xf32>
    %40 = arith.mulf %38, %39 : vector<8x200xf32>
    %41 = vector.extract_strided_slice %33 {offsets = [0, 1], sizes = [8, 1], strides = [1, 1]} : vector<8x2xf32> to vector<8x1xf32>
    %42 = vector.extract_strided_slice %35 {offsets = [1, 0], sizes = [1, 200], strides = [1, 1]} : vector<2x200xf32> to vector<1x200xf32>
    %43 = vector.broadcast %41 : vector<8x1xf32> to vector<8x200xf32>
    %44 = vector.broadcast %42 : vector<1x200xf32> to vector<8x200xf32>
    %45 = arith.mulf %43, %44 : vector<8x200xf32>
    %46 = arith.addf %40, %45 : vector<8x200xf32>
    %c0_24 = arith.constant 0 : index
    %c0_25 = arith.constant 0 : index
    %47 = vector.load %arg10[%c0_24, %c0_25] : memref<1x200xf32, #tpu.memory_space<vmem>>, vector<1x200xf32>
    %48 = vector.broadcast %47 : vector<1x200xf32> to vector<8x200xf32>
    %49 = arith.addf %46, %48 : vector<8x200xf32>
    %cst_26 = arith.constant 2.000000e-01 : f32
    %50 = vector.broadcast %cst_26 : f32 to vector<8x200xf32>
    %51 = arith.mulf %50, %49 : vector<8x200xf32>
    %52 = arith.maximumf %49, %51 : vector<8x200xf32>
    %53 = arith.truncf %52 : vector<8x200xf32> to vector<8x200xbf16>
    %c0_27 = arith.constant 0 : index
    %c0_28 = arith.constant 0 : index
    %54 = vector.load %arg11[%c0_27, %c0_28] : memref<200x400xbf16, #tpu.memory_space<vmem>>, vector<200x400xbf16>
    %cst_29 = arith.constant dense<0.000000e+00> : vector<8x400xf32>
    %55 = tpu.matmul %53, %54, %cst_29 {dimension_numbers = #tpu.dot_dimension_numbers<[1], [0], [0], [1], [0, 0, 1, 1], [], []>} : vector<8x200xbf16>, vector<200x400xbf16>, vector<8x400xf32> -> vector<8x400xf32>
    %c0_30 = arith.constant 0 : index
    %c0_31 = arith.constant 0 : index
    %56 = vector.load %arg12[%c0_30, %c0_31] : memref<1x400xf32, #tpu.memory_space<vmem>>, vector<1x400xf32>
    %57 = vector.broadcast %56 : vector<1x400xf32> to vector<8x400xf32>
    %58 = arith.addf %55, %57 : vector<8x400xf32>
    %cst_32 = arith.constant 2.000000e-01 : f32
    %59 = vector.broadcast %cst_32 : f32 to vector<8x400xf32>
    %60 = arith.mulf %59, %58 : vector<8x400xf32>
    %61 = arith.maximumf %58, %60 : vector<8x400xf32>
    %62 = arith.truncf %61 : vector<8x400xf32> to vector<8x400xbf16>
    %c0_33 = arith.constant 0 : index
    %c0_34 = arith.constant 0 : index
    %63 = vector.load %arg13[%c0_33, %c0_34] : memref<400x896xbf16, #tpu.memory_space<vmem>>, vector<400x896xbf16>
    %cst_35 = arith.constant dense<0.000000e+00> : vector<8x896xf32>
    %64 = tpu.matmul %62, %63, %cst_35 {dimension_numbers = #tpu.dot_dimension_numbers<[1], [0], [0], [1], [0, 0, 1, 1], [], []>} : vector<8x400xbf16>, vector<400x896xbf16>, vector<8x896xf32> -> vector<8x896xf32>
    %c0_36 = arith.constant 0 : index
    %c0_37 = arith.constant 0 : index
    %65 = vector.load %arg14[%c0_36, %c0_37] : memref<1x896xf32, #tpu.memory_space<vmem>>, vector<1x896xf32>
    %66 = vector.broadcast %65 : vector<1x896xf32> to vector<8x896xf32>
    %67 = arith.addf %64, %66 : vector<8x896xf32>
    %cst_38 = arith.constant 5.000000e-01 : f32
    %68 = vector.broadcast %cst_38 : f32 to vector<8x896xf32>
    %69 = arith.mulf %68, %67 : vector<8x896xf32>
    %70 = math.tanh %69 : vector<8x896xf32>
    %cst_39 = arith.constant 1.000000e+00 : f32
    %71 = vector.broadcast %cst_39 : f32 to vector<8x896xf32>
    %72 = arith.addf %70, %71 : vector<8x896xf32>
    %cst_40 = arith.constant 5.000000e-01 : f32
    %73 = vector.broadcast %cst_40 : f32 to vector<8x896xf32>
    %74 = arith.mulf %73, %72 : vector<8x896xf32>
    %75 = arith.truncf %74 : vector<8x896xf32> to vector<8x896xbf16>
    %c0_41 = arith.constant 0 : index
    %c0_42 = arith.constant 0 : index
    %76 = vector.load %arg15[%c0_41, %c0_42] : memref<8x896xbf16, #tpu.memory_space<vmem>>, vector<8x896xbf16>
    tpu.vector_store %arg15[%c0_41, %c0_42], %75 {strides = array<i32>} : memref<8x896xbf16, #tpu.memory_space<vmem>>, vector<8x896xbf16>,
    return
  }
  func.func @transform_0(%arg0: i32) -> (i32, i32) {
    %c0_i32 = arith.constant 0 : i32
    %c0_i32_0 = arith.constant 0 : i32
    return %arg0, %c0_i32 : i32, i32
  }
  func.func @transform_1(%arg0: i32) -> (i32, i32) {
    %c0_i32 = arith.constant 0 : i32
    %c0_i32_0 = arith.constant 0 : i32
    return %arg0, %c0_i32 : i32, i32
  }
  func.func @transform_2(%arg0: i32) -> (i32, i32) {
    %c0_i32 = arith.constant 0 : i32
    %c0_i32_0 = arith.constant 0 : i32
    %c0_i32_1 = arith.constant 0 : i32
    return %c0_i32, %c0_i32_0 : i32, i32
  }
  func.func @transform_3(%arg0: i32) -> (i32, i32) {
    %c0_i32 = arith.constant 0 : i32
    %c0_i32_0 = arith.constant 0 : i32
    %c0_i32_1 = arith.constant 0 : i32
    return %c0_i32, %c0_i32_0 : i32, i32
  }
  func.func @transform_4(%arg0: i32) -> (i32, i32) {
    %c0_i32 = arith.constant 0 : i32
    %c0_i32_0 = arith.constant 0 : i32
    %c0_i32_1 = arith.constant 0 : i32
    return %c0_i32, %c0_i32_0 : i32, i32
  }
  func.func @transform_5(%arg0: i32) -> (i32, i32) {
    %c0_i32 = arith.constant 0 : i32
    %c0_i32_0 = arith.constant 0 : i32
    %c0_i32_1 = arith.constant 0 : i32
    return %c0_i32, %c0_i32_0 : i32, i32
  }
  func.func @transform_6(%arg0: i32) -> (i32, i32) {
    %c0_i32 = arith.constant 0 : i32
    %c0_i32_0 = arith.constant 0 : i32
    %c0_i32_1 = arith.constant 0 : i32
    return %c0_i32, %c0_i32_0 : i32, i32
  }
  func.func @transform_7(%arg0: i32) -> (i32, i32) {
    %c0_i32 = arith.constant 0 : i32
    %c0_i32_0 = arith.constant 0 : i32
    %c0_i32_1 = arith.constant 0 : i32
    return %c0_i32, %c0_i32_0 : i32, i32
  }
  func.func @transform_8(%arg0: i32) -> (i32, i32) {
    %c0_i32 = arith.constant 0 : i32
    %c0_i32_0 = arith.constant 0 : i32
    %c0_i32_1 = arith.constant 0 : i32
    return %c0_i32, %c0_i32_0 : i32, i32
  }
  func.func @transform_9(%arg0: i32) -> (i32, i32) {
    %c0_i32 = arith.constant 0 : i32
    %c0_i32_0 = arith.constant 0 : i32
    %c0_i32_1 = arith.constant 0 : i32
    return %c0_i32, %c0_i32_0 : i32, i32
  }
  func.func @transform_10(%arg0: i32) -> (i32, i32) {
    %c0_i32 = arith.constant 0 : i32
    %c0_i32_0 = arith.constant 0 : i32
    %c0_i32_1 = arith.constant 0 : i32
    return %c0_i32, %c0_i32_0 : i32, i32
  }
  func.func @transform_11(%arg0: i32) -> (i32, i32) {
    %c0_i32 = arith.constant 0 : i32
    %c0_i32_0 = arith.constant 0 : i32
    %c0_i32_1 = arith.constant 0 : i32
    return %c0_i32, %c0_i32_0 : i32, i32
  }
  func.func @transform_12(%arg0: i32) -> (i32, i32) {
    %c0_i32 = arith.constant 0 : i32
    %c0_i32_0 = arith.constant 0 : i32
    %c0_i32_1 = arith.constant 0 : i32
    return %c0_i32, %c0_i32_0 : i32, i32
  }
  func.func @transform_13(%arg0: i32) -> (i32, i32) {
    %c0_i32 = arith.constant 0 : i32
    %c0_i32_0 = arith.constant 0 : i32
    %c0_i32_1 = arith.constant 0 : i32
    return %c0_i32, %c0_i32_0 : i32, i32
  }
  func.func @transform_14(%arg0: i32) -> (i32, i32) {
    %c0_i32 = arith.constant 0 : i32
    %c0_i32_0 = arith.constant 0 : i32
    return %arg0, %c0_i32 : i32, i32
  }
  func.func @transform_15(%arg0: i32) -> (i32, i32) {
    %c0_i32 = arith.constant 0 : i32
    %c0_i32_0 = arith.constant 0 : i32
    return %arg0, %c0_i32 : i32, i32
  }
}

</mosaic_0001>

<llo_original>
// kernel: tpu_custom_call.1
$region0: #{tpu_custom_call.1}
  #allocation0 [shape = 'u32[]', space=smem, size = 0x4, offset = 0x4, fixed_abs, tag = 'smem constant byte address 0x4 - core index']
  #allocation1 [shape = 'u32[72,128]{1,0:T(1,128)}', space=vmem, size = 0x9000, scoped, tag = 'internal scratch']
  %s0 = inlined_call_operand.vmem [shape: f32[8,784], index: 0, kind: input, shape index: {}]
  %s1 = inlined_call_operand.vmem [shape: f32[8,2], index: 1, kind: input, shape index: {}]
  %s2 = inlined_call_operand.vmem [shape: bf16[784,400], index: 2, kind: input, shape index: {}]
  %s3 = inlined_call_operand.vmem [shape: f32[1,400], index: 3, kind: input, shape index: {}]
  %s4 = inlined_call_operand.vmem [shape: bf16[400,200], index: 4, kind: input, shape index: {}]
  %s5 = inlined_call_operand.vmem [shape: f32[1,200], index: 5, kind: input, shape index: {}]
  %s6 = inlined_call_operand.vmem [shape: bf16[200,4], index: 6, kind: input, shape index: {}]
  %s7 = inlined_call_operand.vmem [shape: f32[1,4], index: 7, kind: input, shape index: {}]
  %s8 = inlined_call_operand.vmem [shape: bf16[2,200], index: 8, kind: input, shape index: {}]
  %s9 = inlined_call_operand.vmem [shape: f32[1,200], index: 9, kind: input, shape index: {}]
  %s10 = inlined_call_operand.vmem [shape: bf16[200,400], index: 10, kind: input, shape index: {}]
  %s11 = inlined_call_operand.vmem [shape: f32[1,400], index: 11, kind: input, shape index: {}]
  %s12 = inlined_call_operand.vmem [shape: bf16[400,896], index: 12, kind: input, shape index: {}]
  %s13 = inlined_call_operand.vmem [shape: f32[1,896], index: 13, kind: input, shape index: {}]
  %s14 = inlined_call_operand.hbm [shape: bf16[8,896], index: 14, kind: output, shape index: {0}]
  %s15 = inlined_call_operand.vmem [shape: f32[8,4], index: 15, kind: output, shape index: {1}]
  %16 = xla_tuple %s14, %s15
  %s17 = sld [smem:[#allocation0]]
  $region74: #{tpu_custom_call.1} parent=0
    _
  %s19 = ssub.s32 1, %s17
  %s20 = scalar_select 0, %s19, %s17
  $region1: #{tpu_custom_call.1} parent=0
    #allocation2 [shape = 'u8[14336]{0}', space=vmem, size = 0x3800, scoped, tag = 'output window, operand 0, single buffered']
    #allocation3 [shape = 's32[1]{0}', space=sflag, size = 0x4, scoped, tag = 'scoped memory for tpu_custom_call.1']
    %21 = vsyncpa [#allocation3], 0
    // Predicated region
    $region2: #{tpu_custom_call.1} parent=1 // pred_check
      _
    $region3: #{tpu_custom_call.1} parent=1 // pred_check_branch
      %23 = sbr.rel (0) target = $region5
    $region4: #{tpu_custom_call.1} parent=1 // pred_region
      _
    $region5: #{tpu_custom_call.1} parent=1 // pred_fallthru
      _
    // Predicated region
    $region6: #{tpu_custom_call.1} parent=1 // pred_check
      _
    $region7: #{tpu_custom_call.1} parent=1 // pred_check_branch
      %25 = sbr.rel (0) target = $region9
    $region8: #{tpu_custom_call.1} parent=1 // pred_region
      _
    $region9: #{tpu_custom_call.1} parent=1 // pred_fallthru
      _
    // Predicated region
    $region10: #{tpu_custom_call.1} parent=1 // pred_check
      _
    $region11: #{tpu_custom_call.1} parent=1 // pred_check_branch
      %27 = sbr.rel (0) target = $region13
    $region12: #{tpu_custom_call.1} parent=1 // pred_region
      _
    $region13: #{tpu_custom_call.1} parent=1 // pred_fallthru
      _
    // Predicated region
    $region14: #{tpu_custom_call.1} parent=1 // pred_check
      _
    $region15: #{tpu_custom_call.1} parent=1 // pred_check_branch
      %29 = sbr.rel (0) target = $region17
    $region16: #{tpu_custom_call.1} parent=1 // pred_region
      _
    $region17: #{tpu_custom_call.1} parent=1 // pred_fallthru
      _
    // Predicated region
    $region18: #{tpu_custom_call.1} parent=1 // pred_check
      _
    $region19: #{tpu_custom_call.1} parent=1 // pred_check_branch
      %31 = sbr.rel (0) target = $region21
    $region20: #{tpu_custom_call.1} parent=1 // pred_region
      _
    $region21: #{tpu_custom_call.1} parent=1 // pred_fallthru
      _
    // Predicated region
    $region22: #{tpu_custom_call.1} parent=1 // pred_check
      _
    $region23: #{tpu_custom_call.1} parent=1 // pred_check_branch
      %33 = sbr.rel (0) target = $region25
    $region24: #{tpu_custom_call.1} parent=1 // pred_region
      _
    $region25: #{tpu_custom_call.1} parent=1 // pred_fallthru
      _
    // Predicated region
    $region26: #{tpu_custom_call.1} parent=1 // pred_check
      _
    $region27: #{tpu_custom_call.1} parent=1 // pred_check_branch
      %35 = sbr.rel (0) target = $region29
    $region28: #{tpu_custom_call.1} parent=1 // pred_region
      _
    $region29: #{tpu_custom_call.1} parent=1 // pred_fallthru
      _
    // Predicated region
    $region30: #{tpu_custom_call.1} parent=1 // pred_check
      _
    $region31: #{tpu_custom_call.1} parent=1 // pred_check_branch
      %37 = sbr.rel (0) target = $region33
    $region32: #{tpu_custom_call.1} parent=1 // pred_region
      _
    $region33: #{tpu_custom_call.1} parent=1 // pred_fallthru
      _
    // Predicated region
    $region34: #{tpu_custom_call.1} parent=1 // pred_check
      _
    $region35: #{tpu_custom_call.1} parent=1 // pred_check_branch
      %39 = sbr.rel (0) target = $region37
    $region36: #{tpu_custom_call.1} parent=1 // pred_region
      _
    $region37: #{tpu_custom_call.1} parent=1 // pred_fallthru
      _
    // Predicated region
    $region38: #{tpu_custom_call.1} parent=1 // pred_check
      _
    $region39: #{tpu_custom_call.1} parent=1 // pred_check_branch
      %41 = sbr.rel (0) target = $region41
    $region40: #{tpu_custom_call.1} parent=1 // pred_region
      _
    $region41: #{tpu_custom_call.1} parent=1 // pred_fallthru
      _
    // Predicated region
    $region42: #{tpu_custom_call.1} parent=1 // pred_check
      _
    $region43: #{tpu_custom_call.1} parent=1 // pred_check_branch
      %43 = sbr.rel (0) target = $region45
    $region44: #{tpu_custom_call.1} parent=1 // pred_region
      _
    $region45: #{tpu_custom_call.1} parent=1 // pred_fallthru
      _
    // Predicated region
    $region46: #{tpu_custom_call.1} parent=1 // pred_check
      _
    $region47: #{tpu_custom_call.1} parent=1 // pred_check_branch
      %45 = sbr.rel (0) target = $region49
    $region48: #{tpu_custom_call.1} parent=1 // pred_region
      _
    $region49: #{tpu_custom_call.1} parent=1 // pred_fallthru
      _
    // Predicated region
    $region50: #{tpu_custom_call.1} parent=1 // pred_check
      _
    $region51: #{tpu_custom_call.1} parent=1 // pred_check_branch
      %47 = sbr.rel (0) target = $region53
    $region52: #{tpu_custom_call.1} parent=1 // pred_region
      _
    $region53: #{tpu_custom_call.1} parent=1 // pred_fallthru
      _
    // Predicated region
    $region54: #{tpu_custom_call.1} parent=1 // pred_check
      _
    $region55: #{tpu_custom_call.1} parent=1 // pred_check_branch
      %49 = sbr.rel (0) target = $region57
    $region56: #{tpu_custom_call.1} parent=1 // pred_region
      _
    $region57: #{tpu_custom_call.1} parent=1 // pred_fallthru
      _
    %v51 = vld [vmem:[%s0] sm:$0xff]
    %v52 = vld [vmem:[%s0 + $0x8] sm:$0xff]
    %v53 = vld [vmem:[%s0 + $0x10] sm:$0xff]
    %v54 = vld [vmem:[%s0 + $0x18] sm:$0xff]
    %v55 = vld [vmem:[%s0 + $0x20] sm:$0xff]
    %v56 = vld [vmem:[%s0 + $0x28] sm:$0xff]
    %v57 = vld [vmem:[%s0 + $0x30] sm:$0xff]
    %v58 = vpack.c.bf16 %v51, %v51
    %v59 = vpack.c.bf16 %v52, %v52
    %v60 = vpack.c.bf16 %v53, %v53
    %v61 = vpack.c.bf16 %v54, %v54
    %v62 = vpack.c.bf16 %v55, %v55
    %v63 = vpack.c.bf16 %v56, %v56
    %v64 = vpack.c.bf16 %v57, %v57
    %v65 = vld [vmem:[%s2] sm:$0xff]
    %v66 = vld [vmem:[%s2 + $0x8] sm:$0xff]
    %v67 = vld [vmem:[%s2 + $0x10] sm:$0xff]
    %v68 = vld [vmem:[%s2 + $0x18] sm:$0xff]
    %v69 = vld [vmem:[%s2 + $0x20] sm:$0xff]
    %v70 = vld [vmem:[%s2 + $0x28] sm:$0xff]
    %v71 = vld [vmem:[%s2 + $0x30] sm:$0xff]
    %v72 = vld [vmem:[%s2 + $0x38] sm:$0xff]
    %v73 = vld [vmem:[%s2 + $0x40] sm:$0xff]
    %v74 = vld [vmem:[%s2 + $0x48] sm:$0xff]
    %v75 = vld [vmem:[%s2 + $0x50] sm:$0xff]
    %v76 = vld [vmem:[%s2 + $0x58] sm:$0xff]
    %v77 = vld [vmem:[%s2 + $0x60] sm:$0xff]
    %v78 = vld [vmem:[%s2 + $0x68] sm:$0xff]
    %v79 = vld [vmem:[%s2 + $0x70] sm:$0xff]
    %v80 = vld [vmem:[%s2 + $0x78] sm:$0xff]
    %v81 = vld [vmem:[%s2 + $0x80] sm:$0xff]
    %v82 = vld [vmem:[%s2 + $0x88] sm:$0xff]
    %v83 = vld [vmem:[%s2 + $0x90] sm:$0xff]
    %v84 = vld [vmem:[%s2 + $0x98] sm:$0xff]
    %v85 = vld [vmem:[%s2 + $0xa0] sm:$0xff]
    %v86 = vld [vmem:[%s2 + $0xa8] sm:$0xff]
    %v87 = vld [vmem:[%s2 + $0xb0] sm:$0xff]
    %v88 = vld [vmem:[%s2 + $0xb8] sm:$0xff]
    %v89 = vld [vmem:[%s2 + $0xc0] sm:$0xff]
    %v90 = vld [vmem:[%s2 + $0xc8] sm:$0xff]
    %v91 = vld [vmem:[%s2 + $0xd0] sm:$0xff]
    %v92 = vld [vmem:[%s2 + $0xd8] sm:$0xff]
    %v93 = vld [vmem:[%s2 + $0xe0] sm:$0xff]
    %v94 = vld [vmem:[%s2 + $0xe8] sm:$0xff]
    %v95 = vld [vmem:[%s2 + $0xf0] sm:$0xff]
    %v96 = vld [vmem:[%s2 + $0xf8] sm:$0xff]
    %v97 = vld [vmem:[%s2 + $0x100] sm:$0xff]
    %v98 = vld [vmem:[%s2 + $0x108] sm:$0xff]
    %v99 = vld [vmem:[%s2 + $0x110] sm:$0xff]
    %v100 = vld [vmem:[%s2 + $0x118] sm:$0xff]
    %v101 = vld [vmem:[%s2 + $0x120] sm:$0xff]
    %v102 = vld [vmem:[%s2 + $0x128] sm:$0xff]
    %v103 = vld [vmem:[%s2 + $0x130] sm:$0xff]
    %v104 = vld [vmem:[%s2 + $0x138] sm:$0xff]
    %v105 = vld [vmem:[%s2 + $0x140] sm:$0xff]
    %v106 = vld [vmem:[%s2 + $0x148] sm:$0xff]
    %v107 = vld [vmem:[%s2 + $0x150] sm:$0xff]
    %v108 = vld [vmem:[%s2 + $0x158] sm:$0xff]
    %v109 = vld [vmem:[%s2 + $0x160] sm:$0xff]
    %v110 = vld [vmem:[%s2 + $0x168] sm:$0xff]
    %v111 = vld [vmem:[%s2 + $0x170] sm:$0xff]
    %v112 = vld [vmem:[%s2 + $0x178] sm:$0xff]
    %v113 = vld [vmem:[%s2 + $0x180] sm:$0xff]
    %v114 = vld [vmem:[%s2 + $0x188] sm:$0xff]
    %v115 = vld [vmem:[%s2 + $0x190] sm:$0xff]
    %v116 = vld [vmem:[%s2 + $0x198] sm:$0xff]
    %v117 = vld [vmem:[%s2 + $0x1a0] sm:$0xff]
    %v118 = vld [vmem:[%s2 + $0x1a8] sm:$0xff]
    %v119 = vld [vmem:[%s2 + $0x1b0] sm:$0xff]
    %v120 = vld [vmem:[%s2 + $0x1b8] sm:$0xff]
    %v121 = vld [vmem:[%s2 + $0x1c0] sm:$0xff]
    %v122 = vld [vmem:[%s2 + $0x1c8] sm:$0xff]
    %v123 = vld [vmem:[%s2 + $0x1d0] sm:$0xff]
    %v124 = vld [vmem:[%s2 + $0x1d8] sm:$0xff]
    %v125 = vld [vmem:[%s2 + $0x1e0] sm:$0xff]
    %v126 = vld [vmem:[%s2 + $0x1e8] sm:$0xff]
    %v127 = vld [vmem:[%s2 + $0x1f0] sm:$0xff]
    %v128 = vld [vmem:[%s2 + $0x1f8] sm:$0xff]
    %v129 = vld [vmem:[%s2 + $0x200] sm:$0xff]
    %v130 = vld [vmem:[%s2 + $0x208] sm:$0xff]
    %v131 = vld [vmem:[%s2 + $0x210] sm:$0xff]
    %v132 = vld [vmem:[%s2 + $0x218] sm:$0xff]
    %v133 = vld [vmem:[%s2 + $0x220] sm:$0xff]
    %v134 = vld [vmem:[%s2 + $0x228] sm:$0xff]
    %v135 = vld [vmem:[%s2 + $0x230] sm:$0xff]
    %v136 = vld [vmem:[%s2 + $0x238] sm:$0xff]
    %v137 = vld [vmem:[%s2 + $0x240] sm:$0xff]
    %v138 = vld [vmem:[%s2 + $0x248] sm:$0xff]
    %v139 = vld [vmem:[%s2 + $0x250] sm:$0xff]
    %v140 = vld [vmem:[%s2 + $0x258] sm:$0xff]
    %v141 = vld [vmem:[%s2 + $0x260] sm:$0xff]
    %v142 = vld [vmem:[%s2 + $0x268] sm:$0xff]
    %v143 = vld [vmem:[%s2 + $0x270] sm:$0xff]
    %v144 = vld [vmem:[%s2 + $0x278] sm:$0xff]
    %v145 = vld [vmem:[%s2 + $0x280] sm:$0xff]
    %v146 = vld [vmem:[%s2 + $0x288] sm:$0xff]
    %v147 = vld [vmem:[%s2 + $0x290] sm:$0xff]
    %v148 = vld [vmem:[%s2 + $0x298] sm:$0xff]
    %v149 = vld [vmem:[%s2 + $0x2a0] sm:$0xff]
    %v150 = vld [vmem:[%s2 + $0x2a8] sm:$0xff]
    %v151 = vld [vmem:[%s2 + $0x2b0] sm:$0xff]
    %v152 = vld [vmem:[%s2 + $0x2b8] sm:$0xff]
    %v153 = vld [vmem:[%s2 + $0x2c0] sm:$0xff]
    %v154 = vld [vmem:[%s2 + $0x2c8] sm:$0xff]
    %v155 = vld [vmem:[%s2 + $0x2d0] sm:$0xff]
    %v156 = vld [vmem:[%s2 + $0x2d8] sm:$0xff]
    %v157 = vld [vmem:[%s2 + $0x2e0] sm:$0xff]
    %v158 = vld [vmem:[%s2 + $0x2e8] sm:$0xff]
    %v159 = vld [vmem:[%s2 + $0x2f0] sm:$0xff]
    %v160 = vld [vmem:[%s2 + $0x2f8] sm:$0xff]
    %v161 = vld [vmem:[%s2 + $0x300] sm:$0xff]
    %v162 = vld [vmem:[%s2 + $0x308] sm:$0xff]
    %v163 = vld [vmem:[%s2 + $0x310] sm:$0xff]
    %v164 = vld [vmem:[%s2 + $0x318] sm:$0xff]
    %v165 = vld [vmem:[%s2 + $0x320] sm:$0xff]
    %v166 = vld [vmem:[%s2 + $0x328] sm:$0xff]
    %v167 = vld [vmem:[%s2 + $0x330] sm:$0xff]
    %v168 = vld [vmem:[%s2 + $0x338] sm:$0xff]
    %v169 = vld [vmem:[%s2 + $0x340] sm:$0xff]
    %v170 = vld [vmem:[%s2 + $0x348] sm:$0xff]
    %v171 = vld [vmem:[%s2 + $0x350] sm:$0xff]
    %v172 = vld [vmem:[%s2 + $0x358] sm:$0xff]
    %v173 = vld [vmem:[%s2 + $0x360] sm:$0xff]
    %v174 = vld [vmem:[%s2 + $0x368] sm:$0xff]
    %v175 = vld [vmem:[%s2 + $0x370] sm:$0xff]
    %v176 = vld [vmem:[%s2 + $0x378] sm:$0xff]
    %v177 = vld [vmem:[%s2 + $0x380] sm:$0xff]
    %v178 = vld [vmem:[%s2 + $0x388] sm:$0xff]
    %v179 = vld [vmem:[%s2 + $0x390] sm:$0xff]
    %v180 = vld [vmem:[%s2 + $0x398] sm:$0xff]
    %v181 = vld [vmem:[%s2 + $0x3a0] sm:$0xff]
    %v182 = vld [vmem:[%s2 + $0x3a8] sm:$0xff]
    %v183 = vld [vmem:[%s2 + $0x3b0] sm:$0xff]
    %v184 = vld [vmem:[%s2 + $0x3b8] sm:$0xff]
    %v185 = vld [vmem:[%s2 + $0x3c0] sm:$0xff]
    %v186 = vld [vmem:[%s2 + $0x3c8] sm:$0xff]
    %v187 = vld [vmem:[%s2 + $0x3d0] sm:$0xff]
    %v188 = vld [vmem:[%s2 + $0x3d8] sm:$0xff]
    %v189 = vld [vmem:[%s2 + $0x3e0] sm:$0xff]
    %v190 = vld [vmem:[%s2 + $0x3e8] sm:$0xff]
    %v191 = vld [vmem:[%s2 + $0x3f0] sm:$0xff]
    %v192 = vld [vmem:[%s2 + $0x3f8] sm:$0xff]
    %v193 = vld [vmem:[%s2 + $0x400] sm:$0xff]
    %v194 = vld [vmem:[%s2 + $0x408] sm:$0xff]
    %v195 = vld [vmem:[%s2 + $0x410] sm:$0xff]
    %v196 = vld [vmem:[%s2 + $0x418] sm:$0xff]
    %v197 = vld [vmem:[%s2 + $0x420] sm:$0xff]
    %v198 = vld [vmem:[%s2 + $0x428] sm:$0xff]
    %v199 = vld [vmem:[%s2 + $0x430] sm:$0xff]
    %v200 = vld [vmem:[%s2 + $0x438] sm:$0xff]
    %v201 = vld [vmem:[%s2 + $0x440] sm:$0xff]
    %v202 = vld [vmem:[%s2 + $0x448] sm:$0xff]
    %v203 = vld [vmem:[%s2 + $0x450] sm:$0xff]
    %v204 = vld [vmem:[%s2 + $0x458] sm:$0xff]
    %v205 = vld [vmem:[%s2 + $0x460] sm:$0xff]
    %v206 = vld [vmem:[%s2 + $0x468] sm:$0xff]
    %v207 = vld [vmem:[%s2 + $0x470] sm:$0xff]
    %v208 = vld [vmem:[%s2 + $0x478] sm:$0xff]
    %v209 = vld [vmem:[%s2 + $0x480] sm:$0xff]
    %v210 = vld [vmem:[%s2 + $0x488] sm:$0xff]
    %v211 = vld [vmem:[%s2 + $0x490] sm:$0xff]
    %v212 = vld [vmem:[%s2 + $0x498] sm:$0xff]
    %v213 = vld [vmem:[%s2 + $0x4a0] sm:$0xff]
    %v214 = vld [vmem:[%s2 + $0x4a8] sm:$0xff]
    %v215 = vld [vmem:[%s2 + $0x4b0] sm:$0xff]
    %v216 = vld [vmem:[%s2 + $0x4b8] sm:$0xff]
    %v217 = vld [vmem:[%s2 + $0x4c0] sm:$0xff]
    %v218 = vld [vmem:[%s2 + $0x4c8] sm:$0xff]
    %v219 = vld [vmem:[%s2 + $0x4d0] sm:$0xff]
    %v220 = vld [vmem:[%s2 + $0x4d8] sm:$0xff]
    %v221 = vld [vmem:[%s2 + $0x4e0] sm:$0xff]
    %v222 = vld [vmem:[%s2 + $0x4e8] sm:$0xff]
    %v223 = vld [vmem:[%s2 + $0x4f0] sm:$0xff]
    %v224 = vld [vmem:[%s2 + $0x4f8] sm:$0xff]
    %v225 = vld [vmem:[%s2 + $0x500] sm:$0xff]
    %v226 = vld [vmem:[%s2 + $0x508] sm:$0xff]
    %v227 = vld [vmem:[%s2 + $0x510] sm:$0xff]
    %v228 = vld [vmem:[%s2 + $0x518] sm:$0xff]
    %v229 = vld [vmem:[%s2 + $0x520] sm:$0xff]
    %v230 = vld [vmem:[%s2 + $0x528] sm:$0xff]
    %v231 = vld [vmem:[%s2 + $0x530] sm:$0xff]
    %v232 = vld [vmem:[%s2 + $0x538] sm:$0xff]
    %v233 = vld [vmem:[%s2 + $0x540] sm:$0xff]
    %v234 = vld [vmem:[%s2 + $0x548] sm:$0xff]
    %v235 = vld [vmem:[%s2 + $0x550] sm:$0xff]
    %v236 = vld [vmem:[%s2 + $0x558] sm:$0xff]
    %v237 = vld [vmem:[%s2 + $0x560] sm:$0xff]
    %v238 = vld [vmem:[%s2 + $0x568] sm:$0xff]
    %v239 = vld [vmem:[%s2 + $0x570] sm:$0xff]
    %v240 = vld [vmem:[%s2 + $0x578] sm:$0xff]
    %v241 = vld [vmem:[%s2 + $0x580] sm:$0xff]
    %v242 = vld [vmem:[%s2 + $0x588] sm:$0xff]
    %v243 = vld [vmem:[%s2 + $0x590] sm:$0xff]
    %v244 = vld [vmem:[%s2 + $0x598] sm:$0xff]
    %v245 = vld [vmem:[%s2 + $0x5a0] sm:$0xff]
    %v246 = vld [vmem:[%s2 + $0x5a8] sm:$0xff]
    %v247 = vld [vmem:[%s2 + $0x5b0] sm:$0xff]
    %v248 = vld [vmem:[%s2 + $0x5b8] sm:$0xff]
    %v249 = vld [vmem:[%s2 + $0x5c0] sm:$0xff]
    %v250 = vld [vmem:[%s2 + $0x5c8] sm:$0xff]
    %v251 = vld [vmem:[%s2 + $0x5d0] sm:$0xff]
    %v252 = vld [vmem:[%s2 + $0x5d8] sm:$0xff]
    %v253 = vld [vmem:[%s2 + $0x5e0] sm:$0xff]
    %v254 = vld [vmem:[%s2 + $0x5e8] sm:$0xff]
    %v255 = vld [vmem:[%s2 + $0x5f0] sm:$0xff]
    %v256 = vld [vmem:[%s2 + $0x5f8] sm:$0xff]
    %v257 = vld [vmem:[%s2 + $0x600] sm:$0xff]
    %v258 = vld [vmem:[%s2 + $0x608] sm:$0xff]
    %v259 = vld [vmem:[%s2 + $0x610] sm:$0xff]
    %v260 = vld [vmem:[%s2 + $0x618] sm:$0xff]
    %v261 = vld [vmem:[%s3] sm:$0xf]
    %v263 = vperm.slane %v261, 0
    %v264 = vperm.slane %v261, 1
    %v265 = vperm.slane %v261, 2
    %v266 = vperm.slane %v261, 3
    %v467 = vunpack.c.l.b16 %v65
    %v468 = vunpack.c.h.b16 %v65
    %v469 = vunpack.c.l.b16 %v66
    %v470 = vunpack.c.h.b16 %v66
    %v471 = vunpack.c.l.b16 %v67
    %v472 = vunpack.c.h.b16 %v67
    %v473 = vunpack.c.l.b16 %v68
    %v474 = vunpack.c.h.b16 %v68
    %v475 = vunpack.c.l.b16 %v69
    %v476 = vunpack.c.h.b16 %v69
    %v477 = vunpack.c.l.b16 %v70
    %v478 = vunpack.c.h.b16 %v70
    %v479 = vunpack.c.l.b16 %v71
    %v480 = vunpack.c.h.b16 %v71
    %v481 = vunpack.c.l.b16 %v72
    %v482 = vunpack.c.h.b16 %v72
    %v483 = vunpack.c.l.b16 %v73
    %v484 = vunpack.c.h.b16 %v73
    %v485 = vunpack.c.l.b16 %v74
    %v486 = vunpack.c.h.b16 %v74
    %v487 = vunpack.c.l.b16 %v75
    %v488 = vunpack.c.h.b16 %v75
    %v489 = vunpack.c.l.b16 %v76
    %v490 = vunpack.c.h.b16 %v76
    %v491 = vunpack.c.l.b16 %v77
    %v492 = vunpack.c.h.b16 %v77
    %v493 = vunpack.c.l.b16 %v78
    %v494 = vunpack.c.h.b16 %v78
    %v495 = vunpack.c.l.b16 %v79
    %v496 = vunpack.c.h.b16 %v79
    %v497 = vunpack.c.l.b16 %v80
    %v498 = vunpack.c.h.b16 %v80
    %v499 = vunpack.c.l.b16 %v81
    %v500 = vunpack.c.h.b16 %v81
    %v501 = vunpack.c.l.b16 %v82
    %v502 = vunpack.c.h.b16 %v82
    %v503 = vunpack.c.l.b16 %v83
    %v504 = vunpack.c.h.b16 %v83
    %v505 = vunpack.c.l.b16 %v84
    %v506 = vunpack.c.h.b16 %v84
    %v507 = vunpack.c.l.b16 %v85
    %v508 = vunpack.c.h.b16 %v85
    %v509 = vunpack.c.l.b16 %v86
    %v510 = vunpack.c.h.b16 %v86
    %v511 = vunpack.c.l.b16 %v87
    %v512 = vunpack.c.h.b16 %v87
    %v513 = vunpack.c.l.b16 %v88
    %v514 = vunpack.c.h.b16 %v88
    %v515 = vunpack.c.l.b16 %v89
    %v516 = vunpack.c.h.b16 %v89
    %v517 = vunpack.c.l.b16 %v90
    %v518 = vunpack.c.h.b16 %v90
    %v519 = vunpack.c.l.b16 %v91
    %v520 = vunpack.c.h.b16 %v91
    %v521 = vunpack.c.l.b16 %v92
    %v522 = vunpack.c.h.b16 %v92
    %v523 = vunpack.c.l.b16 %v93
    %v524 = vunpack.c.h.b16 %v93
    %v525 = vunpack.c.l.b16 %v94
    %v526 = vunpack.c.h.b16 %v94
    %v527 = vunpack.c.l.b16 %v95
    %v528 = vunpack.c.h.b16 %v95
    %v529 = vunpack.c.l.b16 %v96
    %v530 = vunpack.c.h.b16 %v96
    %v531 = vunpack.c.l.b16 %v97
    %v532 = vunpack.c.h.b16 %v97
    %v533 = vunpack.c.l.b16 %v98
    %v534 = vunpack.c.h.b16 %v98
    %v535 = vunpack.c.l.b16 %v99
    %v536 = vunpack.c.h.b16 %v99
    %v537 = vunpack.c.l.b16 %v100
    %v538 = vunpack.c.h.b16 %v100
    %v539 = vunpack.c.l.b16 %v101
    %v540 = vunpack.c.h.b16 %v101
    %v541 = vunpack.c.l.b16 %v102
    %v542 = vunpack.c.h.b16 %v102
    %v543 = vunpack.c.l.b16 %v103
    %v544 = vunpack.c.h.b16 %v103
    %v545 = vunpack.c.l.b16 %v104
    %v546 = vunpack.c.h.b16 %v104
    %v547 = vunpack.c.l.b16 %v105
    %v548 = vunpack.c.h.b16 %v105
    %v549 = vunpack.c.l.b16 %v106
    %v550 = vunpack.c.h.b16 %v106
    %v551 = vunpack.c.l.b16 %v107
    %v552 = vunpack.c.h.b16 %v107
    %v553 = vunpack.c.l.b16 %v108
    %v554 = vunpack.c.h.b16 %v108
    %v555 = vunpack.c.l.b16 %v109
    %v556 = vunpack.c.h.b16 %v109
    %v557 = vunpack.c.l.b16 %v110
    %v558 = vunpack.c.h.b16 %v110
    %v559 = vunpack.c.l.b16 %v111
    %v560 = vunpack.c.h.b16 %v111
    %v561 = vunpack.c.l.b16 %v112
    %v562 = vunpack.c.h.b16 %v112
    %v563 = vunpack.c.l.b16 %v113
    %v564 = vunpack.c.h.b16 %v113
    %v565 = vunpack.c.l.b16 %v114
    %v566 = vunpack.c.h.b16 %v114
    %v567 = vunpack.c.l.b16 %v115
    %v568 = vunpack.c.h.b16 %v115
    %v569 = vunpack.c.l.b16 %v116
    %v570 = vunpack.c.h.b16 %v116
    %v571 = vunpack.c.l.b16 %v117
    %v572 = vunpack.c.h.b16 %v117
    %v573 = vunpack.c.l.b16 %v118
    %v574 = vunpack.c.h.b16 %v118
    %v575 = vunpack.c.l.b16 %v119
    %v576 = vunpack.c.h.b16 %v119
    %v577 = vunpack.c.l.b16 %v120
    %v578 = vunpack.c.h.b16 %v120
    %v579 = vunpack.c.l.b16 %v121
    %v580 = vunpack.c.h.b16 %v121
    %v581 = vunpack.c.l.b16 %v122
    %v582 = vunpack.c.h.b16 %v122
    %v583 = vunpack.c.l.b16 %v123
    %v584 = vunpack.c.h.b16 %v123
    %v585 = vunpack.c.l.b16 %v124
    %v586 = vunpack.c.h.b16 %v124
    %v587 = vunpack.c.l.b16 %v125
    %v588 = vunpack.c.h.b16 %v125
    %v589 = vunpack.c.l.b16 %v126
    %v590 = vunpack.c.h.b16 %v126
    %v591 = vunpack.c.l.b16 %v127
    %v592 = vunpack.c.h.b16 %v127
    %v593 = vunpack.c.l.b16 %v128
    %v594 = vunpack.c.h.b16 %v128
    %v595 = vunpack.c.l.b16 %v129
    %v596 = vunpack.c.h.b16 %v129
    %v597 = vunpack.c.l.b16 %v130
    %v598 = vunpack.c.h.b16 %v130
    %v599 = vunpack.c.l.b16 %v131
    %v600 = vunpack.c.h.b16 %v131
    %v601 = vunpack.c.l.b16 %v132
    %v602 = vunpack.c.h.b16 %v132
    %v603 = vunpack.c.l.b16 %v133
    %v604 = vunpack.c.h.b16 %v133
    %v605 = vunpack.c.l.b16 %v134
    %v606 = vunpack.c.h.b16 %v134
    %v607 = vunpack.c.l.b16 %v135
    %v608 = vunpack.c.h.b16 %v135
    %v609 = vunpack.c.l.b16 %v136
    %v610 = vunpack.c.h.b16 %v136
    %v611 = vunpack.c.l.b16 %v137
    %v612 = vunpack.c.h.b16 %v137
    %v613 = vunpack.c.l.b16 %v138
    %v614 = vunpack.c.h.b16 %v138
    %v615 = vunpack.c.l.b16 %v139
    %v616 = vunpack.c.h.b16 %v139
    %v617 = vunpack.c.l.b16 %v140
    %v618 = vunpack.c.h.b16 %v140
    %v619 = vunpack.c.l.b16 %v141
    %v620 = vunpack.c.h.b16 %v141
    %v621 = vunpack.c.l.b16 %v142
    %v622 = vunpack.c.h.b16 %v142
    %v623 = vunpack.c.l.b16 %v143
    %v624 = vunpack.c.h.b16 %v143
    %v625 = vunpack.c.l.b16 %v144
    %v626 = vunpack.c.h.b16 %v144
    %v627 = vunpack.c.l.b16 %v145
    %v628 = vunpack.c.h.b16 %v145
    %v629 = vunpack.c.l.b16 %v146
    %v630 = vunpack.c.h.b16 %v146
    %v631 = vunpack.c.l.b16 %v147
    %v632 = vunpack.c.h.b16 %v147
    %v633 = vunpack.c.l.b16 %v148
    %v634 = vunpack.c.h.b16 %v148
    %v635 = vunpack.c.l.b16 %v149
    %v636 = vunpack.c.h.b16 %v149
    %v637 = vunpack.c.l.b16 %v150
    %v638 = vunpack.c.h.b16 %v150
    %v639 = vunpack.c.l.b16 %v151
    %v640 = vunpack.c.h.b16 %v151
    %v641 = vunpack.c.l.b16 %v152
    %v642 = vunpack.c.h.b16 %v152
    %v643 = vunpack.c.l.b16 %v153
    %v644 = vunpack.c.h.b16 %v153
    %v645 = vunpack.c.l.b16 %v154
    %v646 = vunpack.c.h.b16 %v154
    %v647 = vunpack.c.l.b16 %v155
    %v648 = vunpack.c.h.b16 %v155
    %v649 = vunpack.c.l.b16 %v156
    %v650 = vunpack.c.h.b16 %v156
    %v651 = vunpack.c.l.b16 %v157
    %v652 = vunpack.c.h.b16 %v157
    %v653 = vunpack.c.l.b16 %v158
    %v654 = vunpack.c.h.b16 %v158
    %v655 = vunpack.c.l.b16 %v159
    %v656 = vunpack.c.h.b16 %v159
    %v657 = vunpack.c.l.b16 %v160
    %v658 = vunpack.c.h.b16 %v160
    %v659 = vunpack.c.l.b16 %v161
    %v660 = vunpack.c.h.b16 %v161
    %v661 = vunpack.c.l.b16 %v162
    %v662 = vunpack.c.h.b16 %v162
    %v663 = vunpack.c.l.b16 %v163
    %v664 = vunpack.c.h.b16 %v163
    %v665 = vunpack.c.l.b16 %v164
    %v666 = vunpack.c.h.b16 %v164
    %v667 = vunpack.c.l.b16 %v165
    %v668 = vunpack.c.h.b16 %v165
    %v669 = vunpack.c.l.b16 %v166
    %v670 = vunpack.c.h.b16 %v166
    %v671 = vunpack.c.l.b16 %v167
    %v672 = vunpack.c.h.b16 %v167
    %v673 = vunpack.c.l.b16 %v168
    %v674 = vunpack.c.h.b16 %v168
    %v675 = vunpack.c.l.b16 %v169
    %v676 = vunpack.c.h.b16 %v169
    %v677 = vunpack.c.l.b16 %v170
    %v678 = vunpack.c.h.b16 %v170
    %v679 = vunpack.c.l.b16 %v171
    %v680 = vunpack.c.h.b16 %v171
    %v681 = vunpack.c.l.b16 %v172
    %v682 = vunpack.c.h.b16 %v172
    %v683 = vunpack.c.l.b16 %v173
    %v684 = vunpack.c.h.b16 %v173
    %v685 = vunpack.c.l.b16 %v174
    %v686 = vunpack.c.h.b16 %v174
    %v687 = vunpack.c.l.b16 %v175
    %v688 = vunpack.c.h.b16 %v175
    %v689 = vunpack.c.l.b16 %v176
    %v690 = vunpack.c.h.b16 %v176
    %v691 = vunpack.c.l.b16 %v177
    %v692 = vunpack.c.h.b16 %v177
    %v693 = vunpack.c.l.b16 %v178
    %v694 = vunpack.c.h.b16 %v178
    %v695 = vunpack.c.l.b16 %v179
    %v696 = vunpack.c.h.b16 %v179
    %v697 = vunpack.c.l.b16 %v180
    %v698 = vunpack.c.h.b16 %v180
    %v699 = vunpack.c.l.b16 %v181
    %v700 = vunpack.c.h.b16 %v181
    %v701 = vunpack.c.l.b16 %v182
    %v702 = vunpack.c.h.b16 %v182
    %v703 = vunpack.c.l.b16 %v183
    %v704 = vunpack.c.h.b16 %v183
    %v705 = vunpack.c.l.b16 %v184
    %v706 = vunpack.c.h.b16 %v184
    %v707 = vunpack.c.l.b16 %v185
    %v708 = vunpack.c.h.b16 %v185
    %v709 = vunpack.c.l.b16 %v186
    %v710 = vunpack.c.h.b16 %v186
    %v711 = vunpack.c.l.b16 %v187
    %v712 = vunpack.c.h.b16 %v187
    %v713 = vunpack.c.l.b16 %v188
    %v714 = vunpack.c.h.b16 %v188
    %v715 = vunpack.c.l.b16 %v189
    %v716 = vunpack.c.h.b16 %v189
    %v717 = vunpack.c.l.b16 %v190
    %v718 = vunpack.c.h.b16 %v190
    %v719 = vunpack.c.l.b16 %v191
    %v720 = vunpack.c.h.b16 %v191
    %v721 = vunpack.c.l.b16 %v192
    %v722 = vunpack.c.h.b16 %v192
    %v723 = vunpack.c.l.b16 %v193
    %v724 = vunpack.c.h.b16 %v193
    %v725 = vunpack.c.l.b16 %v194
    %v726 = vunpack.c.h.b16 %v194
    %v727 = vunpack.c.l.b16 %v195
    %v728 = vunpack.c.h.b16 %v195
    %v729 = vunpack.c.l.b16 %v196
    %v730 = vunpack.c.h.b16 %v196
    %v731 = vunpack.c.l.b16 %v197
    %v732 = vunpack.c.h.b16 %v197
    %v733 = vunpack.c.l.b16 %v198
    %v734 = vunpack.c.h.b16 %v198
    %v735 = vunpack.c.l.b16 %v199
    %v736 = vunpack.c.h.b16 %v199
    %v737 = vunpack.c.l.b16 %v200
    %v738 = vunpack.c.h.b16 %v200
    %v739 = vunpack.c.l.b16 %v201
    %v740 = vunpack.c.h.b16 %v201
    %v741 = vunpack.c.l.b16 %v202
    %v742 = vunpack.c.h.b16 %v202
    %v743 = vunpack.c.l.b16 %v203
    %v744 = vunpack.c.h.b16 %v203
    %v745 = vunpack.c.l.b16 %v204
    %v746 = vunpack.c.h.b16 %v204
    %v747 = vunpack.c.l.b16 %v205
    %v748 = vunpack.c.h.b16 %v205
    %v749 = vunpack.c.l.b16 %v206
    %v750 = vunpack.c.h.b16 %v206
    %v751 = vunpack.c.l.b16 %v207
    %v752 = vunpack.c.h.b16 %v207
    %v753 = vunpack.c.l.b16 %v208
    %v754 = vunpack.c.h.b16 %v208
    %v755 = vunpack.c.l.b16 %v209
    %v756 = vunpack.c.h.b16 %v209
    %v757 = vunpack.c.l.b16 %v210
    %v758 = vunpack.c.h.b16 %v210
    %v759 = vunpack.c.l.b16 %v211
    %v760 = vunpack.c.h.b16 %v211
    %v761 = vunpack.c.l.b16 %v212
    %v762 = vunpack.c.h.b16 %v212
    %v763 = vunpack.c.l.b16 %v213
    %v764 = vunpack.c.h.b16 %v213
    %v765 = vunpack.c.l.b16 %v214
    %v766 = vunpack.c.h.b16 %v214
    %v767 = vunpack.c.l.b16 %v215
    %v768 = vunpack.c.h.b16 %v215
    %v769 = vunpack.c.l.b16 %v216
    %v770 = vunpack.c.h.b16 %v216
    %v771 = vunpack.c.l.b16 %v217
    %v772 = vunpack.c.h.b16 %v217
    %v773 = vunpack.c.l.b16 %v218
    %v774 = vunpack.c.h.b16 %v218
    %v775 = vunpack.c.l.b16 %v219
    %v776 = vunpack.c.h.b16 %v219
    %v777 = vunpack.c.l.b16 %v220
    %v778 = vunpack.c.h.b16 %v220
    %v779 = vunpack.c.l.b16 %v221
    %v780 = vunpack.c.h.b16 %v221
    %v781 = vunpack.c.l.b16 %v222
    %v782 = vunpack.c.h.b16 %v222
    %v783 = vunpack.c.l.b16 %v223
    %v784 = vunpack.c.h.b16 %v223
    %v785 = vunpack.c.l.b16 %v224
    %v786 = vunpack.c.h.b16 %v224
    %v787 = vunpack.c.l.b16 %v225
    %v788 = vunpack.c.h.b16 %v225
    %v789 = vunpack.c.l.b16 %v226
    %v790 = vunpack.c.h.b16 %v226
    %v791 = vunpack.c.l.b16 %v227
    %v792 = vunpack.c.h.b16 %v227
    %v793 = vunpack.c.l.b16 %v228
    %v794 = vunpack.c.h.b16 %v228
    %v795 = vunpack.c.l.b16 %v229
    %v796 = vunpack.c.h.b16 %v229
    %v797 = vunpack.c.l.b16 %v230
    %v798 = vunpack.c.h.b16 %v230
    %v799 = vunpack.c.l.b16 %v231
    %v800 = vunpack.c.h.b16 %v231
    %v801 = vunpack.c.l.b16 %v232
    %v802 = vunpack.c.h.b16 %v232
    %v803 = vunpack.c.l.b16 %v233
    %v804 = vunpack.c.h.b16 %v233
    %v805 = vunpack.c.l.b16 %v234
    %v806 = vunpack.c.h.b16 %v234
    %v807 = vunpack.c.l.b16 %v235
    %v808 = vunpack.c.h.b16 %v235
    %v809 = vunpack.c.l.b16 %v236
    %v810 = vunpack.c.h.b16 %v236
    %v811 = vunpack.c.l.b16 %v237
    %v812 = vunpack.c.h.b16 %v237
    %v813 = vunpack.c.l.b16 %v238
    %v814 = vunpack.c.h.b16 %v238
    %v815 = vunpack.c.l.b16 %v239
    %v816 = vunpack.c.h.b16 %v239
    %v817 = vunpack.c.l.b16 %v240
    %v818 = vunpack.c.h.b16 %v240
    %v819 = vunpack.c.l.b16 %v241
    %v820 = vunpack.c.h.b16 %v241
    %v821 = vunpack.c.l.b16 %v242
    %v822 = vunpack.c.h.b16 %v242
    %v823 = vunpack.c.l.b16 %v243
    %v824 = vunpack.c.h.b16 %v243
    %v825 = vunpack.c.l.b16 %v244
    %v826 = vunpack.c.h.b16 %v244
    %v827 = vunpack.c.l.b16 %v245
    %v828 = vunpack.c.h.b16 %v245
    %v829 = vunpack.c.l.b16 %v246
    %v830 = vunpack.c.h.b16 %v246
    %v831 = vunpack.c.l.b16 %v247
    %v832 = vunpack.c.h.b16 %v247
    %v833 = vunpack.c.l.b16 %v248
    %v834 = vunpack.c.h.b16 %v248
    %v835 = vunpack.c.l.b16 %v249
    %v836 = vunpack.c.h.b16 %v249
    %v837 = vunpack.c.l.b16 %v250
    %v838 = vunpack.c.h.b16 %v250
    %v839 = vunpack.c.l.b16 %v251
    %v840 = vunpack.c.h.b16 %v251
    %v841 = vunpack.c.l.b16 %v252
    %v842 = vunpack.c.h.b16 %v252
    %v843 = vunpack.c.l.b16 %v253
    %v844 = vunpack.c.h.b16 %v253
    %v845 = vunpack.c.l.b16 %v254
    %v846 = vunpack.c.h.b16 %v254
    %v847 = vunpack.c.l.b16 %v255
    %v848 = vunpack.c.h.b16 %v255
    %v849 = vunpack.c.l.b16 %v256
    %v850 = vunpack.c.h.b16 %v256
    %v851 = vunpack.c.l.b16 %v257
    %v852 = vunpack.c.h.b16 %v257
    %v853 = vunpack.c.l.b16 %v258
    %v854 = vunpack.c.h.b16 %v258
    %v855 = vunpack.c.l.b16 %v259
    %v856 = vunpack.c.h.b16 %v259
    %v857 = vunpack.c.l.b16 %v260
    %v858 = vunpack.c.h.b16 %v260
    %v859 = vpack.c.b16 %v471, %v467
    %v860 = vpack.c.b16 %v472, %v468
    %v861 = vpack.c.b16 %v473, %v469
    %v862 = vpack.c.b16 %v474, %v470
    %v863 = vpack.c.b16 %v479, %v475
    %v864 = vpack.c.b16 %v480, %v476
    %v865 = vpack.c.b16 %v481, %v477
    %v866 = vpack.c.b16 %v482, %v478
    %v867 = vpack.c.b16 %v487, %v483
    %v868 = vpack.c.b16 %v488, %v484
    %v869 = vpack.c.b16 %v489, %v485
    %v870 = vpack.c.b16 %v490, %v486
    %v871 = vpack.c.b16 %v495, %v491
    %v872 = vpack.c.b16 %v496, %v492
    %v873 = vpack.c.b16 %v497, %v493
    %v874 = vpack.c.b16 %v498, %v494
    %v875 = vpack.c.b16 %v503, %v499
    %v876 = vpack.c.b16 %v504, %v500
    %v877 = vpack.c.b16 %v505, %v501
    %v878 = vpack.c.b16 %v506, %v502
    %v879 = vpack.c.b16 %v511, %v507
    %v880 = vpack.c.b16 %v512, %v508
    %v881 = vpack.c.b16 %v513, %v509
    %v882 = vpack.c.b16 %v514, %v510
    %v883 = vpack.c.b16 %v519, %v515
    %v884 = vpack.c.b16 %v520, %v516
    %v885 = vpack.c.b16 %v521, %v517
    %v886 = vpack.c.b16 %v522, %v518
    %v887 = vpack.c.b16 %v527, %v523
    %v888 = vpack.c.b16 %v528, %v524
    %v889 = vpack.c.b16 %v529, %v525
    %v890 = vpack.c.b16 %v530, %v526
    %v891 = vpack.c.b16 %v535, %v531
    %v892 = vpack.c.b16 %v536, %v532
    %v893 = vpack.c.b16 %v537, %v533
    %v894 = vpack.c.b16 %v538, %v534
    %v895 = vpack.c.b16 %v543, %v539
    %v896 = vpack.c.b16 %v544, %v540
    %v897 = vpack.c.b16 %v545, %v541
    %v898 = vpack.c.b16 %v546, %v542
    %v899 = vpack.c.b16 %v551, %v547
    %v900 = vpack.c.b16 %v552, %v548
    %v901 = vpack.c.b16 %v553, %v549
    %v902 = vpack.c.b16 %v554, %v550
    %v903 = vpack.c.b16 %v559, %v555
    %v904 = vpack.c.b16 %v560, %v556
    %v905 = vpack.c.b16 %v561, %v557
    %v906 = vpack.c.b16 %v562, %v558
    %v907 = vpack.c.b16 %v567, %v563
    %v908 = vpack.c.b16 %v568, %v564
    %v909 = vpack.c.b16 %v569, %v565
    %v910 = vpack.c.b16 %v570, %v566
    %v911 = vpack.c.b16 %v575, %v571
    %v912 = vpack.c.b16 %v576, %v572
    %v913 = vpack.c.b16 %v577, %v573
    %v914 = vpack.c.b16 %v578, %v574
    %v915 = vpack.c.b16 %v583, %v579
    %v916 = vpack.c.b16 %v584, %v580
    %v917 = vpack.c.b16 %v585, %v581
    %v918 = vpack.c.b16 %v586, %v582
    %v919 = vpack.c.b16 %v591, %v587
    %v920 = vpack.c.b16 %v592, %v588
    %v921 = vpack.c.b16 %v593, %v589
    %v922 = vpack.c.b16 %v594, %v590
    %v923 = vpack.c.b16 %v599, %v595
    %v924 = vpack.c.b16 %v600, %v596
    %v925 = vpack.c.b16 %v601, %v597
    %v926 = vpack.c.b16 %v602, %v598
    %v927 = vpack.c.b16 %v607, %v603
    %v928 = vpack.c.b16 %v608, %v604
    %v929 = vpack.c.b16 %v609, %v605
    %v930 = vpack.c.b16 %v610, %v606
    %v931 = vpack.c.b16 %v615, %v611
    %v932 = vpack.c.b16 %v616, %v612
    %v933 = vpack.c.b16 %v617, %v613
    %v934 = vpack.c.b16 %v618, %v614
    %v935 = vpack.c.b16 %v623, %v619
    %v936 = vpack.c.b16 %v624, %v620
    %v937 = vpack.c.b16 %v625, %v621
    %v938 = vpack.c.b16 %v626, %v622
    %v939 = vpack.c.b16 %v631, %v627
    %v940 = vpack.c.b16 %v632, %v628
    %v941 = vpack.c.b16 %v633, %v629
    %v942 = vpack.c.b16 %v634, %v630
    %v943 = vpack.c.b16 %v639, %v635
    %v944 = vpack.c.b16 %v640, %v636
    %v945 = vpack.c.b16 %v641, %v637
    %v946 = vpack.c.b16 %v642, %v638
    %v947 = vpack.c.b16 %v647, %v643
    %v948 = vpack.c.b16 %v648, %v644
    %v949 = vpack.c.b16 %v649, %v645
    %v950 = vpack.c.b16 %v650, %v646
    %v951 = vpack.c.b16 %v655, %v651
    %v952 = vpack.c.b16 %v656, %v652
    %v953 = vpack.c.b16 %v657, %v653
    %v954 = vpack.c.b16 %v658, %v654
    %v955 = vpack.c.b16 %v663, %v659
    %v956 = vpack.c.b16 %v664, %v660
    %v957 = vpack.c.b16 %v665, %v661
    %v958 = vpack.c.b16 %v666, %v662
    %v959 = vpack.c.b16 %v671, %v667
    %v960 = vpack.c.b16 %v672, %v668
    %v961 = vpack.c.b16 %v673, %v669
    %v962 = vpack.c.b16 %v674, %v670
    %v963 = vpack.c.b16 %v679, %v675
    %v964 = vpack.c.b16 %v680, %v676
    %v965 = vpack.c.b16 %v681, %v677
    %v966 = vpack.c.b16 %v682, %v678
    %v967 = vpack.c.b16 %v687, %v683
    %v968 = vpack.c.b16 %v688, %v684
    %v969 = vpack.c.b16 %v689, %v685
    %v970 = vpack.c.b16 %v690, %v686
    %v971 = vpack.c.b16 %v695, %v691
    %v972 = vpack.c.b16 %v696, %v692
    %v973 = vpack.c.b16 %v697, %v693
    %v974 = vpack.c.b16 %v698, %v694
    %v975 = vpack.c.b16 %v703, %v699
    %v976 = vpack.c.b16 %v704, %v700
    %v977 = vpack.c.b16 %v705, %v701
    %v978 = vpack.c.b16 %v706, %v702
    %v979 = vpack.c.b16 %v711, %v707
    %v980 = vpack.c.b16 %v712, %v708
    %v981 = vpack.c.b16 %v713, %v709
    %v982 = vpack.c.b16 %v714, %v710
    %v983 = vpack.c.b16 %v719, %v715
    %v984 = vpack.c.b16 %v720, %v716
    %v985 = vpack.c.b16 %v721, %v717
    %v986 = vpack.c.b16 %v722, %v718
    %v987 = vpack.c.b16 %v727, %v723
    %v988 = vpack.c.b16 %v728, %v724
    %v989 = vpack.c.b16 %v729, %v725
    %v990 = vpack.c.b16 %v730, %v726
    %v991 = vpack.c.b16 %v735, %v731
    %v992 = vpack.c.b16 %v736, %v732
    %v993 = vpack.c.b16 %v737, %v733
    %v994 = vpack.c.b16 %v738, %v734
    %v995 = vpack.c.b16 %v743, %v739
    %v996 = vpack.c.b16 %v744, %v740
    %v997 = vpack.c.b16 %v745, %v741
    %v998 = vpack.c.b16 %v746, %v742
    %v999 = vpack.c.b16 %v751, %v747
    %v1000 = vpack.c.b16 %v752, %v748
    %v1001 = vpack.c.b16 %v753, %v749
    %v1002 = vpack.c.b16 %v754, %v750
    %v1003 = vpack.c.b16 %v759, %v755
    %v1004 = vpack.c.b16 %v760, %v756
    %v1005 = vpack.c.b16 %v761, %v757
    %v1006 = vpack.c.b16 %v762, %v758
    %v1007 = vpack.c.b16 %v767, %v763
    %v1008 = vpack.c.b16 %v768, %v764
    %v1009 = vpack.c.b16 %v769, %v765
    %v1010 = vpack.c.b16 %v770, %v766
    %v1011 = vpack.c.b16 %v775, %v771
    %v1012 = vpack.c.b16 %v776, %v772
    %v1013 = vpack.c.b16 %v777, %v773
    %v1014 = vpack.c.b16 %v778, %v774
    %v1015 = vpack.c.b16 %v783, %v779
    %v1016 = vpack.c.b16 %v784, %v780
    %v1017 = vpack.c.b16 %v785, %v781
    %v1018 = vpack.c.b16 %v786, %v782
    %v1019 = vpack.c.b16 %v791, %v787
    %v1020 = vpack.c.b16 %v792, %v788
    %v1021 = vpack.c.b16 %v793, %v789
    %v1022 = vpack.c.b16 %v794, %v790
    %v1023 = vpack.c.b16 %v799, %v795
    %v1024 = vpack.c.b16 %v800, %v796
    %v1025 = vpack.c.b16 %v801, %v797
    %v1026 = vpack.c.b16 %v802, %v798
    %v1027 = vpack.c.b16 %v807, %v803
    %v1028 = vpack.c.b16 %v808, %v804
    %v1029 = vpack.c.b16 %v809, %v805
    %v1030 = vpack.c.b16 %v810, %v806
    %v1031 = vpack.c.b16 %v815, %v811
    %v1032 = vpack.c.b16 %v816, %v812
    %v1033 = vpack.c.b16 %v817, %v813
    %v1034 = vpack.c.b16 %v818, %v814
    %v1035 = vpack.c.b16 %v823, %v819
    %v1036 = vpack.c.b16 %v824, %v820
    %v1037 = vpack.c.b16 %v825, %v821
    %v1038 = vpack.c.b16 %v826, %v822
    %v1039 = vpack.c.b16 %v831, %v827
    %v1040 = vpack.c.b16 %v832, %v828
    %v1041 = vpack.c.b16 %v833, %v829
    %v1042 = vpack.c.b16 %v834, %v830
    %v1043 = vpack.c.b16 %v839, %v835
    %v1044 = vpack.c.b16 %v840, %v836
    %v1045 = vpack.c.b16 %v841, %v837
    %v1046 = vpack.c.b16 %v842, %v838
    %v1047 = vpack.c.b16 %v847, %v843
    %v1048 = vpack.c.b16 %v848, %v844
    %v1049 = vpack.c.b16 %v849, %v845
    %v1050 = vpack.c.b16 %v850, %v846
    %v1051 = vpack.c.b16 %v855, %v851
    %v1052 = vpack.c.b16 %v856, %v852
    %v1053 = vpack.c.b16 %v857, %v853
    %v1054 = vpack.c.b16 %v858, %v854
    %vm1251 = vcmask 130048
    %v1253 = vsel %vm1251, %v64, 0
    %1255 = vmatpush.bf16.msra.mxu0 %v887
    %1256 = vmatpush.bf16.msra.mxu0 %v883
    %1257 = vmatpush.bf16.msra.mxu0 %v879
    %1258 = vmatpush.bf16.msra.mxu0 %v875
    %1259 = vmatpush.bf16.msra.mxu0 %v871
    %1260 = vmatpush.bf16.msra.mxu0 %v867
    %1261 = vmatpush.bf16.msra.mxu0 %v863
    %1262 = vmatpush.bf16.msra.mxu0 %v859
    %1263 = vmatmul.bf16.gmra.mxu0 %v58
    %v1264 = vpop.f32.mrf.mxu0
    %v1265 = vadd.f32 %v263, %v1264
    %v1266 = vpop.f32.mrf.mxu0
    %1267 = vdwg.mxu0
    %1268 = vmatpush.bf16.msra.mxu0 %v919
    %1269 = vmatpush.bf16.msra.mxu0 %v915
    %1270 = vmatpush.bf16.msra.mxu0 %v911
    %1271 = vmatpush.bf16.msra.mxu0 %v907
    %1272 = vmatpush.bf16.msra.mxu0 %v903
    %1273 = vmatpush.bf16.msra.mxu0 %v899
    %1274 = vmatpush.bf16.msra.mxu0 %v895
    %1275 = vmatpush.bf16.msra.mxu0 %v891
    %1276 = vmatmul.bf16.gmra.mxu0 %v59
    %v1277 = vpop.f32.mrf.mxu0
    %v1278 = vadd.f32 %v1265, %v1277
    %v1279 = vpop.f32.mrf.mxu0
    %1280 = vdwg.mxu0
    %1281 = vmatpush.bf16.msra.mxu0 %v951
    %1282 = vmatpush.bf16.msra.mxu0 %v947
    %1283 = vmatpush.bf16.msra.mxu0 %v943
    %1284 = vmatpush.bf16.msra.mxu0 %v939
    %1285 = vmatpush.bf16.msra.mxu0 %v935
    %1286 = vmatpush.bf16.msra.mxu0 %v931
    %1287 = vmatpush.bf16.msra.mxu0 %v927
    %1288 = vmatpush.bf16.msra.mxu0 %v923
    %1289 = vmatmul.bf16.gmra.mxu0 %v60
    %v1290 = vpop.f32.mrf.mxu0
    %v1291 = vadd.f32 %v1278, %v1290
    %v1292 = vpop.f32.mrf.mxu0
    %1293 = vdwg.mxu0
    %1294 = vmatpush.bf16.msra.mxu0 %v983
    %1295 = vmatpush.bf16.msra.mxu0 %v979
    %1296 = vmatpush.bf16.msra.mxu0 %v975
    %1297 = vmatpush.bf16.msra.mxu0 %v971
    %1298 = vmatpush.bf16.msra.mxu0 %v967
    %1299 = vmatpush.bf16.msra.mxu0 %v963
    %1300 = vmatpush.bf16.msra.mxu0 %v959
    %1301 = vmatpush.bf16.msra.mxu0 %v955
    %1302 = vmatmul.bf16.gmra.mxu0 %v61
    %v1303 = vpop.f32.mrf.mxu0
    %v1304 = vadd.f32 %v1291, %v1303
    %v1305 = vpop.f32.mrf.mxu0
    %1306 = vdwg.mxu0
    %1307 = vmatpush.bf16.msra.mxu0 %v1015
    %1308 = vmatpush.bf16.msra.mxu0 %v1011
    %1309 = vmatpush.bf16.msra.mxu0 %v1007
    %1310 = vmatpush.bf16.msra.mxu0 %v1003
    %1311 = vmatpush.bf16.msra.mxu0 %v999
    %1312 = vmatpush.bf16.msra.mxu0 %v995
    %1313 = vmatpush.bf16.msra.mxu0 %v991
    %1314 = vmatpush.bf16.msra.mxu0 %v987
    %1315 = vmatmul.bf16.gmra.mxu0 %v62
    %v1316 = vpop.f32.mrf.mxu0
    %v1317 = vadd.f32 %v1304, %v1316
    %v1318 = vpop.f32.mrf.mxu0
    %1319 = vdwg.mxu0
    %1320 = vmatpush.bf16.msra.mxu0 %v1047
    %1321 = vmatpush.bf16.msra.mxu0 %v1043
    %1322 = vmatpush.bf16.msra.mxu0 %v1039
    %1323 = vmatpush.bf16.msra.mxu0 %v1035
    %1324 = vmatpush.bf16.msra.mxu0 %v1031
    %1325 = vmatpush.bf16.msra.mxu0 %v1027
    %1326 = vmatpush.bf16.msra.mxu0 %v1023
    %1327 = vmatpush.bf16.msra.mxu0 %v1019
    %1328 = vmatmul.bf16.gmra.mxu0 %v63
    %v1329 = vpop.f32.mrf.mxu0
    %v1330 = vadd.f32 %v1317, %v1329
    %v1331 = vpop.f32.mrf.mxu0
    %1332 = vdwg.mxu0
    %1333 = vmatpush.bf16.msra.mxu0 0
    %1334 = vmatpush.bf16.msra.mxu0 0
    %1335 = vmatpush.bf16.msra.mxu0 0
    %1336 = vmatpush.bf16.msra.mxu0 0
    %1337 = vmatpush.bf16.msra.mxu0 0
    %1338 = vmatpush.bf16.msra.mxu0 0
    %1339 = vmatpush.bf16.msra.mxu0 0
    %1340 = vmatpush.bf16.msra.mxu0 %v1051
    %1341 = vmatmul.bf16.gmra.mxu0 %v1253
    %v1342 = vpop.f32.mrf.mxu0
    %v1343 = vadd.f32 %v1330, %v1342
    %v1344 = vpop.f32.mrf.mxu0
    %1345 = vdwg.mxu0
    %1346 = vmatpush.bf16.msra.mxu0 %v888
    %1347 = vmatpush.bf16.msra.mxu0 %v884
    %1348 = vmatpush.bf16.msra.mxu0 %v880
    %1349 = vmatpush.bf16.msra.mxu0 %v876
    %1350 = vmatpush.bf16.msra.mxu0 %v872
    %1351 = vmatpush.bf16.msra.mxu0 %v868
    %1352 = vmatpush.bf16.msra.mxu0 %v864
    %1353 = vmatpush.bf16.msra.mxu0 %v860
    %1354 = vmatmul.bf16.gmra.mxu0 %v58
    %v1355 = vpop.f32.mrf.mxu0
    %v1356 = vadd.f32 %v264, %v1355
    %v1357 = vpop.f32.mrf.mxu0
    %1358 = vdwg.mxu0
    %1359 = vmatpush.bf16.msra.mxu0 %v920
    %1360 = vmatpush.bf16.msra.mxu0 %v916
    %1361 = vmatpush.bf16.msra.mxu0 %v912
    %1362 = vmatpush.bf16.msra.mxu0 %v908
    %1363 = vmatpush.bf16.msra.mxu0 %v904
    %1364 = vmatpush.bf16.msra.mxu0 %v900
    %1365 = vmatpush.bf16.msra.mxu0 %v896
    %1366 = vmatpush.bf16.msra.mxu0 %v892
    %1367 = vmatmul.bf16.gmra.mxu0 %v59
    %v1368 = vpop.f32.mrf.mxu0
    %v1369 = vadd.f32 %v1356, %v1368
    %v1370 = vpop.f32.mrf.mxu0
    %1371 = vdwg.mxu0
    %1372 = vmatpush.bf16.msra.mxu0 %v952
    %1373 = vmatpush.bf16.msra.mxu0 %v948
    %1374 = vmatpush.bf16.msra.mxu0 %v944
    %1375 = vmatpush.bf16.msra.mxu0 %v940
    %1376 = vmatpush.bf16.msra.mxu0 %v936
    %1377 = vmatpush.bf16.msra.mxu0 %v932
    %1378 = vmatpush.bf16.msra.mxu0 %v928
    %1379 = vmatpush.bf16.msra.mxu0 %v924
    %1380 = vmatmul.bf16.gmra.mxu0 %v60
    %v1381 = vpop.f32.mrf.mxu0
    %v1382 = vadd.f32 %v1369, %v1381
    %v1383 = vpop.f32.mrf.mxu0
    %1384 = vdwg.mxu0
    %1385 = vmatpush.bf16.msra.mxu0 %v984
    %1386 = vmatpush.bf16.msra.mxu0 %v980
    %1387 = vmatpush.bf16.msra.mxu0 %v976
    %1388 = vmatpush.bf16.msra.mxu0 %v972
    %1389 = vmatpush.bf16.msra.mxu0 %v968
    %1390 = vmatpush.bf16.msra.mxu0 %v964
    %1391 = vmatpush.bf16.msra.mxu0 %v960
    %1392 = vmatpush.bf16.msra.mxu0 %v956
    %1393 = vmatmul.bf16.gmra.mxu0 %v61
    %v1394 = vpop.f32.mrf.mxu0
    %v1395 = vadd.f32 %v1382, %v1394
    %v1396 = vpop.f32.mrf.mxu0
    %1397 = vdwg.mxu0
    %1398 = vmatpush.bf16.msra.mxu0 %v1016
    %1399 = vmatpush.bf16.msra.mxu0 %v1012
    %1400 = vmatpush.bf16.msra.mxu0 %v1008
    %1401 = vmatpush.bf16.msra.mxu0 %v1004
    %1402 = vmatpush.bf16.msra.mxu0 %v1000
    %1403 = vmatpush.bf16.msra.mxu0 %v996
    %1404 = vmatpush.bf16.msra.mxu0 %v992
    %1405 = vmatpush.bf16.msra.mxu0 %v988
    %1406 = vmatmul.bf16.gmra.mxu0 %v62
    %v1407 = vpop.f32.mrf.mxu0
    %v1408 = vadd.f32 %v1395, %v1407
    %v1409 = vpop.f32.mrf.mxu0
    %1410 = vdwg.mxu0
    %1411 = vmatpush.bf16.msra.mxu0 %v1048
    %1412 = vmatpush.bf16.msra.mxu0 %v1044
    %1413 = vmatpush.bf16.msra.mxu0 %v1040
    %1414 = vmatpush.bf16.msra.mxu0 %v1036
    %1415 = vmatpush.bf16.msra.mxu0 %v1032
    %1416 = vmatpush.bf16.msra.mxu0 %v1028
    %1417 = vmatpush.bf16.msra.mxu0 %v1024
    %1418 = vmatpush.bf16.msra.mxu0 %v1020
    %1419 = vmatmul.bf16.gmra.mxu0 %v63
    %v1420 = vpop.f32.mrf.mxu0
    %v1421 = vadd.f32 %v1408, %v1420
    %v1422 = vpop.f32.mrf.mxu0
    %1423 = vdwg.mxu0
    %1424 = vmatpush.bf16.msra.mxu0 0
    %1425 = vmatpush.bf16.msra.mxu0 0
    %1426 = vmatpush.bf16.msra.mxu0 0
    %1427 = vmatpush.bf16.msra.mxu0 0
    %1428 = vmatpush.bf16.msra.mxu0 0
    %1429 = vmatpush.bf16.msra.mxu0 0
    %1430 = vmatpush.bf16.msra.mxu0 0
    %1431 = vmatpush.bf16.msra.mxu0 %v1052
    %1432 = vmatmul.bf16.gmra.mxu0 %v1253
    %v1433 = vpop.f32.mrf.mxu0
    %v1434 = vadd.f32 %v1421, %v1433
    %v1435 = vpop.f32.mrf.mxu0
    %1436 = vdwg.mxu0
    %1437 = vmatpush.bf16.msra.mxu0 %v889
    %1438 = vmatpush.bf16.msra.mxu0 %v885
    %1439 = vmatpush.bf16.msra.mxu0 %v881
    %1440 = vmatpush.bf16.msra.mxu0 %v877
    %1441 = vmatpush.bf16.msra.mxu0 %v873
    %1442 = vmatpush.bf16.msra.mxu0 %v869
    %1443 = vmatpush.bf16.msra.mxu0 %v865
    %1444 = vmatpush.bf16.msra.mxu0 %v861
    %1445 = vmatmul.bf16.gmra.mxu0 %v58
    %v1446 = vpop.f32.mrf.mxu0
    %v1447 = vadd.f32 %v265, %v1446
    %v1448 = vpop.f32.mrf.mxu0
    %1449 = vdwg.mxu0
    %1450 = vmatpush.bf16.msra.mxu0 %v921
    %1451 = vmatpush.bf16.msra.mxu0 %v917
    %1452 = vmatpush.bf16.msra.mxu0 %v913
    %1453 = vmatpush.bf16.msra.mxu0 %v909
    %1454 = vmatpush.bf16.msra.mxu0 %v905
    %1455 = vmatpush.bf16.msra.mxu0 %v901
    %1456 = vmatpush.bf16.msra.mxu0 %v897
    %1457 = vmatpush.bf16.msra.mxu0 %v893
    %1458 = vmatmul.bf16.gmra.mxu0 %v59
    %v1459 = vpop.f32.mrf.mxu0
    %v1460 = vadd.f32 %v1447, %v1459
    %v1461 = vpop.f32.mrf.mxu0
    %1462 = vdwg.mxu0
    %1463 = vmatpush.bf16.msra.mxu0 %v953
    %1464 = vmatpush.bf16.msra.mxu0 %v949
    %1465 = vmatpush.bf16.msra.mxu0 %v945
    %1466 = vmatpush.bf16.msra.mxu0 %v941
    %1467 = vmatpush.bf16.msra.mxu0 %v937
    %1468 = vmatpush.bf16.msra.mxu0 %v933
    %1469 = vmatpush.bf16.msra.mxu0 %v929
    %1470 = vmatpush.bf16.msra.mxu0 %v925
    %1471 = vmatmul.bf16.gmra.mxu0 %v60
    %v1472 = vpop.f32.mrf.mxu0
    %v1473 = vadd.f32 %v1460, %v1472
    %v1474 = vpop.f32.mrf.mxu0
    %1475 = vdwg.mxu0
    %1476 = vmatpush.bf16.msra.mxu0 %v985
    %1477 = vmatpush.bf16.msra.mxu0 %v981
    %1478 = vmatpush.bf16.msra.mxu0 %v977
    %1479 = vmatpush.bf16.msra.mxu0 %v973
    %1480 = vmatpush.bf16.msra.mxu0 %v969
    %1481 = vmatpush.bf16.msra.mxu0 %v965
    %1482 = vmatpush.bf16.msra.mxu0 %v961
    %1483 = vmatpush.bf16.msra.mxu0 %v957
    %1484 = vmatmul.bf16.gmra.mxu0 %v61
    %v1485 = vpop.f32.mrf.mxu0
    %v1486 = vadd.f32 %v1473, %v1485
    %v1487 = vpop.f32.mrf.mxu0
    %1488 = vdwg.mxu0
    %1489 = vmatpush.bf16.msra.mxu0 %v1017
    %1490 = vmatpush.bf16.msra.mxu0 %v1013
    %1491 = vmatpush.bf16.msra.mxu0 %v1009
    %1492 = vmatpush.bf16.msra.mxu0 %v1005
    %1493 = vmatpush.bf16.msra.mxu0 %v1001
    %1494 = vmatpush.bf16.msra.mxu0 %v997
    %1495 = vmatpush.bf16.msra.mxu0 %v993
    %1496 = vmatpush.bf16.msra.mxu0 %v989
    %1497 = vmatmul.bf16.gmra.mxu0 %v62
    %v1498 = vpop.f32.mrf.mxu0
    %v1499 = vadd.f32 %v1486, %v1498
    %v1500 = vpop.f32.mrf.mxu0
    %1501 = vdwg.mxu0
    %1502 = vmatpush.bf16.msra.mxu0 %v1049
    %1503 = vmatpush.bf16.msra.mxu0 %v1045
    %1504 = vmatpush.bf16.msra.mxu0 %v1041
    %1505 = vmatpush.bf16.msra.mxu0 %v1037
    %1506 = vmatpush.bf16.msra.mxu0 %v1033
    %1507 = vmatpush.bf16.msra.mxu0 %v1029
    %1508 = vmatpush.bf16.msra.mxu0 %v1025
    %1509 = vmatpush.bf16.msra.mxu0 %v1021
    %1510 = vmatmul.bf16.gmra.mxu0 %v63
    %v1511 = vpop.f32.mrf.mxu0
    %v1512 = vadd.f32 %v1499, %v1511
    %v1513 = vpop.f32.mrf.mxu0
    %1514 = vdwg.mxu0
    %1515 = vmatpush.bf16.msra.mxu0 0
    %1516 = vmatpush.bf16.msra.mxu0 0
    %1517 = vmatpush.bf16.msra.mxu0 0
    %1518 = vmatpush.bf16.msra.mxu0 0
    %1519 = vmatpush.bf16.msra.mxu0 0
    %1520 = vmatpush.bf16.msra.mxu0 0
    %1521 = vmatpush.bf16.msra.mxu0 0
    %1522 = vmatpush.bf16.msra.mxu0 %v1053
    %1523 = vmatmul.bf16.gmra.mxu0 %v1253
    %v1524 = vpop.f32.mrf.mxu0
    %v1525 = vadd.f32 %v1512, %v1524
    %v1526 = vpop.f32.mrf.mxu0
    %1527 = vdwg.mxu0
    %1528 = vmatpush.bf16.msra.mxu0 %v890
    %1529 = vmatpush.bf16.msra.mxu0 %v886
    %1530 = vmatpush.bf16.msra.mxu0 %v882
    %1531 = vmatpush.bf16.msra.mxu0 %v878
    %1532 = vmatpush.bf16.msra.mxu0 %v874
    %1533 = vmatpush.bf16.msra.mxu0 %v870
    %1534 = vmatpush.bf16.msra.mxu0 %v866
    %1535 = vmatpush.bf16.msra.mxu0 %v862
    %1536 = vmatmul.bf16.gmra.mxu0 %v58
    %v1537 = vpop.f32.mrf.mxu0
    %v1538 = vadd.f32 %v266, %v1537
    %v1539 = vpop.f32.mrf.mxu0
    %1540 = vdwg.mxu0
    %1541 = vmatpush.bf16.msra.mxu0 %v922
    %1542 = vmatpush.bf16.msra.mxu0 %v918
    %1543 = vmatpush.bf16.msra.mxu0 %v914
    %1544 = vmatpush.bf16.msra.mxu0 %v910
    %1545 = vmatpush.bf16.msra.mxu0 %v906
    %1546 = vmatpush.bf16.msra.mxu0 %v902
    %1547 = vmatpush.bf16.msra.mxu0 %v898
    %1548 = vmatpush.bf16.msra.mxu0 %v894
    %1549 = vmatmul.bf16.gmra.mxu0 %v59
    %v1550 = vpop.f32.mrf.mxu0
    %v1551 = vadd.f32 %v1538, %v1550
    %v1552 = vpop.f32.mrf.mxu0
    %1553 = vdwg.mxu0
    %1554 = vmatpush.bf16.msra.mxu0 %v954
    %1555 = vmatpush.bf16.msra.mxu0 %v950
    %1556 = vmatpush.bf16.msra.mxu0 %v946
    %1557 = vmatpush.bf16.msra.mxu0 %v942
    %1558 = vmatpush.bf16.msra.mxu0 %v938
    %1559 = vmatpush.bf16.msra.mxu0 %v934
    %1560 = vmatpush.bf16.msra.mxu0 %v930
    %1561 = vmatpush.bf16.msra.mxu0 %v926
    %1562 = vmatmul.bf16.gmra.mxu0 %v60
    %v1563 = vpop.f32.mrf.mxu0
    %v1564 = vadd.f32 %v1551, %v1563
    %v1565 = vpop.f32.mrf.mxu0
    %1566 = vdwg.mxu0
    %1567 = vmatpush.bf16.msra.mxu0 %v986
    %1568 = vmatpush.bf16.msra.mxu0 %v982
    %1569 = vmatpush.bf16.msra.mxu0 %v978
    %1570 = vmatpush.bf16.msra.mxu0 %v974
    %1571 = vmatpush.bf16.msra.mxu0 %v970
    %1572 = vmatpush.bf16.msra.mxu0 %v966
    %1573 = vmatpush.bf16.msra.mxu0 %v962
    %1574 = vmatpush.bf16.msra.mxu0 %v958
    %1575 = vmatmul.bf16.gmra.mxu0 %v61
    %v1576 = vpop.f32.mrf.mxu0
    %v1577 = vadd.f32 %v1564, %v1576
    %v1578 = vpop.f32.mrf.mxu0
    %1579 = vdwg.mxu0
    %1580 = vmatpush.bf16.msra.mxu0 %v1018
    %1581 = vmatpush.bf16.msra.mxu0 %v1014
    %1582 = vmatpush.bf16.msra.mxu0 %v1010
    %1583 = vmatpush.bf16.msra.mxu0 %v1006
    %1584 = vmatpush.bf16.msra.mxu0 %v1002
    %1585 = vmatpush.bf16.msra.mxu0 %v998
    %1586 = vmatpush.bf16.msra.mxu0 %v994
    %1587 = vmatpush.bf16.msra.mxu0 %v990
    %1588 = vmatmul.bf16.gmra.mxu0 %v62
    %v1589 = vpop.f32.mrf.mxu0
    %v1590 = vadd.f32 %v1577, %v1589
    %v1591 = vpop.f32.mrf.mxu0
    %1592 = vdwg.mxu0
    %1593 = vmatpush.bf16.msra.mxu0 %v1050
    %1594 = vmatpush.bf16.msra.mxu0 %v1046
    %1595 = vmatpush.bf16.msra.mxu0 %v1042
    %1596 = vmatpush.bf16.msra.mxu0 %v1038
    %1597 = vmatpush.bf16.msra.mxu0 %v1034
    %1598 = vmatpush.bf16.msra.mxu0 %v1030
    %1599 = vmatpush.bf16.msra.mxu0 %v1026
    %1600 = vmatpush.bf16.msra.mxu0 %v1022
    %1601 = vmatmul.bf16.gmra.mxu0 %v63
    %v1602 = vpop.f32.mrf.mxu0
    %v1603 = vadd.f32 %v1590, %v1602
    %v1604 = vpop.f32.mrf.mxu0
    %1605 = vdwg.mxu0
    %1606 = vmatpush.bf16.msra.mxu0 0
    %1607 = vmatpush.bf16.msra.mxu0 0
    %1608 = vmatpush.bf16.msra.mxu0 0
    %1609 = vmatpush.bf16.msra.mxu0 0
    %1610 = vmatpush.bf16.msra.mxu0 0
    %1611 = vmatpush.bf16.msra.mxu0 0
    %1612 = vmatpush.bf16.msra.mxu0 0
    %1613 = vmatpush.bf16.msra.mxu0 %v1054
    %1614 = vmatmul.bf16.gmra.mxu0 %v1253
    %v1615 = vpop.f32.mrf.mxu0
    %v1616 = vadd.f32 %v1603, %v1615
    %v1617 = vpop.f32.mrf.mxu0
    %1618 = vdwg.mxu0
    %v1619 = vmul.f32 %v1343, 0.2
    %v1620 = vmul.f32 %v1434, 0.2
    %v1621 = vmul.f32 %v1525, 0.2
    %v1622 = vmul.f32 %v1616, 0.2
    %v1623 = vmax.f32 %v1343, %v1619
    %v1624 = vmax.f32 %v1434, %v1620
    %v1625 = vmax.f32 %v1525, %v1621
    %v1626 = vmax.f32 %v1616, %v1622
    %v1627 = vpack.c.bf16 %v1623, %v1623
    %v1628 = vpack.c.bf16 %v1624, %v1624
    %v1629 = vpack.c.bf16 %v1625, %v1625
    %v1630 = vpack.c.bf16 %v1626, %v1626
    %v1631 = vld [vmem:[%s4] sm:$0xff]
    %v1632 = vld [vmem:[%s4 + $0x8] sm:$0xff]
    %v1633 = vld [vmem:[%s4 + $0x10] sm:$0xff]
    %v1634 = vld [vmem:[%s4 + $0x18] sm:$0xff]
    %v1635 = vld [vmem:[%s4 + $0x20] sm:$0xff]
    %v1636 = vld [vmem:[%s4 + $0x28] sm:$0xff]
    %v1637 = vld [vmem:[%s4 + $0x30] sm:$0xff]
    %v1638 = vld [vmem:[%s4 + $0x38] sm:$0xff]
    %v1639 = vld [vmem:[%s4 + $0x40] sm:$0xff]
    %v1640 = vld [vmem:[%s4 + $0x48] sm:$0xff]
    %v1641 = vld [vmem:[%s4 + $0x50] sm:$0xff]
    %v1642 = vld [vmem:[%s4 + $0x58] sm:$0xff]
    %v1643 = vld [vmem:[%s4 + $0x60] sm:$0xff]
    %v1644 = vld [vmem:[%s4 + $0x68] sm:$0xff]
    %v1645 = vld [vmem:[%s4 + $0x70] sm:$0xff]
    %v1646 = vld [vmem:[%s4 + $0x78] sm:$0xff]
    %v1647 = vld [vmem:[%s4 + $0x80] sm:$0xff]
    %v1648 = vld [vmem:[%s4 + $0x88] sm:$0xff]
    %v1649 = vld [vmem:[%s4 + $0x90] sm:$0xff]
    %v1650 = vld [vmem:[%s4 + $0x98] sm:$0xff]
    %v1651 = vld [vmem:[%s4 + $0xa0] sm:$0xff]
    %v1652 = vld [vmem:[%s4 + $0xa8] sm:$0xff]
    %v1653 = vld [vmem:[%s4 + $0xb0] sm:$0xff]
    %v1654 = vld [vmem:[%s4 + $0xb8] sm:$0xff]
    %v1655 = vld [vmem:[%s4 + $0xc0] sm:$0xff]
    %v1656 = vld [vmem:[%s4 + $0xc8] sm:$0xff]
    %v1657 = vld [vmem:[%s4 + $0xd0] sm:$0xff]
    %v1658 = vld [vmem:[%s4 + $0xd8] sm:$0xff]
    %v1659 = vld [vmem:[%s4 + $0xe0] sm:$0xff]
    %v1660 = vld [vmem:[%s4 + $0xe8] sm:$0xff]
    %v1661 = vld [vmem:[%s4 + $0xf0] sm:$0xff]
    %v1662 = vld [vmem:[%s4 + $0xf8] sm:$0xff]
    %v1663 = vld [vmem:[%s4 + $0x100] sm:$0xff]
    %v1664 = vld [vmem:[%s4 + $0x108] sm:$0xff]
    %v1665 = vld [vmem:[%s4 + $0x110] sm:$0xff]
    %v1666 = vld [vmem:[%s4 + $0x118] sm:$0xff]
    %v1667 = vld [vmem:[%s4 + $0x120] sm:$0xff]
    %v1668 = vld [vmem:[%s4 + $0x128] sm:$0xff]
    %v1669 = vld [vmem:[%s4 + $0x130] sm:$0xff]
    %v1670 = vld [vmem:[%s4 + $0x138] sm:$0xff]
    %v1671 = vld [vmem:[%s4 + $0x140] sm:$0xff]
    %v1672 = vld [vmem:[%s4 + $0x148] sm:$0xff]
    %v1673 = vld [vmem:[%s4 + $0x150] sm:$0xff]
    %v1674 = vld [vmem:[%s4 + $0x158] sm:$0xff]
    %v1675 = vld [vmem:[%s4 + $0x160] sm:$0xff]
    %v1676 = vld [vmem:[%s4 + $0x168] sm:$0xff]
    %v1677 = vld [vmem:[%s4 + $0x170] sm:$0xff]
    %v1678 = vld [vmem:[%s4 + $0x178] sm:$0xff]
    %v1679 = vld [vmem:[%s4 + $0x180] sm:$0xff]
    %v1680 = vld [vmem:[%s4 + $0x188] sm:$0xff]
    %v1681 = vld [vmem:[%s5] sm:$0x3]
    %v1683 = vperm.slane %v1681, 0
    %v1684 = vperm.slane %v1681, 1
    %v1737 = vunpack.c.l.b16 %v1631
    %v1738 = vunpack.c.h.b16 %v1631
    %v1739 = vunpack.c.l.b16 %v1632
    %v1740 = vunpack.c.h.b16 %v1632
    %v1741 = vunpack.c.l.b16 %v1633
    %v1742 = vunpack.c.h.b16 %v1633
    %v1743 = vunpack.c.l.b16 %v1634
    %v1744 = vunpack.c.h.b16 %v1634
    %v1745 = vunpack.c.l.b16 %v1635
    %v1746 = vunpack.c.h.b16 %v1635
    %v1747 = vunpack.c.l.b16 %v1636
    %v1748 = vunpack.c.h.b16 %v1636
    %v1749 = vunpack.c.l.b16 %v1637
    %v1750 = vunpack.c.h.b16 %v1637
    %v1751 = vunpack.c.l.b16 %v1638
    %v1752 = vunpack.c.h.b16 %v1638
    %v1753 = vunpack.c.l.b16 %v1639
    %v1754 = vunpack.c.h.b16 %v1639
    %v1755 = vunpack.c.l.b16 %v1640
    %v1756 = vunpack.c.h.b16 %v1640
    %v1757 = vunpack.c.l.b16 %v1641
    %v1758 = vunpack.c.h.b16 %v1641
    %v1759 = vunpack.c.l.b16 %v1642
    %v1760 = vunpack.c.h.b16 %v1642
    %v1761 = vunpack.c.l.b16 %v1643
    %v1762 = vunpack.c.h.b16 %v1643
    %v1763 = vunpack.c.l.b16 %v1644
    %v1764 = vunpack.c.h.b16 %v1644
    %v1765 = vunpack.c.l.b16 %v1645
    %v1766 = vunpack.c.h.b16 %v1645
    %v1767 = vunpack.c.l.b16 %v1646
    %v1768 = vunpack.c.h.b16 %v1646
    %v1769 = vunpack.c.l.b16 %v1647
    %v1770 = vunpack.c.h.b16 %v1647
    %v1771 = vunpack.c.l.b16 %v1648
    %v1772 = vunpack.c.h.b16 %v1648
    %v1773 = vunpack.c.l.b16 %v1649
    %v1774 = vunpack.c.h.b16 %v1649
    %v1775 = vunpack.c.l.b16 %v1650
    %v1776 = vunpack.c.h.b16 %v1650
    %v1777 = vunpack.c.l.b16 %v1651
    %v1778 = vunpack.c.h.b16 %v1651
    %v1779 = vunpack.c.l.b16 %v1652
    %v1780 = vunpack.c.h.b16 %v1652
    %v1781 = vunpack.c.l.b16 %v1653
    %v1782 = vunpack.c.h.b16 %v1653
    %v1783 = vunpack.c.l.b16 %v1654
    %v1784 = vunpack.c.h.b16 %v1654
    %v1785 = vunpack.c.l.b16 %v1655
    %v1786 = vunpack.c.h.b16 %v1655
    %v1787 = vunpack.c.l.b16 %v1656
    %v1788 = vunpack.c.h.b16 %v1656
    %v1789 = vunpack.c.l.b16 %v1657
    %v1790 = vunpack.c.h.b16 %v1657
    %v1791 = vunpack.c.l.b16 %v1658
    %v1792 = vunpack.c.h.b16 %v1658
    %v1793 = vunpack.c.l.b16 %v1659
    %v1794 = vunpack.c.h.b16 %v1659
    %v1795 = vunpack.c.l.b16 %v1660
    %v1796 = vunpack.c.h.b16 %v1660
    %v1797 = vunpack.c.l.b16 %v1661
    %v1798 = vunpack.c.h.b16 %v1661
    %v1799 = vunpack.c.l.b16 %v1662
    %v1800 = vunpack.c.h.b16 %v1662
    %v1801 = vunpack.c.l.b16 %v1663
    %v1802 = vunpack.c.h.b16 %v1663
    %v1803 = vunpack.c.l.b16 %v1664
    %v1804 = vunpack.c.h.b16 %v1664
    %v1805 = vunpack.c.l.b16 %v1665
    %v1806 = vunpack.c.h.b16 %v1665
    %v1807 = vunpack.c.l.b16 %v1666
    %v1808 = vunpack.c.h.b16 %v1666
    %v1809 = vunpack.c.l.b16 %v1667
    %v1810 = vunpack.c.h.b16 %v1667
    %v1811 = vunpack.c.l.b16 %v1668
    %v1812 = vunpack.c.h.b16 %v1668
    %v1813 = vunpack.c.l.b16 %v1669
    %v1814 = vunpack.c.h.b16 %v1669
    %v1815 = vunpack.c.l.b16 %v1670
    %v1816 = vunpack.c.h.b16 %v1670
    %v1817 = vunpack.c.l.b16 %v1671
    %v1818 = vunpack.c.h.b16 %v1671
    %v1819 = vunpack.c.l.b16 %v1672
    %v1820 = vunpack.c.h.b16 %v1672
    %v1821 = vunpack.c.l.b16 %v1673
    %v1822 = vunpack.c.h.b16 %v1673
    %v1823 = vunpack.c.l.b16 %v1674
    %v1824 = vunpack.c.h.b16 %v1674
    %v1825 = vunpack.c.l.b16 %v1675
    %v1826 = vunpack.c.h.b16 %v1675
    %v1827 = vunpack.c.l.b16 %v1676
    %v1828 = vunpack.c.h.b16 %v1676
    %v1829 = vunpack.c.l.b16 %v1677
    %v1830 = vunpack.c.h.b16 %v1677
    %v1831 = vunpack.c.l.b16 %v1678
    %v1832 = vunpack.c.h.b16 %v1678
    %v1833 = vunpack.c.l.b16 %v1679
    %v1834 = vunpack.c.h.b16 %v1679
    %v1835 = vunpack.c.l.b16 %v1680
    %v1836 = vunpack.c.h.b16 %v1680
    %v1837 = vpack.c.b16 %v1739, %v1737
    %v1838 = vpack.c.b16 %v1740, %v1738
    %v1839 = vpack.c.b16 %v1743, %v1741
    %v1840 = vpack.c.b16 %v1744, %v1742
    %v1841 = vpack.c.b16 %v1747, %v1745
    %v1842 = vpack.c.b16 %v1748, %v1746
    %v1843 = vpack.c.b16 %v1751, %v1749
    %v1844 = vpack.c.b16 %v1752, %v1750
    %v1845 = vpack.c.b16 %v1755, %v1753
    %v1846 = vpack.c.b16 %v1756, %v1754
    %v1847 = vpack.c.b16 %v1759, %v1757
    %v1848 = vpack.c.b16 %v1760, %v1758
    %v1849 = vpack.c.b16 %v1763, %v1761
    %v1850 = vpack.c.b16 %v1764, %v1762
    %v1851 = vpack.c.b16 %v1767, %v1765
    %v1852 = vpack.c.b16 %v1768, %v1766
    %v1853 = vpack.c.b16 %v1771, %v1769
    %v1854 = vpack.c.b16 %v1772, %v1770
    %v1855 = vpack.c.b16 %v1775, %v1773
    %v1856 = vpack.c.b16 %v1776, %v1774
    %v1857 = vpack.c.b16 %v1779, %v1777
    %v1858 = vpack.c.b16 %v1780, %v1778
    %v1859 = vpack.c.b16 %v1783, %v1781
    %v1860 = vpack.c.b16 %v1784, %v1782
    %v1861 = vpack.c.b16 %v1787, %v1785
    %v1862 = vpack.c.b16 %v1788, %v1786
    %v1863 = vpack.c.b16 %v1791, %v1789
    %v1864 = vpack.c.b16 %v1792, %v1790
    %v1865 = vpack.c.b16 %v1795, %v1793
    %v1866 = vpack.c.b16 %v1796, %v1794
    %v1867 = vpack.c.b16 %v1799, %v1797
    %v1868 = vpack.c.b16 %v1800, %v1798
    %v1869 = vpack.c.b16 %v1803, %v1801
    %v1870 = vpack.c.b16 %v1804, %v1802
    %v1871 = vpack.c.b16 %v1807, %v1805
    %v1872 = vpack.c.b16 %v1808, %v1806
    %v1873 = vpack.c.b16 %v1811, %v1809
    %v1874 = vpack.c.b16 %v1812, %v1810
    %v1875 = vpack.c.b16 %v1815, %v1813
    %v1876 = vpack.c.b16 %v1816, %v1814
    %v1877 = vpack.c.b16 %v1819, %v1817
    %v1878 = vpack.c.b16 %v1820, %v1818
    %v1879 = vpack.c.b16 %v1823, %v1821
    %v1880 = vpack.c.b16 %v1824, %v1822
    %v1881 = vpack.c.b16 %v1827, %v1825
    %v1882 = vpack.c.b16 %v1828, %v1826
    %v1883 = vpack.c.b16 %v1831, %v1829
    %v1884 = vpack.c.b16 %v1832, %v1830
    %v1885 = vpack.c.b16 %v1835, %v1833
    %v1886 = vpack.c.b16 %v1836, %v1834
    %v1938 = vsel %vm1251, %v1630, 0
    %1940 = vmatpush.bf16.msra.mxu0 %v1851
    %1941 = vmatpush.bf16.msra.mxu0 %v1849
    %1942 = vmatpush.bf16.msra.mxu0 %v1847
    %1943 = vmatpush.bf16.msra.mxu0 %v1845
    %1944 = vmatpush.bf16.msra.mxu0 %v1843
    %1945 = vmatpush.bf16.msra.mxu0 %v1841
    %1946 = vmatpush.bf16.msra.mxu0 %v1839
    %1947 = vmatpush.bf16.msra.mxu0 %v1837
    %1948 = vmatmul.bf16.gmra.mxu0 %v1627
    %v1949 = vpop.f32.mrf.mxu0
    %v1950 = vadd.f32 %v1683, %v1949
    %v1951 = vpop.f32.mrf.mxu0
    %1952 = vdwg.mxu0
    %1953 = vmatpush.bf16.msra.mxu0 %v1867
    %1954 = vmatpush.bf16.msra.mxu0 %v1865
    %1955 = vmatpush.bf16.msra.mxu0 %v1863
    %1956 = vmatpush.bf16.msra.mxu0 %v1861
    %1957 = vmatpush.bf16.msra.mxu0 %v1859
    %1958 = vmatpush.bf16.msra.mxu0 %v1857
    %1959 = vmatpush.bf16.msra.mxu0 %v1855
    %1960 = vmatpush.bf16.msra.mxu0 %v1853
    %1961 = vmatmul.bf16.gmra.mxu0 %v1628
    %v1962 = vpop.f32.mrf.mxu0
    %v1963 = vadd.f32 %v1950, %v1962
    %v1964 = vpop.f32.mrf.mxu0
    %1965 = vdwg.mxu0
    %1966 = vmatpush.bf16.msra.mxu0 %v1883
    %1967 = vmatpush.bf16.msra.mxu0 %v1881
    %1968 = vmatpush.bf16.msra.mxu0 %v1879
    %1969 = vmatpush.bf16.msra.mxu0 %v1877
    %1970 = vmatpush.bf16.msra.mxu0 %v1875
    %1971 = vmatpush.bf16.msra.mxu0 %v1873
    %1972 = vmatpush.bf16.msra.mxu0 %v1871
    %1973 = vmatpush.bf16.msra.mxu0 %v1869
    %1974 = vmatmul.bf16.gmra.mxu0 %v1629
    %v1975 = vpop.f32.mrf.mxu0
    %v1976 = vadd.f32 %v1963, %v1975
    %v1977 = vpop.f32.mrf.mxu0
    %1978 = vdwg.mxu0
    %1979 = vmatpush.bf16.msra.mxu0 0
    %1980 = vmatpush.bf16.msra.mxu0 0
    %1981 = vmatpush.bf16.msra.mxu0 0
    %1982 = vmatpush.bf16.msra.mxu0 0
    %1983 = vmatpush.bf16.msra.mxu0 0
    %1984 = vmatpush.bf16.msra.mxu0 0
    %1985 = vmatpush.bf16.msra.mxu0 0
    %1986 = vmatpush.bf16.msra.mxu0 %v1885
    %1987 = vmatmul.bf16.gmra.mxu0 %v1938
    %v1988 = vpop.f32.mrf.mxu0
    %v1989 = vadd.f32 %v1976, %v1988
    %v1990 = vpop.f32.mrf.mxu0
    %1991 = vdwg.mxu0
    %1992 = vmatpush.bf16.msra.mxu0 %v1852
    %1993 = vmatpush.bf16.msra.mxu0 %v1850
    %1994 = vmatpush.bf16.msra.mxu0 %v1848
    %1995 = vmatpush.bf16.msra.mxu0 %v1846
    %1996 = vmatpush.bf16.msra.mxu0 %v1844
    %1997 = vmatpush.bf16.msra.mxu0 %v1842
    %1998 = vmatpush.bf16.msra.mxu0 %v1840
    %1999 = vmatpush.bf16.msra.mxu0 %v1838
    %2000 = vmatmul.bf16.gmra.mxu0 %v1627
    %v2001 = vpop.f32.mrf.mxu0
    %v2002 = vadd.f32 %v1684, %v2001
    %v2003 = vpop.f32.mrf.mxu0
    %2004 = vdwg.mxu0
    %2005 = vmatpush.bf16.msra.mxu0 %v1868
    %2006 = vmatpush.bf16.msra.mxu0 %v1866
    %2007 = vmatpush.bf16.msra.mxu0 %v1864
    %2008 = vmatpush.bf16.msra.mxu0 %v1862
    %2009 = vmatpush.bf16.msra.mxu0 %v1860
    %2010 = vmatpush.bf16.msra.mxu0 %v1858
    %2011 = vmatpush.bf16.msra.mxu0 %v1856
    %2012 = vmatpush.bf16.msra.mxu0 %v1854
    %2013 = vmatmul.bf16.gmra.mxu0 %v1628
    %v2014 = vpop.f32.mrf.mxu0
    %v2015 = vadd.f32 %v2002, %v2014
    %v2016 = vpop.f32.mrf.mxu0
    %2017 = vdwg.mxu0
    %2018 = vmatpush.bf16.msra.mxu0 %v1884
    %2019 = vmatpush.bf16.msra.mxu0 %v1882
    %2020 = vmatpush.bf16.msra.mxu0 %v1880
    %2021 = vmatpush.bf16.msra.mxu0 %v1878
    %2022 = vmatpush.bf16.msra.mxu0 %v1876
    %2023 = vmatpush.bf16.msra.mxu0 %v1874
    %2024 = vmatpush.bf16.msra.mxu0 %v1872
    %2025 = vmatpush.bf16.msra.mxu0 %v1870
    %2026 = vmatmul.bf16.gmra.mxu0 %v1629
    %v2027 = vpop.f32.mrf.mxu0
    %v2028 = vadd.f32 %v2015, %v2027
    %v2029 = vpop.f32.mrf.mxu0
    %2030 = vdwg.mxu0
    %2031 = vmatpush.bf16.msra.mxu0 0
    %2032 = vmatpush.bf16.msra.mxu0 0
    %2033 = vmatpush.bf16.msra.mxu0 0
    %2034 = vmatpush.bf16.msra.mxu0 0
    %2035 = vmatpush.bf16.msra.mxu0 0
    %2036 = vmatpush.bf16.msra.mxu0 0
    %2037 = vmatpush.bf16.msra.mxu0 0
    %2038 = vmatpush.bf16.msra.mxu0 %v1886
    %2039 = vmatmul.bf16.gmra.mxu0 %v1938
    %v2040 = vpop.f32.mrf.mxu0
    %v2041 = vadd.f32 %v2028, %v2040
    %v2042 = vpop.f32.mrf.mxu0
    %2043 = vdwg.mxu0
    %v2044 = vmul.f32 %v1989, 0.2
    %v2045 = vmul.f32 %v2041, 0.2
    %v2046 = vmax.f32 %v1989, %v2044
    %v2047 = vmax.f32 %v2041, %v2045
    %v2048 = vpack.c.bf16 %v2046, %v2046
    %v2049 = vpack.c.bf16 %v2047, %v2047
    %v2050 = vld [vmem:[%s6] sm:$0xf]
    %v2051 = vld [vmem:[%s6 + $0x4] sm:$0xf]
    %v2052 = vld [vmem:[%s6 + $0x8] sm:$0xf]
    %v2053 = vld [vmem:[%s6 + $0xc] sm:$0xf]
    %v2054 = vld [vmem:[%s6 + $0x10] sm:$0xf]
    %v2055 = vld [vmem:[%s6 + $0x14] sm:$0xf]
    %v2056 = vld [vmem:[%s6 + $0x18] sm:$0xf]
    %v2057 = vld [vmem:[%s6 + $0x1c] sm:$0xf]
    %v2058 = vld [vmem:[%s6 + $0x20] sm:$0xf]
    %v2059 = vld [vmem:[%s6 + $0x24] sm:$0xf]
    %v2060 = vld [vmem:[%s6 + $0x28] sm:$0xf]
    %v2061 = vld [vmem:[%s6 + $0x2c] sm:$0xf]
    %v2062 = vld [vmem:[%s6 + $0x30] sm:$0xf]
    %v2063 = vld [vmem:[%s6 + $0x34] sm:$0xf]
    %v2064 = vld [vmem:[%s6 + $0x38] sm:$0xf]
    %v2065 = vld [vmem:[%s6 + $0x3c] sm:$0xf]
    %v2066 = vld [vmem:[%s6 + $0x40] sm:$0xf]
    %v2067 = vld [vmem:[%s6 + $0x44] sm:$0xf]
    %v2068 = vld [vmem:[%s6 + $0x48] sm:$0xf]
    %v2069 = vld [vmem:[%s6 + $0x4c] sm:$0xf]
    %v2070 = vld [vmem:[%s6 + $0x50] sm:$0xf]
    %v2071 = vld [vmem:[%s6 + $0x54] sm:$0xf]
    %v2072 = vld [vmem:[%s6 + $0x58] sm:$0xf]
    %v2073 = vld [vmem:[%s6 + $0x5c] sm:$0xf]
    %v2074 = vld [vmem:[%s6 + $0x60] sm:$0xf]
    %v2075 = vld [vmem:[%s7] sm:$0x1]
    %v2077 = vperm.slane %v2075, 0
    %v2104 = vunpack.c.l.b16 %v2050
    %v2105 = vunpack.c.l.b16 %v2051
    %v2106 = vunpack.c.l.b16 %v2052
    %v2107 = vunpack.c.l.b16 %v2053
    %v2108 = vunpack.c.l.b16 %v2054
    %v2109 = vunpack.c.l.b16 %v2055
    %v2110 = vunpack.c.l.b16 %v2056
    %v2111 = vunpack.c.l.b16 %v2057
    %v2112 = vunpack.c.l.b16 %v2058
    %v2113 = vunpack.c.l.b16 %v2059
    %v2114 = vunpack.c.l.b16 %v2060
    %v2115 = vunpack.c.l.b16 %v2061
    %v2116 = vunpack.c.l.b16 %v2062
    %v2117 = vunpack.c.l.b16 %v2063
    %v2118 = vunpack.c.l.b16 %v2064
    %v2119 = vunpack.c.l.b16 %v2065
    %v2120 = vunpack.c.l.b16 %v2066
    %v2121 = vunpack.c.l.b16 %v2067
    %v2122 = vunpack.c.l.b16 %v2068
    %v2123 = vunpack.c.l.b16 %v2069
    %v2124 = vunpack.c.l.b16 %v2070
    %v2125 = vunpack.c.l.b16 %v2071
    %v2126 = vunpack.c.l.b16 %v2072
    %v2127 = vunpack.c.l.b16 %v2073
    %v2128 = vunpack.c.l.b16 %v2074
    %v2129 = vpack.c.b16 %v2105, %v2104
    %v2130 = vpack.c.b16 %v2107, %v2106
    %v2131 = vpack.c.b16 %v2109, %v2108
    %v2132 = vpack.c.b16 %v2111, %v2110
    %v2133 = vpack.c.b16 %v2113, %v2112
    %v2134 = vpack.c.b16 %v2115, %v2114
    %v2135 = vpack.c.b16 %v2117, %v2116
    %v2136 = vpack.c.b16 %v2119, %v2118
    %v2137 = vpack.c.b16 %v2121, %v2120
    %v2138 = vpack.c.b16 %v2123, %v2122
    %v2139 = vpack.c.b16 %v2125, %v2124
    %v2140 = vpack.c.b16 %v2127, %v2126
    %v2141 = vpack.c.b16 %v2128, %v2128
    %vm2154 = vcmask 588800
    %v2156 = vsel %vm2154, %v2049, 0
    %vm2158 = vcmask 1043456
    %v2160 = vsel %vm2158, %v2141, 0
    %2162 = vmatpush.bf16.msra.mxu0 %v2136
    %2163 = vmatpush.bf16.msra.mxu0 %v2135
    %2164 = vmatpush.bf16.msra.mxu0 %v2134
    %2165 = vmatpush.bf16.msra.mxu0 %v2133
    %2166 = vmatpush.bf16.msra.mxu0 %v2132
    %2167 = vmatpush.bf16.msra.mxu0 %v2131
    %2168 = vmatpush.bf16.msra.mxu0 %v2130
    %2169 = vmatpush.bf16.msra.mxu0 %v2129
    %2170 = vmatmul.bf16.gmra.mxu0 %v2048
    %v2171 = vpop.f32.mrf.mxu0
    %v2172 = vadd.f32 %v2077, %v2171
    %v2173 = vpop.f32.mrf.mxu0
    %2174 = vdwg.mxu0
    %2175 = vmatpush.bf16.msra.mxu0 0
    %2176 = vmatpush.bf16.msra.mxu0 0
    %2177 = vmatpush.bf16.msra.mxu0 0
    %2178 = vmatpush.bf16.msra.mxu0 %v2160
    %2179 = vmatpush.bf16.msra.mxu0 %v2140
    %2180 = vmatpush.bf16.msra.mxu0 %v2139
    %2181 = vmatpush.bf16.msra.mxu0 %v2138
    %2182 = vmatpush.bf16.msra.mxu0 %v2137
    %2183 = vmatmul.bf16.gmra.mxu0 %v2156
    %v2184 = vpop.f32.mrf.mxu0
    %v2185 = vadd.f32 %v2172, %v2184
    %v2186 = vpop.f32.mrf.mxu0
    %2187 = vdwg.mxu0
    %vm2188 = vcmask 31744
    %2189 = vst.msk [vmem:[%s15] sm:$0xff] %vm2188, %v2185
    %v2190 = vmul.f32 %v2185, 0.5
    %v2191 = vmul.f32 %v2190, 1.442695
    %v2192 = vpow.pop %v2191
    %v2193 = vld [vmem:[%s1] sm:$0xff]
    %2195 = vrot.lane.b32.xlu0 %v2193, 2
    %v2196 = vpop.permute.xlu0 %2195
    %v2198 = vmul.f32 %v2192, %v2196
    %2200 = vrot.lane.b32.xlu0 %v2198, 126
    %v2201 = vpop.permute.xlu0 %2200
    %v2203 = vadd.f32 %v2185, %v2201
    %v2204 = vld [vmem:[%s8] sm:$0x3]
    %v2205 = vunpack.c.l.bf16 %v2204
    %2207 = vset.pattern.permute.xlu0 0
    %2208 = vperm.xlu0 %2207, %v2203
    %v2209 = vpop.permute.xlu0 %2208
    %v2212 = vperm.slane %v2205, 0
    %v2213 = vperm.slane %v2205, 2
    %v2216 = vperm.slane %v2212, 0
    %v2217 = vperm.slane %v2213, 0
    %v2218 = vmul.f32 %v2209, %v2216
    %v2219 = vmul.f32 %v2209, %v2217
    %2220 = vset.pattern.permute.xlu0 1
    %2221 = vperm.xlu0 %2220, %v2203
    %v2222 = vpop.permute.xlu0 %2221
    %v2224 = vperm.slane %v2205, 1
    %v2225 = vperm.slane %v2205, 3
    %v2228 = vperm.slane %v2224, 1
    %v2229 = vperm.slane %v2225, 1
    %v2230 = vmul.f32 %v2222, %v2228
    %v2231 = vmul.f32 %v2222, %v2229
    %v2232 = vadd.f32 %v2218, %v2230
    %v2233 = vadd.f32 %v2219, %v2231
    %v2234 = vld [vmem:[%s9] sm:$0x3]
    %v2236 = vperm.slane %v2234, 0
    %v2237 = vperm.slane %v2234, 1
    %v2240 = vadd.f32 %v2232, %v2236
    %v2241 = vadd.f32 %v2233, %v2237
    %v2242 = vmul.f32 %v2240, 0.2
    %v2243 = vmul.f32 %v2241, 0.2
    %v2244 = vmax.f32 %v2240, %v2242
    %v2245 = vmax.f32 %v2241, %v2243
    %v2246 = vpack.c.bf16 %v2244, %v2244
    %v2247 = vpack.c.bf16 %v2245, %v2245
    %v2248 = vld [vmem:[%s10] sm:$0xff]
    %v2249 = vld [vmem:[%s10 + $0x8] sm:$0xff]
    %v2250 = vld [vmem:[%s10 + $0x10] sm:$0xff]
    %v2251 = vld [vmem:[%s10 + $0x18] sm:$0xff]
    %v2252 = vld [vmem:[%s10 + $0x20] sm:$0xff]
    %v2253 = vld [vmem:[%s10 + $0x28] sm:$0xff]
    %v2254 = vld [vmem:[%s10 + $0x30] sm:$0xff]
    %v2255 = vld [vmem:[%s10 + $0x38] sm:$0xff]
    %v2256 = vld [vmem:[%s10 + $0x40] sm:$0xff]
    %v2257 = vld [vmem:[%s10 + $0x48] sm:$0xff]
    %v2258 = vld [vmem:[%s10 + $0x50] sm:$0xff]
    %v2259 = vld [vmem:[%s10 + $0x58] sm:$0xff]
    %v2260 = vld [vmem:[%s10 + $0x60] sm:$0xff]
    %v2261 = vld [vmem:[%s10 + $0x68] sm:$0xff]
    %v2262 = vld [vmem:[%s10 + $0x70] sm:$0xff]
    %v2263 = vld [vmem:[%s10 + $0x78] sm:$0xff]
    %v2264 = vld [vmem:[%s10 + $0x80] sm:$0xff]
    %v2265 = vld [vmem:[%s10 + $0x88] sm:$0xff]
    %v2266 = vld [vmem:[%s10 + $0x90] sm:$0xff]
    %v2267 = vld [vmem:[%s10 + $0x98] sm:$0xff]
    %v2268 = vld [vmem:[%s10 + $0xa0] sm:$0xff]
    %v2269 = vld [vmem:[%s10 + $0xa8] sm:$0xff]
    %v2270 = vld [vmem:[%s10 + $0xb0] sm:$0xff]
    %v2271 = vld [vmem:[%s10 + $0xb8] sm:$0xff]
    %v2272 = vld [vmem:[%s10 + $0xc0] sm:$0xff]
    %v2273 = vld [vmem:[%s10 + $0xc8] sm:$0xff]
    %v2274 = vld [vmem:[%s10 + $0xd0] sm:$0xff]
    %v2275 = vld [vmem:[%s10 + $0xd8] sm:$0xff]
    %v2276 = vld [vmem:[%s10 + $0xe0] sm:$0xff]
    %v2277 = vld [vmem:[%s10 + $0xe8] sm:$0xff]
    %v2278 = vld [vmem:[%s10 + $0xf0] sm:$0xff]
    %v2279 = vld [vmem:[%s10 + $0xf8] sm:$0xff]
    %v2280 = vld [vmem:[%s10 + $0x100] sm:$0xff]
    %v2281 = vld [vmem:[%s10 + $0x108] sm:$0xff]
    %v2282 = vld [vmem:[%s10 + $0x110] sm:$0xff]
    %v2283 = vld [vmem:[%s10 + $0x118] sm:$0xff]
    %v2284 = vld [vmem:[%s10 + $0x120] sm:$0xff]
    %v2285 = vld [vmem:[%s10 + $0x128] sm:$0xff]
    %v2286 = vld [vmem:[%s10 + $0x130] sm:$0xff]
    %v2287 = vld [vmem:[%s10 + $0x138] sm:$0xff]
    %v2288 = vld [vmem:[%s10 + $0x140] sm:$0xff]
    %v2289 = vld [vmem:[%s10 + $0x148] sm:$0xff]
    %v2290 = vld [vmem:[%s10 + $0x150] sm:$0xff]
    %v2291 = vld [vmem:[%s10 + $0x158] sm:$0xff]
    %v2292 = vld [vmem:[%s10 + $0x160] sm:$0xff]
    %v2293 = vld [vmem:[%s10 + $0x168] sm:$0xff]
    %v2294 = vld [vmem:[%s10 + $0x170] sm:$0xff]
    %v2295 = vld [vmem:[%s10 + $0x178] sm:$0xff]
    %v2296 = vld [vmem:[%s10 + $0x180] sm:$0xff]
    %v2297 = vld [vmem:[%s10 + $0x188] sm:$0xff]
    %v2298 = vld [vmem:[%s11] sm:$0xf]
    %v2300 = vperm.slane %v2298, 0
    %v2301 = vperm.slane %v2298, 1
    %v2302 = vperm.slane %v2298, 2
    %v2303 = vperm.slane %v2298, 3
    %v2358 = vunpack.c.l.b16 %v2248
    %v2359 = vunpack.c.h.b16 %v2248
    %v2360 = vunpack.c.l.b16 %v2249
    %v2361 = vunpack.c.h.b16 %v2249
    %v2362 = vunpack.c.l.b16 %v2250
    %v2363 = vunpack.c.h.b16 %v2250
    %v2364 = vunpack.c.l.b16 %v2251
    %v2365 = vunpack.c.h.b16 %v2251
    %v2366 = vunpack.c.l.b16 %v2252
    %v2367 = vunpack.c.h.b16 %v2252
    %v2368 = vunpack.c.l.b16 %v2253
    %v2369 = vunpack.c.h.b16 %v2253
    %v2370 = vunpack.c.l.b16 %v2254
    %v2371 = vunpack.c.h.b16 %v2254
    %v2372 = vunpack.c.l.b16 %v2255
    %v2373 = vunpack.c.h.b16 %v2255
    %v2374 = vunpack.c.l.b16 %v2256
    %v2375 = vunpack.c.h.b16 %v2256
    %v2376 = vunpack.c.l.b16 %v2257
    %v2377 = vunpack.c.h.b16 %v2257
    %v2378 = vunpack.c.l.b16 %v2258
    %v2379 = vunpack.c.h.b16 %v2258
    %v2380 = vunpack.c.l.b16 %v2259
    %v2381 = vunpack.c.h.b16 %v2259
    %v2382 = vunpack.c.l.b16 %v2260
    %v2383 = vunpack.c.h.b16 %v2260
    %v2384 = vunpack.c.l.b16 %v2261
    %v2385 = vunpack.c.h.b16 %v2261
    %v2386 = vunpack.c.l.b16 %v2262
    %v2387 = vunpack.c.h.b16 %v2262
    %v2388 = vunpack.c.l.b16 %v2263
    %v2389 = vunpack.c.h.b16 %v2263
    %v2390 = vunpack.c.l.b16 %v2264
    %v2391 = vunpack.c.h.b16 %v2264
    %v2392 = vunpack.c.l.b16 %v2265
    %v2393 = vunpack.c.h.b16 %v2265
    %v2394 = vunpack.c.l.b16 %v2266
    %v2395 = vunpack.c.h.b16 %v2266
    %v2396 = vunpack.c.l.b16 %v2267
    %v2397 = vunpack.c.h.b16 %v2267
    %v2398 = vunpack.c.l.b16 %v2268
    %v2399 = vunpack.c.h.b16 %v2268
    %v2400 = vunpack.c.l.b16 %v2269
    %v2401 = vunpack.c.h.b16 %v2269
    %v2402 = vunpack.c.l.b16 %v2270
    %v2403 = vunpack.c.h.b16 %v2270
    %v2404 = vunpack.c.l.b16 %v2271
    %v2405 = vunpack.c.h.b16 %v2271
    %v2406 = vunpack.c.l.b16 %v2272
    %v2407 = vunpack.c.h.b16 %v2272
    %v2408 = vunpack.c.l.b16 %v2273
    %v2409 = vunpack.c.h.b16 %v2273
    %v2410 = vunpack.c.l.b16 %v2274
    %v2411 = vunpack.c.h.b16 %v2274
    %v2412 = vunpack.c.l.b16 %v2275
    %v2413 = vunpack.c.h.b16 %v2275
    %v2414 = vunpack.c.l.b16 %v2276
    %v2415 = vunpack.c.h.b16 %v2276
    %v2416 = vunpack.c.l.b16 %v2277
    %v2417 = vunpack.c.h.b16 %v2277
    %v2418 = vunpack.c.l.b16 %v2278
    %v2419 = vunpack.c.h.b16 %v2278
    %v2420 = vunpack.c.l.b16 %v2279
    %v2421 = vunpack.c.h.b16 %v2279
    %v2422 = vunpack.c.l.b16 %v2280
    %v2423 = vunpack.c.h.b16 %v2280
    %v2424 = vunpack.c.l.b16 %v2281
    %v2425 = vunpack.c.h.b16 %v2281
    %v2426 = vunpack.c.l.b16 %v2282
    %v2427 = vunpack.c.h.b16 %v2282
    %v2428 = vunpack.c.l.b16 %v2283
    %v2429 = vunpack.c.h.b16 %v2283
    %v2430 = vunpack.c.l.b16 %v2284
    %v2431 = vunpack.c.h.b16 %v2284
    %v2432 = vunpack.c.l.b16 %v2285
    %v2433 = vunpack.c.h.b16 %v2285
    %v2434 = vunpack.c.l.b16 %v2286
    %v2435 = vunpack.c.h.b16 %v2286
    %v2436 = vunpack.c.l.b16 %v2287
    %v2437 = vunpack.c.h.b16 %v2287
    %v2438 = vunpack.c.l.b16 %v2288
    %v2439 = vunpack.c.h.b16 %v2288
    %v2440 = vunpack.c.l.b16 %v2289
    %v2441 = vunpack.c.h.b16 %v2289
    %v2442 = vunpack.c.l.b16 %v2290
    %v2443 = vunpack.c.h.b16 %v2290
    %v2444 = vunpack.c.l.b16 %v2291
    %v2445 = vunpack.c.h.b16 %v2291
    %v2446 = vunpack.c.l.b16 %v2292
    %v2447 = vunpack.c.h.b16 %v2292
    %v2448 = vunpack.c.l.b16 %v2293
    %v2449 = vunpack.c.h.b16 %v2293
    %v2450 = vunpack.c.l.b16 %v2294
    %v2451 = vunpack.c.h.b16 %v2294
    %v2452 = vunpack.c.l.b16 %v2295
    %v2453 = vunpack.c.h.b16 %v2295
    %v2454 = vunpack.c.l.b16 %v2296
    %v2455 = vunpack.c.h.b16 %v2296
    %v2456 = vunpack.c.l.b16 %v2297
    %v2457 = vunpack.c.h.b16 %v2297
    %v2458 = vpack.c.b16 %v2362, %v2358
    %v2459 = vpack.c.b16 %v2363, %v2359
    %v2460 = vpack.c.b16 %v2364, %v2360
    %v2461 = vpack.c.b16 %v2365, %v2361
    %v2462 = vpack.c.b16 %v2370, %v2366
    %v2463 = vpack.c.b16 %v2371, %v2367
    %v2464 = vpack.c.b16 %v2372, %v2368
    %v2465 = vpack.c.b16 %v2373, %v2369
    %v2466 = vpack.c.b16 %v2378, %v2374
    %v2467 = vpack.c.b16 %v2379, %v2375
    %v2468 = vpack.c.b16 %v2380, %v2376
    %v2469 = vpack.c.b16 %v2381, %v2377
    %v2470 = vpack.c.b16 %v2386, %v2382
    %v2471 = vpack.c.b16 %v2387, %v2383
    %v2472 = vpack.c.b16 %v2388, %v2384
    %v2473 = vpack.c.b16 %v2389, %v2385
    %v2474 = vpack.c.b16 %v2394, %v2390
    %v2475 = vpack.c.b16 %v2395, %v2391
    %v2476 = vpack.c.b16 %v2396, %v2392
    %v2477 = vpack.c.b16 %v2397, %v2393
    %v2478 = vpack.c.b16 %v2402, %v2398
    %v2479 = vpack.c.b16 %v2403, %v2399
    %v2480 = vpack.c.b16 %v2404, %v2400
    %v2481 = vpack.c.b16 %v2405, %v2401
    %v2482 = vpack.c.b16 %v2410, %v2406
    %v2483 = vpack.c.b16 %v2411, %v2407
    %v2484 = vpack.c.b16 %v2412, %v2408
    %v2485 = vpack.c.b16 %v2413, %v2409
    %v2486 = vpack.c.b16 %v2418, %v2414
    %v2487 = vpack.c.b16 %v2419, %v2415
    %v2488 = vpack.c.b16 %v2420, %v2416
    %v2489 = vpack.c.b16 %v2421, %v2417
    %v2490 = vpack.c.b16 %v2426, %v2422
    %v2491 = vpack.c.b16 %v2427, %v2423
    %v2492 = vpack.c.b16 %v2428, %v2424
    %v2493 = vpack.c.b16 %v2429, %v2425
    %v2494 = vpack.c.b16 %v2434, %v2430
    %v2495 = vpack.c.b16 %v2435, %v2431
    %v2496 = vpack.c.b16 %v2436, %v2432
    %v2497 = vpack.c.b16 %v2437, %v2433
    %v2498 = vpack.c.b16 %v2442, %v2438
    %v2499 = vpack.c.b16 %v2443, %v2439
    %v2500 = vpack.c.b16 %v2444, %v2440
    %v2501 = vpack.c.b16 %v2445, %v2441
    %v2502 = vpack.c.b16 %v2450, %v2446
    %v2503 = vpack.c.b16 %v2451, %v2447
    %v2504 = vpack.c.b16 %v2452, %v2448
    %v2505 = vpack.c.b16 %v2453, %v2449
    %v2506 = vpack.c.b16 %v2454, %v2454
    %v2507 = vpack.c.b16 %v2455, %v2455
    %v2508 = vpack.c.b16 %v2456, %v2456
    %v2509 = vpack.c.b16 %v2457, %v2457
    %v2559 = vsel %vm2154, %v2247, 0
    %v2562 = vsel %vm2158, %v2506, 0
    %v2565 = vsel %vm2158, %v2507, 0
    %v2568 = vsel %vm2158, %v2508, 0
    %v2571 = vsel %vm2158, %v2509, 0
    %2573 = vmatpush.bf16.msra.mxu0 %v2486
    %2574 = vmatpush.bf16.msra.mxu0 %v2482
    %2575 = vmatpush.bf16.msra.mxu0 %v2478
    %2576 = vmatpush.bf16.msra.mxu0 %v2474
    %2577 = vmatpush.bf16.msra.mxu0 %v2470
    %2578 = vmatpush.bf16.msra.mxu0 %v2466
    %2579 = vmatpush.bf16.msra.mxu0 %v2462
    %2580 = vmatpush.bf16.msra.mxu0 %v2458
    %2581 = vmatmul.bf16.gmra.mxu0 %v2246
    %v2582 = vpop.f32.mrf.mxu0
    %v2583 = vadd.f32 %v2300, %v2582
    %v2584 = vpop.f32.mrf.mxu0
    %2585 = vdwg.mxu0
    %2586 = vmatpush.bf16.msra.mxu0 0
    %2587 = vmatpush.bf16.msra.mxu0 0
    %2588 = vmatpush.bf16.msra.mxu0 0
    %2589 = vmatpush.bf16.msra.mxu0 %v2562
    %2590 = vmatpush.bf16.msra.mxu0 %v2502
    %2591 = vmatpush.bf16.msra.mxu0 %v2498
    %2592 = vmatpush.bf16.msra.mxu0 %v2494
    %2593 = vmatpush.bf16.msra.mxu0 %v2490
    %2594 = vmatmul.bf16.gmra.mxu0 %v2559
    %v2595 = vpop.f32.mrf.mxu0
    %v2596 = vadd.f32 %v2583, %v2595
    %v2597 = vpop.f32.mrf.mxu0
    %2598 = vdwg.mxu0
    %2599 = vmatpush.bf16.msra.mxu0 %v2487
    %2600 = vmatpush.bf16.msra.mxu0 %v2483
    %2601 = vmatpush.bf16.msra.mxu0 %v2479
    %2602 = vmatpush.bf16.msra.mxu0 %v2475
    %2603 = vmatpush.bf16.msra.mxu0 %v2471
    %2604 = vmatpush.bf16.msra.mxu0 %v2467
    %2605 = vmatpush.bf16.msra.mxu0 %v2463
    %2606 = vmatpush.bf16.msra.mxu0 %v2459
    %2607 = vmatmul.bf16.gmra.mxu0 %v2246
    %v2608 = vpop.f32.mrf.mxu0
    %v2609 = vadd.f32 %v2301, %v2608
    %v2610 = vpop.f32.mrf.mxu0
    %2611 = vdwg.mxu0
    %2612 = vmatpush.bf16.msra.mxu0 0
    %2613 = vmatpush.bf16.msra.mxu0 0
    %2614 = vmatpush.bf16.msra.mxu0 0
    %2615 = vmatpush.bf16.msra.mxu0 %v2565
    %2616 = vmatpush.bf16.msra.mxu0 %v2503
    %2617 = vmatpush.bf16.msra.mxu0 %v2499
    %2618 = vmatpush.bf16.msra.mxu0 %v2495
    %2619 = vmatpush.bf16.msra.mxu0 %v2491
    %2620 = vmatmul.bf16.gmra.mxu0 %v2559
    %v2621 = vpop.f32.mrf.mxu0
    %v2622 = vadd.f32 %v2609, %v2621
    %v2623 = vpop.f32.mrf.mxu0
    %2624 = vdwg.mxu0
    %2625 = vmatpush.bf16.msra.mxu0 %v2488
    %2626 = vmatpush.bf16.msra.mxu0 %v2484
    %2627 = vmatpush.bf16.msra.mxu0 %v2480
    %2628 = vmatpush.bf16.msra.mxu0 %v2476
    %2629 = vmatpush.bf16.msra.mxu0 %v2472
    %2630 = vmatpush.bf16.msra.mxu0 %v2468
    %2631 = vmatpush.bf16.msra.mxu0 %v2464
    %2632 = vmatpush.bf16.msra.mxu0 %v2460
    %2633 = vmatmul.bf16.gmra.mxu0 %v2246
    %v2634 = vpop.f32.mrf.mxu0
    %v2635 = vadd.f32 %v2302, %v2634
    %v2636 = vpop.f32.mrf.mxu0
    %2637 = vdwg.mxu0
    %2638 = vmatpush.bf16.msra.mxu0 0
    %2639 = vmatpush.bf16.msra.mxu0 0
    %2640 = vmatpush.bf16.msra.mxu0 0
    %2641 = vmatpush.bf16.msra.mxu0 %v2568
    %2642 = vmatpush.bf16.msra.mxu0 %v2504
    %2643 = vmatpush.bf16.msra.mxu0 %v2500
    %2644 = vmatpush.bf16.msra.mxu0 %v2496
    %2645 = vmatpush.bf16.msra.mxu0 %v2492
    %2646 = vmatmul.bf16.gmra.mxu0 %v2559
    %v2647 = vpop.f32.mrf.mxu0
    %v2648 = vadd.f32 %v2635, %v2647
    %v2649 = vpop.f32.mrf.mxu0
    %2650 = vdwg.mxu0
    %2651 = vmatpush.bf16.msra.mxu0 %v2489
    %2652 = vmatpush.bf16.msra.mxu0 %v2485
    %2653 = vmatpush.bf16.msra.mxu0 %v2481
    %2654 = vmatpush.bf16.msra.mxu0 %v2477
    %2655 = vmatpush.bf16.msra.mxu0 %v2473
    %2656 = vmatpush.bf16.msra.mxu0 %v2469
    %2657 = vmatpush.bf16.msra.mxu0 %v2465
    %2658 = vmatpush.bf16.msra.mxu0 %v2461
    %2659 = vmatmul.bf16.gmra.mxu0 %v2246
    %v2660 = vpop.f32.mrf.mxu0
    %v2661 = vadd.f32 %v2303, %v2660
    %v2662 = vpop.f32.mrf.mxu0
    %2663 = vdwg.mxu0
    %2664 = vmatpush.bf16.msra.mxu0 0
    %2665 = vmatpush.bf16.msra.mxu0 0
    %2666 = vmatpush.bf16.msra.mxu0 0
    %2667 = vmatpush.bf16.msra.mxu0 %v2571
    %2668 = vmatpush.bf16.msra.mxu0 %v2505
    %2669 = vmatpush.bf16.msra.mxu0 %v2501
    %2670 = vmatpush.bf16.msra.mxu0 %v2497
    %2671 = vmatpush.bf16.msra.mxu0 %v2493
    %2672 = vmatmul.bf16.gmra.mxu0 %v2559
    %v2673 = vpop.f32.mrf.mxu0
    %v2674 = vadd.f32 %v2661, %v2673
    %v2675 = vpop.f32.mrf.mxu0
    %2676 = vdwg.mxu0
    %v2677 = vmul.f32 %v2596, 0.2
    %v2678 = vmul.f32 %v2622, 0.2
    %v2679 = vmul.f32 %v2648, 0.2
    %v2680 = vmul.f32 %v2674, 0.2
    %v2681 = vmax.f32 %v2596, %v2677
    %v2682 = vmax.f32 %v2622, %v2678
    %v2683 = vmax.f32 %v2648, %v2679
    %v2684 = vmax.f32 %v2674, %v2680
    %v2685 = vpack.c.bf16 %v2681, %v2681
    %v2686 = vpack.c.bf16 %v2682, %v2682
    %v2687 = vpack.c.bf16 %v2683, %v2683
    %v2688 = vpack.c.bf16 %v2684, %v2684
    %v2689 = vld [vmem:[%s12] sm:$0xff]
    %v2690 = vld [vmem:[%s12 + $0x8] sm:$0xff]
    %v2691 = vld [vmem:[%s12 + $0x10] sm:$0xff]
    %v2692 = vld [vmem:[%s12 + $0x18] sm:$0xf]
    %v2693 = vld [vmem:[%s12 + $0x1c] sm:$0xff]
    %v2694 = vld [vmem:[%s12 + $0x24] sm:$0xff]
    %v2695 = vld [vmem:[%s12 + $0x2c] sm:$0xff]
    %v2696 = vld [vmem:[%s12 + $0x34] sm:$0xf]
    %v2697 = vld [vmem:[%s12 + $0x38] sm:$0xff]
    %v2698 = vld [vmem:[%s12 + $0x40] sm:$0xff]
    %v2699 = vld [vmem:[%s12 + $0x48] sm:$0xff]
    %v2700 = vld [vmem:[%s12 + $0x50] sm:$0xf]
    %v2701 = vld [vmem:[%s12 + $0x54] sm:$0xff]
    %v2702 = vld [vmem:[%s12 + $0x5c] sm:$0xff]
    %v2703 = vld [vmem:[%s12 + $0x64] sm:$0xff]
    %v2704 = vld [vmem:[%s12 + $0x6c] sm:$0xf]
    %v2705 = vld [vmem:[%s12 + $0x70] sm:$0xff]
    %v2706 = vld [vmem:[%s12 + $0x78] sm:$0xff]
    %v2707 = vld [vmem:[%s12 + $0x80] sm:$0xff]
    %v2708 = vld [vmem:[%s12 + $0x88] sm:$0xf]
    %v2709 = vld [vmem:[%s12 + $0x8c] sm:$0xff]
    %v2710 = vld [vmem:[%s12 + $0x94] sm:$0xff]
    %v2711 = vld [vmem:[%s12 + $0x9c] sm:$0xff]
    %v2712 = vld [vmem:[%s12 + $0xa4] sm:$0xf]
    %v2713 = vld [vmem:[%s12 + $0xa8] sm:$0xff]
    %v2714 = vld [vmem:[%s12 + $0xb0] sm:$0xff]
    %v2715 = vld [vmem:[%s12 + $0xb8] sm:$0xff]
    %v2716 = vld [vmem:[%s12 + $0xc0] sm:$0xf]
    %v2717 = vld [vmem:[%s12 + $0xc4] sm:$0xff]
    %v2718 = vld [vmem:[%s12 + $0xcc] sm:$0xff]
    %v2719 = vld [vmem:[%s12 + $0xd4] sm:$0xff]
    %v2720 = vld [vmem:[%s12 + $0xdc] sm:$0xf]
    %v2721 = vld [vmem:[%s12 + $0xe0] sm:$0xff]
    %v2722 = vld [vmem:[%s12 + $0xe8] sm:$0xff]
    %v2723 = vld [vmem:[%s12 + $0xf0] sm:$0xff]
    %v2724 = vld [vmem:[%s12 + $0xf8] sm:$0xf]
    %v2725 = vld [vmem:[%s12 + $0xfc] sm:$0xff]
    %v2726 = vld [vmem:[%s12 + $0x104] sm:$0xff]
    %v2727 = vld [vmem:[%s12 + $0x10c] sm:$0xff]
    %v2728 = vld [vmem:[%s12 + $0x114] sm:$0xf]
    %v2729 = vld [vmem:[%s12 + $0x118] sm:$0xff]
    %v2730 = vld [vmem:[%s12 + $0x120] sm:$0xff]
    %v2731 = vld [vmem:[%s12 + $0x128] sm:$0xff]
    %v2732 = vld [vmem:[%s12 + $0x130] sm:$0xf]
    %v2733 = vld [vmem:[%s12 + $0x134] sm:$0xff]
    %v2734 = vld [vmem:[%s12 + $0x13c] sm:$0xff]
    %v2735 = vld [vmem:[%s12 + $0x144] sm:$0xff]
    %v2736 = vld [vmem:[%s12 + $0x14c] sm:$0xf]
    %v2737 = vld [vmem:[%s12 + $0x150] sm:$0xff]
    %v2738 = vld [vmem:[%s12 + $0x158] sm:$0xff]
    %v2739 = vld [vmem:[%s12 + $0x160] sm:$0xff]
    %v2740 = vld [vmem:[%s12 + $0x168] sm:$0xf]
    %v2741 = vld [vmem:[%s12 + $0x16c] sm:$0xff]
    %v2742 = vld [vmem:[%s12 + $0x174] sm:$0xff]
    %v2743 = vld [vmem:[%s12 + $0x17c] sm:$0xff]
    %v2744 = vld [vmem:[%s12 + $0x184] sm:$0xf]
    %v2745 = vld [vmem:[%s12 + $0x188] sm:$0xff]
    %v2746 = vld [vmem:[%s12 + $0x190] sm:$0xff]
    %v2747 = vld [vmem:[%s12 + $0x198] sm:$0xff]
    %v2748 = vld [vmem:[%s12 + $0x1a0] sm:$0xf]
    %v2749 = vld [vmem:[%s12 + $0x1a4] sm:$0xff]
    %v2750 = vld [vmem:[%s12 + $0x1ac] sm:$0xff]
    %v2751 = vld [vmem:[%s12 + $0x1b4] sm:$0xff]
    %v2752 = vld [vmem:[%s12 + $0x1bc] sm:$0xf]
    %v2753 = vld [vmem:[%s12 + $0x1c0] sm:$0xff]
    %v2754 = vld [vmem:[%s12 + $0x1c8] sm:$0xff]
    %v2755 = vld [vmem:[%s12 + $0x1d0] sm:$0xff]
    %v2756 = vld [vmem:[%s12 + $0x1d8] sm:$0xf]
    %v2757 = vld [vmem:[%s12 + $0x1dc] sm:$0xff]
    %v2758 = vld [vmem:[%s12 + $0x1e4] sm:$0xff]
    %v2759 = vld [vmem:[%s12 + $0x1ec] sm:$0xff]
    %v2760 = vld [vmem:[%s12 + $0x1f4] sm:$0xf]
    %v2761 = vld [vmem:[%s12 + $0x1f8] sm:$0xff]
    %v2762 = vld [vmem:[%s12 + $0x200] sm:$0xff]
    %v2763 = vld [vmem:[%s12 + $0x208] sm:$0xff]
    %v2764 = vld [vmem:[%s12 + $0x210] sm:$0xf]
    %v2765 = vld [vmem:[%s12 + $0x214] sm:$0xff]
    %v2766 = vld [vmem:[%s12 + $0x21c] sm:$0xff]
    %v2767 = vld [vmem:[%s12 + $0x224] sm:$0xff]
    %v2768 = vld [vmem:[%s12 + $0x22c] sm:$0xf]
    %v2769 = vld [vmem:[%s12 + $0x230] sm:$0xff]
    %v2770 = vld [vmem:[%s12 + $0x238] sm:$0xff]
    %v2771 = vld [vmem:[%s12 + $0x240] sm:$0xff]
    %v2772 = vld [vmem:[%s12 + $0x248] sm:$0xf]
    %v2773 = vld [vmem:[%s12 + $0x24c] sm:$0xff]
    %v2774 = vld [vmem:[%s12 + $0x254] sm:$0xff]
    %v2775 = vld [vmem:[%s12 + $0x25c] sm:$0xff]
    %v2776 = vld [vmem:[%s12 + $0x264] sm:$0xf]
    %v2777 = vld [vmem:[%s12 + $0x268] sm:$0xff]
    %v2778 = vld [vmem:[%s12 + $0x270] sm:$0xff]
    %v2779 = vld [vmem:[%s12 + $0x278] sm:$0xff]
    %v2780 = vld [vmem:[%s12 + $0x280] sm:$0xf]
    %v2781 = vld [vmem:[%s12 + $0x284] sm:$0xff]
    %v2782 = vld [vmem:[%s12 + $0x28c] sm:$0xff]
    %v2783 = vld [vmem:[%s12 + $0x294] sm:$0xff]
    %v2784 = vld [vmem:[%s12 + $0x29c] sm:$0xf]
    %v2785 = vld [vmem:[%s12 + $0x2a0] sm:$0xff]
    %v2786 = vld [vmem:[%s12 + $0x2a8] sm:$0xff]
    %v2787 = vld [vmem:[%s12 + $0x2b0] sm:$0xff]
    %v2788 = vld [vmem:[%s12 + $0x2b8] sm:$0xf]
    %v2789 = vld [vmem:[%s12 + $0x2bc] sm:$0xff]
    %v2790 = vld [vmem:[%s12 + $0x2c4] sm:$0xff]
    %v2791 = vld [vmem:[%s12 + $0x2cc] sm:$0xff]
    %v2792 = vld [vmem:[%s12 + $0x2d4] sm:$0xf]
    %v2793 = vld [vmem:[%s12 + $0x2d8] sm:$0xff]
    %v2794 = vld [vmem:[%s12 + $0x2e0] sm:$0xff]
    %v2795 = vld [vmem:[%s12 + $0x2e8] sm:$0xff]
    %v2796 = vld [vmem:[%s12 + $0x2f0] sm:$0xf]
    %v2797 = vld [vmem:[%s12 + $0x2f4] sm:$0xff]
    %v2798 = vld [vmem:[%s12 + $0x2fc] sm:$0xff]
    %v2799 = vld [vmem:[%s12 + $0x304] sm:$0xff]
    %v2800 = vld [vmem:[%s12 + $0x30c] sm:$0xf]
    %v2801 = vld [vmem:[%s12 + $0x310] sm:$0xff]
    %v2802 = vld [vmem:[%s12 + $0x318] sm:$0xff]
    %v2803 = vld [vmem:[%s12 + $0x320] sm:$0xff]
    %v2804 = vld [vmem:[%s12 + $0x328] sm:$0xf]
    %v2805 = vld [vmem:[%s12 + $0x32c] sm:$0xff]
    %v2806 = vld [vmem:[%s12 + $0x334] sm:$0xff]
    %v2807 = vld [vmem:[%s12 + $0x33c] sm:$0xff]
    %v2808 = vld [vmem:[%s12 + $0x344] sm:$0xf]
    %v2809 = vld [vmem:[%s12 + $0x348] sm:$0xff]
    %v2810 = vld [vmem:[%s12 + $0x350] sm:$0xff]
    %v2811 = vld [vmem:[%s12 + $0x358] sm:$0xff]
    %v2812 = vld [vmem:[%s12 + $0x360] sm:$0xf]
    %v2813 = vld [vmem:[%s12 + $0x364] sm:$0xff]
    %v2814 = vld [vmem:[%s12 + $0x36c] sm:$0xff]
    %v2815 = vld [vmem:[%s12 + $0x374] sm:$0xff]
    %v2816 = vld [vmem:[%s12 + $0x37c] sm:$0xf]
    %v2817 = vld [vmem:[%s12 + $0x380] sm:$0xff]
    %v2818 = vld [vmem:[%s12 + $0x388] sm:$0xff]
    %v2819 = vld [vmem:[%s12 + $0x390] sm:$0xff]
    %v2820 = vld [vmem:[%s12 + $0x398] sm:$0xf]
    %v2821 = vld [vmem:[%s12 + $0x39c] sm:$0xff]
    %v2822 = vld [vmem:[%s12 + $0x3a4] sm:$0xff]
    %v2823 = vld [vmem:[%s12 + $0x3ac] sm:$0xff]
    %v2824 = vld [vmem:[%s12 + $0x3b4] sm:$0xf]
    %v2825 = vld [vmem:[%s12 + $0x3b8] sm:$0xff]
    %v2826 = vld [vmem:[%s12 + $0x3c0] sm:$0xff]
    %v2827 = vld [vmem:[%s12 + $0x3c8] sm:$0xff]
    %v2828 = vld [vmem:[%s12 + $0x3d0] sm:$0xf]
    %v2829 = vld [vmem:[%s12 + $0x3d4] sm:$0xff]
    %v2830 = vld [vmem:[%s12 + $0x3dc] sm:$0xff]
    %v2831 = vld [vmem:[%s12 + $0x3e4] sm:$0xff]
    %v2832 = vld [vmem:[%s12 + $0x3ec] sm:$0xf]
    %v2833 = vld [vmem:[%s12 + $0x3f0] sm:$0xff]
    %v2834 = vld [vmem:[%s12 + $0x3f8] sm:$0xff]
    %v2835 = vld [vmem:[%s12 + $0x400] sm:$0xff]
    %v2836 = vld [vmem:[%s12 + $0x408] sm:$0xf]
    %v2837 = vld [vmem:[%s12 + $0x40c] sm:$0xff]
    %v2838 = vld [vmem:[%s12 + $0x414] sm:$0xff]
    %v2839 = vld [vmem:[%s12 + $0x41c] sm:$0xff]
    %v2840 = vld [vmem:[%s12 + $0x424] sm:$0xf]
    %v2841 = vld [vmem:[%s12 + $0x428] sm:$0xff]
    %v2842 = vld [vmem:[%s12 + $0x430] sm:$0xff]
    %v2843 = vld [vmem:[%s12 + $0x438] sm:$0xff]
    %v2844 = vld [vmem:[%s12 + $0x440] sm:$0xf]
    %v2845 = vld [vmem:[%s12 + $0x444] sm:$0xff]
    %v2846 = vld [vmem:[%s12 + $0x44c] sm:$0xff]
    %v2847 = vld [vmem:[%s12 + $0x454] sm:$0xff]
    %v2848 = vld [vmem:[%s12 + $0x45c] sm:$0xf]
    %v2849 = vld [vmem:[%s12 + $0x460] sm:$0xff]
    %v2850 = vld [vmem:[%s12 + $0x468] sm:$0xff]
    %v2851 = vld [vmem:[%s12 + $0x470] sm:$0xff]
    %v2852 = vld [vmem:[%s12 + $0x478] sm:$0xf]
    %v2853 = vld [vmem:[%s12 + $0x47c] sm:$0xff]
    %v2854 = vld [vmem:[%s12 + $0x484] sm:$0xff]
    %v2855 = vld [vmem:[%s12 + $0x48c] sm:$0xff]
    %v2856 = vld [vmem:[%s12 + $0x494] sm:$0xf]
    %v2857 = vld [vmem:[%s12 + $0x498] sm:$0xff]
    %v2858 = vld [vmem:[%s12 + $0x4a0] sm:$0xff]
    %v2859 = vld [vmem:[%s12 + $0x4a8] sm:$0xff]
    %v2860 = vld [vmem:[%s12 + $0x4b0] sm:$0xf]
    %v2861 = vld [vmem:[%s12 + $0x4b4] sm:$0xff]
    %v2862 = vld [vmem:[%s12 + $0x4bc] sm:$0xff]
    %v2863 = vld [vmem:[%s12 + $0x4c4] sm:$0xff]
    %v2864 = vld [vmem:[%s12 + $0x4cc] sm:$0xf]
    %v2865 = vld [vmem:[%s12 + $0x4d0] sm:$0xff]
    %v2866 = vld [vmem:[%s12 + $0x4d8] sm:$0xff]
    %v2867 = vld [vmem:[%s12 + $0x4e0] sm:$0xff]
    %v2868 = vld [vmem:[%s12 + $0x4e8] sm:$0xf]
    %v2869 = vld [vmem:[%s12 + $0x4ec] sm:$0xff]
    %v2870 = vld [vmem:[%s12 + $0x4f4] sm:$0xff]
    %v2871 = vld [vmem:[%s12 + $0x4fc] sm:$0xff]
    %v2872 = vld [vmem:[%s12 + $0x504] sm:$0xf]
    %v2873 = vld [vmem:[%s12 + $0x508] sm:$0xff]
    %v2874 = vld [vmem:[%s12 + $0x510] sm:$0xff]
    %v2875 = vld [vmem:[%s12 + $0x518] sm:$0xff]
    %v2876 = vld [vmem:[%s12 + $0x520] sm:$0xf]
    %v2877 = vld [vmem:[%s12 + $0x524] sm:$0xff]
    %v2878 = vld [vmem:[%s12 + $0x52c] sm:$0xff]
    %v2879 = vld [vmem:[%s12 + $0x534] sm:$0xff]
    %v2880 = vld [vmem:[%s12 + $0x53c] sm:$0xf]
    %v2881 = vld [vmem:[%s12 + $0x540] sm:$0xff]
    %v2882 = vld [vmem:[%s12 + $0x548] sm:$0xff]
    %v2883 = vld [vmem:[%s12 + $0x550] sm:$0xff]
    %v2884 = vld [vmem:[%s12 + $0x558] sm:$0xf]
    %v2885 = vld [vmem:[%s12 + $0x55c] sm:$0xff]
    %v2886 = vld [vmem:[%s12 + $0x564] sm:$0xff]
    %v2887 = vld [vmem:[%s12 + $0x56c] sm:$0xff]
    %v2888 = vld [vmem:[%s12 + $0x574] sm:$0xf]
    %v2889 = vld [vmem:[%s13] sm:$0xff]
    %v2891 = vperm.slane %v2889, 0
    %v2892 = vperm.slane %v2889, 1
    %v2893 = vperm.slane %v2889, 2
    %v2894 = vperm.slane %v2889, 3
    %v2895 = vperm.slane %v2889, 4
    %v2896 = vperm.slane %v2889, 5
    %v2897 = vperm.slane %v2889, 6
    %v3105 = vunpack.c.l.b16 %v2689
    %v3106 = vunpack.c.h.b16 %v2689
    %v3107 = vunpack.c.l.b16 %v2690
    %v3108 = vunpack.c.h.b16 %v2690
    %v3109 = vunpack.c.l.b16 %v2691
    %v3110 = vunpack.c.h.b16 %v2691
    %v3111 = vunpack.c.l.b16 %v2692
    %v3112 = vunpack.c.l.b16 %v2693
    %v3113 = vunpack.c.h.b16 %v2693
    %v3114 = vunpack.c.l.b16 %v2694
    %v3115 = vunpack.c.h.b16 %v2694
    %v3116 = vunpack.c.l.b16 %v2695
    %v3117 = vunpack.c.h.b16 %v2695
    %v3118 = vunpack.c.l.b16 %v2696
    %v3119 = vunpack.c.l.b16 %v2697
    %v3120 = vunpack.c.h.b16 %v2697
    %v3121 = vunpack.c.l.b16 %v2698
    %v3122 = vunpack.c.h.b16 %v2698
    %v3123 = vunpack.c.l.b16 %v2699
    %v3124 = vunpack.c.h.b16 %v2699
    %v3125 = vunpack.c.l.b16 %v2700
    %v3126 = vunpack.c.l.b16 %v2701
    %v3127 = vunpack.c.h.b16 %v2701
    %v3128 = vunpack.c.l.b16 %v2702
    %v3129 = vunpack.c.h.b16 %v2702
    %v3130 = vunpack.c.l.b16 %v2703
    %v3131 = vunpack.c.h.b16 %v2703
    %v3132 = vunpack.c.l.b16 %v2704
    %v3133 = vunpack.c.l.b16 %v2705
    %v3134 = vunpack.c.h.b16 %v2705
    %v3135 = vunpack.c.l.b16 %v2706
    %v3136 = vunpack.c.h.b16 %v2706
    %v3137 = vunpack.c.l.b16 %v2707
    %v3138 = vunpack.c.h.b16 %v2707
    %v3139 = vunpack.c.l.b16 %v2708
    %v3140 = vunpack.c.l.b16 %v2709
    %v3141 = vunpack.c.h.b16 %v2709
    %v3142 = vunpack.c.l.b16 %v2710
    %v3143 = vunpack.c.h.b16 %v2710
    %v3144 = vunpack.c.l.b16 %v2711
    %v3145 = vunpack.c.h.b16 %v2711
    %v3146 = vunpack.c.l.b16 %v2712
    %v3147 = vunpack.c.l.b16 %v2713
    %v3148 = vunpack.c.h.b16 %v2713
    %v3149 = vunpack.c.l.b16 %v2714
    %v3150 = vunpack.c.h.b16 %v2714
    %v3151 = vunpack.c.l.b16 %v2715
    %v3152 = vunpack.c.h.b16 %v2715
    %v3153 = vunpack.c.l.b16 %v2716
    %v3154 = vunpack.c.l.b16 %v2717
    %v3155 = vunpack.c.h.b16 %v2717
    %v3156 = vunpack.c.l.b16 %v2718
    %v3157 = vunpack.c.h.b16 %v2718
    %v3158 = vunpack.c.l.b16 %v2719
    %v3159 = vunpack.c.h.b16 %v2719
    %v3160 = vunpack.c.l.b16 %v2720
    %v3161 = vunpack.c.l.b16 %v2721
    %v3162 = vunpack.c.h.b16 %v2721
    %v3163 = vunpack.c.l.b16 %v2722
    %v3164 = vunpack.c.h.b16 %v2722
    %v3165 = vunpack.c.l.b16 %v2723
    %v3166 = vunpack.c.h.b16 %v2723
    %v3167 = vunpack.c.l.b16 %v2724
    %v3168 = vunpack.c.l.b16 %v2725
    %v3169 = vunpack.c.h.b16 %v2725
    %v3170 = vunpack.c.l.b16 %v2726
    %v3171 = vunpack.c.h.b16 %v2726
    %v3172 = vunpack.c.l.b16 %v2727
    %v3173 = vunpack.c.h.b16 %v2727
    %v3174 = vunpack.c.l.b16 %v2728
    %v3175 = vunpack.c.l.b16 %v2729
    %v3176 = vunpack.c.h.b16 %v2729
    %v3177 = vunpack.c.l.b16 %v2730
    %v3178 = vunpack.c.h.b16 %v2730
    %v3179 = vunpack.c.l.b16 %v2731
    %v3180 = vunpack.c.h.b16 %v2731
    %v3181 = vunpack.c.l.b16 %v2732
    %v3182 = vunpack.c.l.b16 %v2733
    %v3183 = vunpack.c.h.b16 %v2733
    %v3184 = vunpack.c.l.b16 %v2734
    %v3185 = vunpack.c.h.b16 %v2734
    %v3186 = vunpack.c.l.b16 %v2735
    %v3187 = vunpack.c.h.b16 %v2735
    %v3188 = vunpack.c.l.b16 %v2736
    %v3189 = vunpack.c.l.b16 %v2737
    %v3190 = vunpack.c.h.b16 %v2737
    %v3191 = vunpack.c.l.b16 %v2738
    %v3192 = vunpack.c.h.b16 %v2738
    %v3193 = vunpack.c.l.b16 %v2739
    %v3194 = vunpack.c.h.b16 %v2739
    %v3195 = vunpack.c.l.b16 %v2740
    %v3196 = vunpack.c.l.b16 %v2741
    %v3197 = vunpack.c.h.b16 %v2741
    %v3198 = vunpack.c.l.b16 %v2742
    %v3199 = vunpack.c.h.b16 %v2742
    %v3200 = vunpack.c.l.b16 %v2743
    %v3201 = vunpack.c.h.b16 %v2743
    %v3202 = vunpack.c.l.b16 %v2744
    %v3203 = vunpack.c.l.b16 %v2745
    %v3204 = vunpack.c.h.b16 %v2745
    %v3205 = vunpack.c.l.b16 %v2746
    %v3206 = vunpack.c.h.b16 %v2746
    %v3207 = vunpack.c.l.b16 %v2747
    %v3208 = vunpack.c.h.b16 %v2747
    %v3209 = vunpack.c.l.b16 %v2748
    %v3210 = vunpack.c.l.b16 %v2749
    %v3211 = vunpack.c.h.b16 %v2749
    %v3212 = vunpack.c.l.b16 %v2750
    %v3213 = vunpack.c.h.b16 %v2750
    %v3214 = vunpack.c.l.b16 %v2751
    %v3215 = vunpack.c.h.b16 %v2751
    %v3216 = vunpack.c.l.b16 %v2752
    %v3217 = vunpack.c.l.b16 %v2753
    %v3218 = vunpack.c.h.b16 %v2753
    %v3219 = vunpack.c.l.b16 %v2754
    %v3220 = vunpack.c.h.b16 %v2754
    %v3221 = vunpack.c.l.b16 %v2755
    %v3222 = vunpack.c.h.b16 %v2755
    %v3223 = vunpack.c.l.b16 %v2756
    %v3224 = vunpack.c.l.b16 %v2757
    %v3225 = vunpack.c.h.b16 %v2757
    %v3226 = vunpack.c.l.b16 %v2758
    %v3227 = vunpack.c.h.b16 %v2758
    %v3228 = vunpack.c.l.b16 %v2759
    %v3229 = vunpack.c.h.b16 %v2759
    %v3230 = vunpack.c.l.b16 %v2760
    %v3231 = vunpack.c.l.b16 %v2761
    %v3232 = vunpack.c.h.b16 %v2761
    %v3233 = vunpack.c.l.b16 %v2762
    %v3234 = vunpack.c.h.b16 %v2762
    %v3235 = vunpack.c.l.b16 %v2763
    %v3236 = vunpack.c.h.b16 %v2763
    %v3237 = vunpack.c.l.b16 %v2764
    %v3238 = vunpack.c.l.b16 %v2765
    %v3239 = vunpack.c.h.b16 %v2765
    %v3240 = vunpack.c.l.b16 %v2766
    %v3241 = vunpack.c.h.b16 %v2766
    %v3242 = vunpack.c.l.b16 %v2767
    %v3243 = vunpack.c.h.b16 %v2767
    %v3244 = vunpack.c.l.b16 %v2768
    %v3245 = vunpack.c.l.b16 %v2769
    %v3246 = vunpack.c.h.b16 %v2769
    %v3247 = vunpack.c.l.b16 %v2770
    %v3248 = vunpack.c.h.b16 %v2770
    %v3249 = vunpack.c.l.b16 %v2771
    %v3250 = vunpack.c.h.b16 %v2771
    %v3251 = vunpack.c.l.b16 %v2772
    %v3252 = vunpack.c.l.b16 %v2773
    %v3253 = vunpack.c.h.b16 %v2773
    %v3254 = vunpack.c.l.b16 %v2774
    %v3255 = vunpack.c.h.b16 %v2774
    %v3256 = vunpack.c.l.b16 %v2775
    %v3257 = vunpack.c.h.b16 %v2775
    %v3258 = vunpack.c.l.b16 %v2776
    %v3259 = vunpack.c.l.b16 %v2777
    %v3260 = vunpack.c.h.b16 %v2777
    %v3261 = vunpack.c.l.b16 %v2778
    %v3262 = vunpack.c.h.b16 %v2778
    %v3263 = vunpack.c.l.b16 %v2779
    %v3264 = vunpack.c.h.b16 %v2779
    %v3265 = vunpack.c.l.b16 %v2780
    %v3266 = vunpack.c.l.b16 %v2781
    %v3267 = vunpack.c.h.b16 %v2781
    %v3268 = vunpack.c.l.b16 %v2782
    %v3269 = vunpack.c.h.b16 %v2782
    %v3270 = vunpack.c.l.b16 %v2783
    %v3271 = vunpack.c.h.b16 %v2783
    %v3272 = vunpack.c.l.b16 %v2784
    %v3273 = vunpack.c.l.b16 %v2785
    %v3274 = vunpack.c.h.b16 %v2785
    %v3275 = vunpack.c.l.b16 %v2786
    %v3276 = vunpack.c.h.b16 %v2786
    %v3277 = vunpack.c.l.b16 %v2787
    %v3278 = vunpack.c.h.b16 %v2787
    %v3279 = vunpack.c.l.b16 %v2788
    %v3280 = vunpack.c.l.b16 %v2789
    %v3281 = vunpack.c.h.b16 %v2789
    %v3282 = vunpack.c.l.b16 %v2790
    %v3283 = vunpack.c.h.b16 %v2790
    %v3284 = vunpack.c.l.b16 %v2791
    %v3285 = vunpack.c.h.b16 %v2791
    %v3286 = vunpack.c.l.b16 %v2792
    %v3287 = vunpack.c.l.b16 %v2793
    %v3288 = vunpack.c.h.b16 %v2793
    %v3289 = vunpack.c.l.b16 %v2794
    %v3290 = vunpack.c.h.b16 %v2794
    %v3291 = vunpack.c.l.b16 %v2795
    %v3292 = vunpack.c.h.b16 %v2795
    %v3293 = vunpack.c.l.b16 %v2796
    %v3294 = vunpack.c.l.b16 %v2797
    %v3295 = vunpack.c.h.b16 %v2797
    %v3296 = vunpack.c.l.b16 %v2798
    %v3297 = vunpack.c.h.b16 %v2798
    %v3298 = vunpack.c.l.b16 %v2799
    %v3299 = vunpack.c.h.b16 %v2799
    %v3300 = vunpack.c.l.b16 %v2800
    %v3301 = vunpack.c.l.b16 %v2801
    %v3302 = vunpack.c.h.b16 %v2801
    %v3303 = vunpack.c.l.b16 %v2802
    %v3304 = vunpack.c.h.b16 %v2802
    %v3305 = vunpack.c.l.b16 %v2803
    %v3306 = vunpack.c.h.b16 %v2803
    %v3307 = vunpack.c.l.b16 %v2804
    %v3308 = vunpack.c.l.b16 %v2805
    %v3309 = vunpack.c.h.b16 %v2805
    %v3310 = vunpack.c.l.b16 %v2806
    %v3311 = vunpack.c.h.b16 %v2806
    %v3312 = vunpack.c.l.b16 %v2807
    %v3313 = vunpack.c.h.b16 %v2807
    %v3314 = vunpack.c.l.b16 %v2808
    %v3315 = vunpack.c.l.b16 %v2809
    %v3316 = vunpack.c.h.b16 %v2809
    %v3317 = vunpack.c.l.b16 %v2810
    %v3318 = vunpack.c.h.b16 %v2810
    %v3319 = vunpack.c.l.b16 %v2811
    %v3320 = vunpack.c.h.b16 %v2811
    %v3321 = vunpack.c.l.b16 %v2812
    %v3322 = vunpack.c.l.b16 %v2813
    %v3323 = vunpack.c.h.b16 %v2813
    %v3324 = vunpack.c.l.b16 %v2814
    %v3325 = vunpack.c.h.b16 %v2814
    %v3326 = vunpack.c.l.b16 %v2815
    %v3327 = vunpack.c.h.b16 %v2815
    %v3328 = vunpack.c.l.b16 %v2816
    %v3329 = vunpack.c.l.b16 %v2817
    %v3330 = vunpack.c.h.b16 %v2817
    %v3331 = vunpack.c.l.b16 %v2818
    %v3332 = vunpack.c.h.b16 %v2818
    %v3333 = vunpack.c.l.b16 %v2819
    %v3334 = vunpack.c.h.b16 %v2819
    %v3335 = vunpack.c.l.b16 %v2820
    %v3336 = vunpack.c.l.b16 %v2821
    %v3337 = vunpack.c.h.b16 %v2821
    %v3338 = vunpack.c.l.b16 %v2822
    %v3339 = vunpack.c.h.b16 %v2822
    %v3340 = vunpack.c.l.b16 %v2823
    %v3341 = vunpack.c.h.b16 %v2823
    %v3342 = vunpack.c.l.b16 %v2824
    %v3343 = vunpack.c.l.b16 %v2825
    %v3344 = vunpack.c.h.b16 %v2825
    %v3345 = vunpack.c.l.b16 %v2826
    %v3346 = vunpack.c.h.b16 %v2826
    %v3347 = vunpack.c.l.b16 %v2827
    %v3348 = vunpack.c.h.b16 %v2827
    %v3349 = vunpack.c.l.b16 %v2828
    %v3350 = vunpack.c.l.b16 %v2829
    %v3351 = vunpack.c.h.b16 %v2829
    %v3352 = vunpack.c.l.b16 %v2830
    %v3353 = vunpack.c.h.b16 %v2830
    %v3354 = vunpack.c.l.b16 %v2831
    %v3355 = vunpack.c.h.b16 %v2831
    %v3356 = vunpack.c.l.b16 %v2832
    %v3357 = vunpack.c.l.b16 %v2833
    %v3358 = vunpack.c.h.b16 %v2833
    %v3359 = vunpack.c.l.b16 %v2834
    %v3360 = vunpack.c.h.b16 %v2834
    %v3361 = vunpack.c.l.b16 %v2835
    %v3362 = vunpack.c.h.b16 %v2835
    %v3363 = vunpack.c.l.b16 %v2836
    %v3364 = vunpack.c.l.b16 %v2837
    %v3365 = vunpack.c.h.b16 %v2837
    %v3366 = vunpack.c.l.b16 %v2838
    %v3367 = vunpack.c.h.b16 %v2838
    %v3368 = vunpack.c.l.b16 %v2839
    %v3369 = vunpack.c.h.b16 %v2839
    %v3370 = vunpack.c.l.b16 %v2840
    %v3371 = vunpack.c.l.b16 %v2841
    %v3372 = vunpack.c.h.b16 %v2841
    %v3373 = vunpack.c.l.b16 %v2842
    %v3374 = vunpack.c.h.b16 %v2842
    %v3375 = vunpack.c.l.b16 %v2843
    %v3376 = vunpack.c.h.b16 %v2843
    %v3377 = vunpack.c.l.b16 %v2844
    %v3378 = vunpack.c.l.b16 %v2845
    %v3379 = vunpack.c.h.b16 %v2845
    %v3380 = vunpack.c.l.b16 %v2846
    %v3381 = vunpack.c.h.b16 %v2846
    %v3382 = vunpack.c.l.b16 %v2847
    %v3383 = vunpack.c.h.b16 %v2847
    %v3384 = vunpack.c.l.b16 %v2848
    %v3385 = vunpack.c.l.b16 %v2849
    %v3386 = vunpack.c.h.b16 %v2849
    %v3387 = vunpack.c.l.b16 %v2850
    %v3388 = vunpack.c.h.b16 %v2850
    %v3389 = vunpack.c.l.b16 %v2851
    %v3390 = vunpack.c.h.b16 %v2851
    %v3391 = vunpack.c.l.b16 %v2852
    %v3392 = vunpack.c.l.b16 %v2853
    %v3393 = vunpack.c.h.b16 %v2853
    %v3394 = vunpack.c.l.b16 %v2854
    %v3395 = vunpack.c.h.b16 %v2854
    %v3396 = vunpack.c.l.b16 %v2855
    %v3397 = vunpack.c.h.b16 %v2855
    %v3398 = vunpack.c.l.b16 %v2856
    %v3399 = vunpack.c.l.b16 %v2857
    %v3400 = vunpack.c.h.b16 %v2857
    %v3401 = vunpack.c.l.b16 %v2858
    %v3402 = vunpack.c.h.b16 %v2858
    %v3403 = vunpack.c.l.b16 %v2859
    %v3404 = vunpack.c.h.b16 %v2859
    %v3405 = vunpack.c.l.b16 %v2860
    %v3406 = vunpack.c.l.b16 %v2861
    %v3407 = vunpack.c.h.b16 %v2861
    %v3408 = vunpack.c.l.b16 %v2862
    %v3409 = vunpack.c.h.b16 %v2862
    %v3410 = vunpack.c.l.b16 %v2863
    %v3411 = vunpack.c.h.b16 %v2863
    %v3412 = vunpack.c.l.b16 %v2864
    %v3413 = vunpack.c.l.b16 %v2865
    %v3414 = vunpack.c.h.b16 %v2865
    %v3415 = vunpack.c.l.b16 %v2866
    %v3416 = vunpack.c.h.b16 %v2866
    %v3417 = vunpack.c.l.b16 %v2867
    %v3418 = vunpack.c.h.b16 %v2867
    %v3419 = vunpack.c.l.b16 %v2868
    %v3420 = vunpack.c.l.b16 %v2869
    %v3421 = vunpack.c.h.b16 %v2869
    %v3422 = vunpack.c.l.b16 %v2870
    %v3423 = vunpack.c.h.b16 %v2870
    %v3424 = vunpack.c.l.b16 %v2871
    %v3425 = vunpack.c.h.b16 %v2871
    %v3426 = vunpack.c.l.b16 %v2872
    %v3427 = vunpack.c.l.b16 %v2873
    %v3428 = vunpack.c.h.b16 %v2873
    %v3429 = vunpack.c.l.b16 %v2874
    %v3430 = vunpack.c.h.b16 %v2874
    %v3431 = vunpack.c.l.b16 %v2875
    %v3432 = vunpack.c.h.b16 %v2875
    %v3433 = vunpack.c.l.b16 %v2876
    %v3434 = vunpack.c.l.b16 %v2877
    %v3435 = vunpack.c.h.b16 %v2877
    %v3436 = vunpack.c.l.b16 %v2878
    %v3437 = vunpack.c.h.b16 %v2878
    %v3438 = vunpack.c.l.b16 %v2879
    %v3439 = vunpack.c.h.b16 %v2879
    %v3440 = vunpack.c.l.b16 %v2880
    %v3441 = vunpack.c.l.b16 %v2881
    %v3442 = vunpack.c.h.b16 %v2881
    %v3443 = vunpack.c.l.b16 %v2882
    %v3444 = vunpack.c.h.b16 %v2882
    %v3445 = vunpack.c.l.b16 %v2883
    %v3446 = vunpack.c.h.b16 %v2883
    %v3447 = vunpack.c.l.b16 %v2884
    %v3448 = vunpack.c.l.b16 %v2885
    %v3449 = vunpack.c.h.b16 %v2885
    %v3450 = vunpack.c.l.b16 %v2886
    %v3451 = vunpack.c.h.b16 %v2886
    %v3452 = vunpack.c.l.b16 %v2887
    %v3453 = vunpack.c.h.b16 %v2887
    %v3454 = vunpack.c.l.b16 %v2888
    %v3455 = vpack.c.b16 %v3112, %v3105
    %v3456 = vpack.c.b16 %v3113, %v3106
    %v3457 = vpack.c.b16 %v3114, %v3107
    %v3458 = vpack.c.b16 %v3115, %v3108
    %v3459 = vpack.c.b16 %v3116, %v3109
    %v3460 = vpack.c.b16 %v3117, %v3110
    %v3461 = vpack.c.b16 %v3118, %v3111
    %v3462 = vpack.c.b16 %v3126, %v3119
    %v3463 = vpack.c.b16 %v3127, %v3120
    %v3464 = vpack.c.b16 %v3128, %v3121
    %v3465 = vpack.c.b16 %v3129, %v3122
    %v3466 = vpack.c.b16 %v3130, %v3123
    %v3467 = vpack.c.b16 %v3131, %v3124
    %v3468 = vpack.c.b16 %v3132, %v3125
    %v3469 = vpack.c.b16 %v3140, %v3133
    %v3470 = vpack.c.b16 %v3141, %v3134
    %v3471 = vpack.c.b16 %v3142, %v3135
    %v3472 = vpack.c.b16 %v3143, %v3136
    %v3473 = vpack.c.b16 %v3144, %v3137
    %v3474 = vpack.c.b16 %v3145, %v3138
    %v3475 = vpack.c.b16 %v3146, %v3139
    %v3476 = vpack.c.b16 %v3154, %v3147
    %v3477 = vpack.c.b16 %v3155, %v3148
    %v3478 = vpack.c.b16 %v3156, %v3149
    %v3479 = vpack.c.b16 %v3157, %v3150
    %v3480 = vpack.c.b16 %v3158, %v3151
    %v3481 = vpack.c.b16 %v3159, %v3152
    %v3482 = vpack.c.b16 %v3160, %v3153
    %v3483 = vpack.c.b16 %v3168, %v3161
    %v3484 = vpack.c.b16 %v3169, %v3162
    %v3485 = vpack.c.b16 %v3170, %v3163
    %v3486 = vpack.c.b16 %v3171, %v3164
    %v3487 = vpack.c.b16 %v3172, %v3165
    %v3488 = vpack.c.b16 %v3173, %v3166
    %v3489 = vpack.c.b16 %v3174, %v3167
    %v3490 = vpack.c.b16 %v3182, %v3175
    %v3491 = vpack.c.b16 %v3183, %v3176
    %v3492 = vpack.c.b16 %v3184, %v3177
    %v3493 = vpack.c.b16 %v3185, %v3178
    %v3494 = vpack.c.b16 %v3186, %v3179
    %v3495 = vpack.c.b16 %v3187, %v3180
    %v3496 = vpack.c.b16 %v3188, %v3181
    %v3497 = vpack.c.b16 %v3196, %v3189
    %v3498 = vpack.c.b16 %v3197, %v3190
    %v3499 = vpack.c.b16 %v3198, %v3191
    %v3500 = vpack.c.b16 %v3199, %v3192
    %v3501 = vpack.c.b16 %v3200, %v3193
    %v3502 = vpack.c.b16 %v3201, %v3194
    %v3503 = vpack.c.b16 %v3202, %v3195
    %v3504 = vpack.c.b16 %v3210, %v3203
    %v3505 = vpack.c.b16 %v3211, %v3204
    %v3506 = vpack.c.b16 %v3212, %v3205
    %v3507 = vpack.c.b16 %v3213, %v3206
    %v3508 = vpack.c.b16 %v3214, %v3207
    %v3509 = vpack.c.b16 %v3215, %v3208
    %v3510 = vpack.c.b16 %v3216, %v3209
    %v3511 = vpack.c.b16 %v3224, %v3217
    %v3512 = vpack.c.b16 %v3225, %v3218
    %v3513 = vpack.c.b16 %v3226, %v3219
    %v3514 = vpack.c.b16 %v3227, %v3220
    %v3515 = vpack.c.b16 %v3228, %v3221
    %v3516 = vpack.c.b16 %v3229, %v3222
    %v3517 = vpack.c.b16 %v3230, %v3223
    %v3518 = vpack.c.b16 %v3238, %v3231
    %v3519 = vpack.c.b16 %v3239, %v3232
    %v3520 = vpack.c.b16 %v3240, %v3233
    %v3521 = vpack.c.b16 %v3241, %v3234
    %v3522 = vpack.c.b16 %v3242, %v3235
    %v3523 = vpack.c.b16 %v3243, %v3236
    %v3524 = vpack.c.b16 %v3244, %v3237
    %v3525 = vpack.c.b16 %v3252, %v3245
    %v3526 = vpack.c.b16 %v3253, %v3246
    %v3527 = vpack.c.b16 %v3254, %v3247
    %v3528 = vpack.c.b16 %v3255, %v3248
    %v3529 = vpack.c.b16 %v3256, %v3249
    %v3530 = vpack.c.b16 %v3257, %v3250
    %v3531 = vpack.c.b16 %v3258, %v3251
    %v3532 = vpack.c.b16 %v3266, %v3259
    %v3533 = vpack.c.b16 %v3267, %v3260
    %v3534 = vpack.c.b16 %v3268, %v3261
    %v3535 = vpack.c.b16 %v3269, %v3262
    %v3536 = vpack.c.b16 %v3270, %v3263
    %v3537 = vpack.c.b16 %v3271, %v3264
    %v3538 = vpack.c.b16 %v3272, %v3265
    %v3539 = vpack.c.b16 %v3280, %v3273
    %v3540 = vpack.c.b16 %v3281, %v3274
    %v3541 = vpack.c.b16 %v3282, %v3275
    %v3542 = vpack.c.b16 %v3283, %v3276
    %v3543 = vpack.c.b16 %v3284, %v3277
    %v3544 = vpack.c.b16 %v3285, %v3278
    %v3545 = vpack.c.b16 %v3286, %v3279
    %v3546 = vpack.c.b16 %v3294, %v3287
    %v3547 = vpack.c.b16 %v3295, %v3288
    %v3548 = vpack.c.b16 %v3296, %v3289
    %v3549 = vpack.c.b16 %v3297, %v3290
    %v3550 = vpack.c.b16 %v3298, %v3291
    %v3551 = vpack.c.b16 %v3299, %v3292
    %v3552 = vpack.c.b16 %v3300, %v3293
    %v3553 = vpack.c.b16 %v3308, %v3301
    %v3554 = vpack.c.b16 %v3309, %v3302
    %v3555 = vpack.c.b16 %v3310, %v3303
    %v3556 = vpack.c.b16 %v3311, %v3304
    %v3557 = vpack.c.b16 %v3312, %v3305
    %v3558 = vpack.c.b16 %v3313, %v3306
    %v3559 = vpack.c.b16 %v3314, %v3307
    %v3560 = vpack.c.b16 %v3322, %v3315
    %v3561 = vpack.c.b16 %v3323, %v3316
    %v3562 = vpack.c.b16 %v3324, %v3317
    %v3563 = vpack.c.b16 %v3325, %v3318
    %v3564 = vpack.c.b16 %v3326, %v3319
    %v3565 = vpack.c.b16 %v3327, %v3320
    %v3566 = vpack.c.b16 %v3328, %v3321
    %v3567 = vpack.c.b16 %v3336, %v3329
    %v3568 = vpack.c.b16 %v3337, %v3330
    %v3569 = vpack.c.b16 %v3338, %v3331
    %v3570 = vpack.c.b16 %v3339, %v3332
    %v3571 = vpack.c.b16 %v3340, %v3333
    %v3572 = vpack.c.b16 %v3341, %v3334
    %v3573 = vpack.c.b16 %v3342, %v3335
    %v3574 = vpack.c.b16 %v3350, %v3343
    %v3575 = vpack.c.b16 %v3351, %v3344
    %v3576 = vpack.c.b16 %v3352, %v3345
    %v3577 = vpack.c.b16 %v3353, %v3346
    %v3578 = vpack.c.b16 %v3354, %v3347
    %v3579 = vpack.c.b16 %v3355, %v3348
    %v3580 = vpack.c.b16 %v3356, %v3349
    %v3581 = vpack.c.b16 %v3364, %v3357
    %v3582 = vpack.c.b16 %v3365, %v3358
    %v3583 = vpack.c.b16 %v3366, %v3359
    %v3584 = vpack.c.b16 %v3367, %v3360
    %v3585 = vpack.c.b16 %v3368, %v3361
    %v3586 = vpack.c.b16 %v3369, %v3362
    %v3587 = vpack.c.b16 %v3370, %v3363
    %v3588 = vpack.c.b16 %v3378, %v3371
    %v3589 = vpack.c.b16 %v3379, %v3372
    %v3590 = vpack.c.b16 %v3380, %v3373
    %v3591 = vpack.c.b16 %v3381, %v3374
    %v3592 = vpack.c.b16 %v3382, %v3375
    %v3593 = vpack.c.b16 %v3383, %v3376
    %v3594 = vpack.c.b16 %v3384, %v3377
    %v3595 = vpack.c.b16 %v3392, %v3385
    %v3596 = vpack.c.b16 %v3393, %v3386
    %v3597 = vpack.c.b16 %v3394, %v3387
    %v3598 = vpack.c.b16 %v3395, %v3388
    %v3599 = vpack.c.b16 %v3396, %v3389
    %v3600 = vpack.c.b16 %v3397, %v3390
    %v3601 = vpack.c.b16 %v3398, %v3391
    %v3602 = vpack.c.b16 %v3406, %v3399
    %v3603 = vpack.c.b16 %v3407, %v3400
    %v3604 = vpack.c.b16 %v3408, %v3401
    %v3605 = vpack.c.b16 %v3409, %v3402
    %v3606 = vpack.c.b16 %v3410, %v3403
    %v3607 = vpack.c.b16 %v3411, %v3404
    %v3608 = vpack.c.b16 %v3412, %v3405
    %v3609 = vpack.c.b16 %v3420, %v3413
    %v3610 = vpack.c.b16 %v3421, %v3414
    %v3611 = vpack.c.b16 %v3422, %v3415
    %v3612 = vpack.c.b16 %v3423, %v3416
    %v3613 = vpack.c.b16 %v3424, %v3417
    %v3614 = vpack.c.b16 %v3425, %v3418
    %v3615 = vpack.c.b16 %v3426, %v3419
    %v3616 = vpack.c.b16 %v3434, %v3427
    %v3617 = vpack.c.b16 %v3435, %v3428
    %v3618 = vpack.c.b16 %v3436, %v3429
    %v3619 = vpack.c.b16 %v3437, %v3430
    %v3620 = vpack.c.b16 %v3438, %v3431
    %v3621 = vpack.c.b16 %v3439, %v3432
    %v3622 = vpack.c.b16 %v3440, %v3433
    %v3623 = vpack.c.b16 %v3448, %v3441
    %v3624 = vpack.c.b16 %v3449, %v3442
    %v3625 = vpack.c.b16 %v3450, %v3443
    %v3626 = vpack.c.b16 %v3451, %v3444
    %v3627 = vpack.c.b16 %v3452, %v3445
    %v3628 = vpack.c.b16 %v3453, %v3446
    %v3629 = vpack.c.b16 %v3454, %v3447
    %v3806 = vsel %vm1251, %v2688, 0
    %3808 = vmatpush.bf16.msra.mxu0 %v3504
    %3809 = vmatpush.bf16.msra.mxu0 %v3497
    %3810 = vmatpush.bf16.msra.mxu0 %v3490
    %3811 = vmatpush.bf16.msra.mxu0 %v3483
    %3812 = vmatpush.bf16.msra.mxu0 %v3476
    %3813 = vmatpush.bf16.msra.mxu0 %v3469
    %3814 = vmatpush.bf16.msra.mxu0 %v3462
    %3815 = vmatpush.bf16.msra.mxu0 %v3455
    %3816 = vmatmul.bf16.gmra.mxu0 %v2685
    %v3817 = vpop.f32.mrf.mxu0
    %v3818 = vadd.f32 %v2891, %v3817
    %v3819 = vpop.f32.mrf.mxu0
    %3820 = vdwg.mxu0
    %3821 = vmatpush.bf16.msra.mxu0 %v3560
    %3822 = vmatpush.bf16.msra.mxu0 %v3553
    %3823 = vmatpush.bf16.msra.mxu0 %v3546
    %3824 = vmatpush.bf16.msra.mxu0 %v3539
    %3825 = vmatpush.bf16.msra.mxu0 %v3532
    %3826 = vmatpush.bf16.msra.mxu0 %v3525
    %3827 = vmatpush.bf16.msra.mxu0 %v3518
    %3828 = vmatpush.bf16.msra.mxu0 %v3511
    %3829 = vmatmul.bf16.gmra.mxu0 %v2686
    %v3830 = vpop.f32.mrf.mxu0
    %v3831 = vadd.f32 %v3818, %v3830
    %v3832 = vpop.f32.mrf.mxu0
    %3833 = vdwg.mxu0
    %3834 = vmatpush.bf16.msra.mxu0 %v3616
    %3835 = vmatpush.bf16.msra.mxu0 %v3609
    %3836 = vmatpush.bf16.msra.mxu0 %v3602
    %3837 = vmatpush.bf16.msra.mxu0 %v3595
    %3838 = vmatpush.bf16.msra.mxu0 %v3588
    %3839 = vmatpush.bf16.msra.mxu0 %v3581
    %3840 = vmatpush.bf16.msra.mxu0 %v3574
    %3841 = vmatpush.bf16.msra.mxu0 %v3567
    %3842 = vmatmul.bf16.gmra.mxu0 %v2687
    %v3843 = vpop.f32.mrf.mxu0
    %v3844 = vadd.f32 %v3831, %v3843
    %v3845 = vpop.f32.mrf.mxu0
    %3846 = vdwg.mxu0
    %3847 = vmatpush.bf16.msra.mxu0 0
    %3848 = vmatpush.bf16.msra.mxu0 0
    %3849 = vmatpush.bf16.msra.mxu0 0
    %3850 = vmatpush.bf16.msra.mxu0 0
    %3851 = vmatpush.bf16.msra.mxu0 0
    %3852 = vmatpush.bf16.msra.mxu0 0
    %3853 = vmatpush.bf16.msra.mxu0 0
    %3854 = vmatpush.bf16.msra.mxu0 %v3623
    %3855 = vmatmul.bf16.gmra.mxu0 %v3806
    %v3856 = vpop.f32.mrf.mxu0
    %v3857 = vadd.f32 %v3844, %v3856
    %v3858 = vpop.f32.mrf.mxu0
    %3859 = vdwg.mxu0
    %3860 = vmatpush.bf16.msra.mxu0 %v3505
    %3861 = vmatpush.bf16.msra.mxu0 %v3498
    %3862 = vmatpush.bf16.msra.mxu0 %v3491
    %3863 = vmatpush.bf16.msra.mxu0 %v3484
    %3864 = vmatpush.bf16.msra.mxu0 %v3477
    %3865 = vmatpush.bf16.msra.mxu0 %v3470
    %3866 = vmatpush.bf16.msra.mxu0 %v3463
    %3867 = vmatpush.bf16.msra.mxu0 %v3456
    %3868 = vmatmul.bf16.gmra.mxu0 %v2685
    %v3869 = vpop.f32.mrf.mxu0
    %v3870 = vadd.f32 %v2892, %v3869
    %v3871 = vpop.f32.mrf.mxu0
    %3872 = vdwg.mxu0
    %3873 = vmatpush.bf16.msra.mxu0 %v3561
    %3874 = vmatpush.bf16.msra.mxu0 %v3554
    %3875 = vmatpush.bf16.msra.mxu0 %v3547
    %3876 = vmatpush.bf16.msra.mxu0 %v3540
    %3877 = vmatpush.bf16.msra.mxu0 %v3533
    %3878 = vmatpush.bf16.msra.mxu0 %v3526
    %3879 = vmatpush.bf16.msra.mxu0 %v3519
    %3880 = vmatpush.bf16.msra.mxu0 %v3512
    %3881 = vmatmul.bf16.gmra.mxu0 %v2686
    %v3882 = vpop.f32.mrf.mxu0
    %v3883 = vadd.f32 %v3870, %v3882
    %v3884 = vpop.f32.mrf.mxu0
    %3885 = vdwg.mxu0
    %3886 = vmatpush.bf16.msra.mxu0 %v3617
    %3887 = vmatpush.bf16.msra.mxu0 %v3610
    %3888 = vmatpush.bf16.msra.mxu0 %v3603
    %3889 = vmatpush.bf16.msra.mxu0 %v3596
    %3890 = vmatpush.bf16.msra.mxu0 %v3589
    %3891 = vmatpush.bf16.msra.mxu0 %v3582
    %3892 = vmatpush.bf16.msra.mxu0 %v3575
    %3893 = vmatpush.bf16.msra.mxu0 %v3568
    %3894 = vmatmul.bf16.gmra.mxu0 %v2687
    %v3895 = vpop.f32.mrf.mxu0
    %v3896 = vadd.f32 %v3883, %v3895
    %v3897 = vpop.f32.mrf.mxu0
    %3898 = vdwg.mxu0
    %3899 = vmatpush.bf16.msra.mxu0 0
    %3900 = vmatpush.bf16.msra.mxu0 0
    %3901 = vmatpush.bf16.msra.mxu0 0
    %3902 = vmatpush.bf16.msra.mxu0 0
    %3903 = vmatpush.bf16.msra.mxu0 0
    %3904 = vmatpush.bf16.msra.mxu0 0
    %3905 = vmatpush.bf16.msra.mxu0 0
    %3906 = vmatpush.bf16.msra.mxu0 %v3624
    %3907 = vmatmul.bf16.gmra.mxu0 %v3806
    %v3908 = vpop.f32.mrf.mxu0
    %v3909 = vadd.f32 %v3896, %v3908
    %v3910 = vpop.f32.mrf.mxu0
    %3911 = vdwg.mxu0
    %3912 = vmatpush.bf16.msra.mxu0 %v3506
    %3913 = vmatpush.bf16.msra.mxu0 %v3499
    %3914 = vmatpush.bf16.msra.mxu0 %v3492
    %3915 = vmatpush.bf16.msra.mxu0 %v3485
    %3916 = vmatpush.bf16.msra.mxu0 %v3478
    %3917 = vmatpush.bf16.msra.mxu0 %v3471
    %3918 = vmatpush.bf16.msra.mxu0 %v3464
    %3919 = vmatpush.bf16.msra.mxu0 %v3457
    %3920 = vmatmul.bf16.gmra.mxu0 %v2685
    %v3921 = vpop.f32.mrf.mxu0
    %v3922 = vadd.f32 %v2893, %v3921
    %v3923 = vpop.f32.mrf.mxu0
    %3924 = vdwg.mxu0
    %3925 = vmatpush.bf16.msra.mxu0 %v3562
    %3926 = vmatpush.bf16.msra.mxu0 %v3555
    %3927 = vmatpush.bf16.msra.mxu0 %v3548
    %3928 = vmatpush.bf16.msra.mxu0 %v3541
    %3929 = vmatpush.bf16.msra.mxu0 %v3534
    %3930 = vmatpush.bf16.msra.mxu0 %v3527
    %3931 = vmatpush.bf16.msra.mxu0 %v3520
    %3932 = vmatpush.bf16.msra.mxu0 %v3513
    %3933 = vmatmul.bf16.gmra.mxu0 %v2686
    %v3934 = vpop.f32.mrf.mxu0
    %v3935 = vadd.f32 %v3922, %v3934
    %v3936 = vpop.f32.mrf.mxu0
    %3937 = vdwg.mxu0
    %3938 = vmatpush.bf16.msra.mxu0 %v3618
    %3939 = vmatpush.bf16.msra.mxu0 %v3611
    %3940 = vmatpush.bf16.msra.mxu0 %v3604
    %3941 = vmatpush.bf16.msra.mxu0 %v3597
    %3942 = vmatpush.bf16.msra.mxu0 %v3590
    %3943 = vmatpush.bf16.msra.mxu0 %v3583
    %3944 = vmatpush.bf16.msra.mxu0 %v3576
    %3945 = vmatpush.bf16.msra.mxu0 %v3569
    %3946 = vmatmul.bf16.gmra.mxu0 %v2687
    %v3947 = vpop.f32.mrf.mxu0
    %v3948 = vadd.f32 %v3935, %v3947
    %v3949 = vpop.f32.mrf.mxu0
    %3950 = vdwg.mxu0
    %3951 = vmatpush.bf16.msra.mxu0 0
    %3952 = vmatpush.bf16.msra.mxu0 0
    %3953 = vmatpush.bf16.msra.mxu0 0
    %3954 = vmatpush.bf16.msra.mxu0 0
    %3955 = vmatpush.bf16.msra.mxu0 0
    %3956 = vmatpush.bf16.msra.mxu0 0
    %3957 = vmatpush.bf16.msra.mxu0 0
    %3958 = vmatpush.bf16.msra.mxu0 %v3625
    %3959 = vmatmul.bf16.gmra.mxu0 %v3806
    %v3960 = vpop.f32.mrf.mxu0
    %v3961 = vadd.f32 %v3948, %v3960
    %v3962 = vpop.f32.mrf.mxu0
    %3963 = vdwg.mxu0
    %3964 = vmatpush.bf16.msra.mxu0 %v3507
    %3965 = vmatpush.bf16.msra.mxu0 %v3500
    %3966 = vmatpush.bf16.msra.mxu0 %v3493
    %3967 = vmatpush.bf16.msra.mxu0 %v3486
    %3968 = vmatpush.bf16.msra.mxu0 %v3479
    %3969 = vmatpush.bf16.msra.mxu0 %v3472
    %3970 = vmatpush.bf16.msra.mxu0 %v3465
    %3971 = vmatpush.bf16.msra.mxu0 %v3458
    %3972 = vmatmul.bf16.gmra.mxu0 %v2685
    %v3973 = vpop.f32.mrf.mxu0
    %v3974 = vadd.f32 %v2894, %v3973
    %v3975 = vpop.f32.mrf.mxu0
    %3976 = vdwg.mxu0
    %3977 = vmatpush.bf16.msra.mxu0 %v3563
    %3978 = vmatpush.bf16.msra.mxu0 %v3556
    %3979 = vmatpush.bf16.msra.mxu0 %v3549
    %3980 = vmatpush.bf16.msra.mxu0 %v3542
    %3981 = vmatpush.bf16.msra.mxu0 %v3535
    %3982 = vmatpush.bf16.msra.mxu0 %v3528
    %3983 = vmatpush.bf16.msra.mxu0 %v3521
    %3984 = vmatpush.bf16.msra.mxu0 %v3514
    %3985 = vmatmul.bf16.gmra.mxu0 %v2686
    %v3986 = vpop.f32.mrf.mxu0
    %v3987 = vadd.f32 %v3974, %v3986
    %v3988 = vpop.f32.mrf.mxu0
    %3989 = vdwg.mxu0
    %3990 = vmatpush.bf16.msra.mxu0 %v3619
    %3991 = vmatpush.bf16.msra.mxu0 %v3612
    %3992 = vmatpush.bf16.msra.mxu0 %v3605
    %3993 = vmatpush.bf16.msra.mxu0 %v3598
    %3994 = vmatpush.bf16.msra.mxu0 %v3591
    %3995 = vmatpush.bf16.msra.mxu0 %v3584
    %3996 = vmatpush.bf16.msra.mxu0 %v3577
    %3997 = vmatpush.bf16.msra.mxu0 %v3570
    %3998 = vmatmul.bf16.gmra.mxu0 %v2687
    %v3999 = vpop.f32.mrf.mxu0
    %v4000 = vadd.f32 %v3987, %v3999
    %v4001 = vpop.f32.mrf.mxu0
    %4002 = vdwg.mxu0
    %4003 = vmatpush.bf16.msra.mxu0 0
    %4004 = vmatpush.bf16.msra.mxu0 0
    %4005 = vmatpush.bf16.msra.mxu0 0
    %4006 = vmatpush.bf16.msra.mxu0 0
    %4007 = vmatpush.bf16.msra.mxu0 0
    %4008 = vmatpush.bf16.msra.mxu0 0
    %4009 = vmatpush.bf16.msra.mxu0 0
    %4010 = vmatpush.bf16.msra.mxu0 %v3626
    %4011 = vmatmul.bf16.gmra.mxu0 %v3806
    %v4012 = vpop.f32.mrf.mxu0
    %v4013 = vadd.f32 %v4000, %v4012
    %v4014 = vpop.f32.mrf.mxu0
    %4015 = vdwg.mxu0
    %4016 = vmatpush.bf16.msra.mxu0 %v3508
    %4017 = vmatpush.bf16.msra.mxu0 %v3501
    %4018 = vmatpush.bf16.msra.mxu0 %v3494
    %4019 = vmatpush.bf16.msra.mxu0 %v3487
    %4020 = vmatpush.bf16.msra.mxu0 %v3480
    %4021 = vmatpush.bf16.msra.mxu0 %v3473
    %4022 = vmatpush.bf16.msra.mxu0 %v3466
    %4023 = vmatpush.bf16.msra.mxu0 %v3459
    %4024 = vmatmul.bf16.gmra.mxu0 %v2685
    %v4025 = vpop.f32.mrf.mxu0
    %v4026 = vadd.f32 %v2895, %v4025
    %v4027 = vpop.f32.mrf.mxu0
    %4028 = vdwg.mxu0
    %4029 = vmatpush.bf16.msra.mxu0 %v3564
    %4030 = vmatpush.bf16.msra.mxu0 %v3557
    %4031 = vmatpush.bf16.msra.mxu0 %v3550
    %4032 = vmatpush.bf16.msra.mxu0 %v3543
    %4033 = vmatpush.bf16.msra.mxu0 %v3536
    %4034 = vmatpush.bf16.msra.mxu0 %v3529
    %4035 = vmatpush.bf16.msra.mxu0 %v3522
    %4036 = vmatpush.bf16.msra.mxu0 %v3515
    %4037 = vmatmul.bf16.gmra.mxu0 %v2686
    %v4038 = vpop.f32.mrf.mxu0
    %v4039 = vadd.f32 %v4026, %v4038
    %v4040 = vpop.f32.mrf.mxu0
    %4041 = vdwg.mxu0
    %4042 = vmatpush.bf16.msra.mxu0 %v3620
    %4043 = vmatpush.bf16.msra.mxu0 %v3613
    %4044 = vmatpush.bf16.msra.mxu0 %v3606
    %4045 = vmatpush.bf16.msra.mxu0 %v3599
    %4046 = vmatpush.bf16.msra.mxu0 %v3592
    %4047 = vmatpush.bf16.msra.mxu0 %v3585
    %4048 = vmatpush.bf16.msra.mxu0 %v3578
    %4049 = vmatpush.bf16.msra.mxu0 %v3571
    %4050 = vmatmul.bf16.gmra.mxu0 %v2687
    %v4051 = vpop.f32.mrf.mxu0
    %v4052 = vadd.f32 %v4039, %v4051
    %v4053 = vpop.f32.mrf.mxu0
    %4054 = vdwg.mxu0
    %4055 = vmatpush.bf16.msra.mxu0 0
    %4056 = vmatpush.bf16.msra.mxu0 0
    %4057 = vmatpush.bf16.msra.mxu0 0
    %4058 = vmatpush.bf16.msra.mxu0 0
    %4059 = vmatpush.bf16.msra.mxu0 0
    %4060 = vmatpush.bf16.msra.mxu0 0
    %4061 = vmatpush.bf16.msra.mxu0 0
    %4062 = vmatpush.bf16.msra.mxu0 %v3627
    %4063 = vmatmul.bf16.gmra.mxu0 %v3806
    %v4064 = vpop.f32.mrf.mxu0
    %v4065 = vadd.f32 %v4052, %v4064
    %v4066 = vpop.f32.mrf.mxu0
    %4067 = vdwg.mxu0
    %4068 = vmatpush.bf16.msra.mxu0 %v3509
    %4069 = vmatpush.bf16.msra.mxu0 %v3502
    %4070 = vmatpush.bf16.msra.mxu0 %v3495
    %4071 = vmatpush.bf16.msra.mxu0 %v3488
    %4072 = vmatpush.bf16.msra.mxu0 %v3481
    %4073 = vmatpush.bf16.msra.mxu0 %v3474
    %4074 = vmatpush.bf16.msra.mxu0 %v3467
    %4075 = vmatpush.bf16.msra.mxu0 %v3460
    %4076 = vmatmul.bf16.gmra.mxu0 %v2685
    %v4077 = vpop.f32.mrf.mxu0
    %v4078 = vadd.f32 %v2896, %v4077
    %v4079 = vpop.f32.mrf.mxu0
    %4080 = vdwg.mxu0
    %4081 = vmatpush.bf16.msra.mxu0 %v3565
    %4082 = vmatpush.bf16.msra.mxu0 %v3558
    %4083 = vmatpush.bf16.msra.mxu0 %v3551
    %4084 = vmatpush.bf16.msra.mxu0 %v3544
    %4085 = vmatpush.bf16.msra.mxu0 %v3537
    %4086 = vmatpush.bf16.msra.mxu0 %v3530
    %4087 = vmatpush.bf16.msra.mxu0 %v3523
    %4088 = vmatpush.bf16.msra.mxu0 %v3516
    %4089 = vmatmul.bf16.gmra.mxu0 %v2686
    %v4090 = vpop.f32.mrf.mxu0
    %v4091 = vadd.f32 %v4078, %v4090
    %v4092 = vpop.f32.mrf.mxu0
    %4093 = vdwg.mxu0
    %4094 = vmatpush.bf16.msra.mxu0 %v3621
    %4095 = vmatpush.bf16.msra.mxu0 %v3614
    %4096 = vmatpush.bf16.msra.mxu0 %v3607
    %4097 = vmatpush.bf16.msra.mxu0 %v3600
    %4098 = vmatpush.bf16.msra.mxu0 %v3593
    %4099 = vmatpush.bf16.msra.mxu0 %v3586
    %4100 = vmatpush.bf16.msra.mxu0 %v3579
    %4101 = vmatpush.bf16.msra.mxu0 %v3572
    %4102 = vmatmul.bf16.gmra.mxu0 %v2687
    %v4103 = vpop.f32.mrf.mxu0
    %v4104 = vadd.f32 %v4091, %v4103
    %v4105 = vpop.f32.mrf.mxu0
    %4106 = vdwg.mxu0
    %4107 = vmatpush.bf16.msra.mxu0 0
    %4108 = vmatpush.bf16.msra.mxu0 0
    %4109 = vmatpush.bf16.msra.mxu0 0
    %4110 = vmatpush.bf16.msra.mxu0 0
    %4111 = vmatpush.bf16.msra.mxu0 0
    %4112 = vmatpush.bf16.msra.mxu0 0
    %4113 = vmatpush.bf16.msra.mxu0 0
    %4114 = vmatpush.bf16.msra.mxu0 %v3628
    %4115 = vmatmul.bf16.gmra.mxu0 %v3806
    %v4116 = vpop.f32.mrf.mxu0
    %v4117 = vadd.f32 %v4104, %v4116
    %v4118 = vpop.f32.mrf.mxu0
    %4119 = vdwg.mxu0
    %4120 = vmatpush.bf16.msra.mxu0 %v3510
    %4121 = vmatpush.bf16.msra.mxu0 %v3503
    %4122 = vmatpush.bf16.msra.mxu0 %v3496
    %4123 = vmatpush.bf16.msra.mxu0 %v3489
    %4124 = vmatpush.bf16.msra.mxu0 %v3482
    %4125 = vmatpush.bf16.msra.mxu0 %v3475
    %4126 = vmatpush.bf16.msra.mxu0 %v3468
    %4127 = vmatpush.bf16.msra.mxu0 %v3461
    %4128 = vmatmul.bf16.gmra.mxu0 %v2685
    %v4129 = vpop.f32.mrf.mxu0
    %v4130 = vadd.f32 %v2897, %v4129
    %v4131 = vpop.f32.mrf.mxu0
    %4132 = vdwg.mxu0
    %4133 = vmatpush.bf16.msra.mxu0 %v3566
    %4134 = vmatpush.bf16.msra.mxu0 %v3559
    %4135 = vmatpush.bf16.msra.mxu0 %v3552
    %4136 = vmatpush.bf16.msra.mxu0 %v3545
    %4137 = vmatpush.bf16.msra.mxu0 %v3538
    %4138 = vmatpush.bf16.msra.mxu0 %v3531
    %4139 = vmatpush.bf16.msra.mxu0 %v3524
    %4140 = vmatpush.bf16.msra.mxu0 %v3517
    %4141 = vmatmul.bf16.gmra.mxu0 %v2686
    %v4142 = vpop.f32.mrf.mxu0
    %v4143 = vadd.f32 %v4130, %v4142
    %v4144 = vpop.f32.mrf.mxu0
    %4145 = vdwg.mxu0
    %4146 = vmatpush.bf16.msra.mxu0 %v3622
    %4147 = vmatpush.bf16.msra.mxu0 %v3615
    %4148 = vmatpush.bf16.msra.mxu0 %v3608
    %4149 = vmatpush.bf16.msra.mxu0 %v3601
    %4150 = vmatpush.bf16.msra.mxu0 %v3594
    %4151 = vmatpush.bf16.msra.mxu0 %v3587
    %4152 = vmatpush.bf16.msra.mxu0 %v3580
    %4153 = vmatpush.bf16.msra.mxu0 %v3573
    %4154 = vmatmul.bf16.gmra.mxu0 %v2687
    %v4155 = vpop.f32.mrf.mxu0
    %v4156 = vadd.f32 %v4143, %v4155
    %v4157 = vpop.f32.mrf.mxu0
    %4158 = vdwg.mxu0
    %4159 = vmatpush.bf16.msra.mxu0 0
    %4160 = vmatpush.bf16.msra.mxu0 0
    %4161 = vmatpush.bf16.msra.mxu0 0
    %4162 = vmatpush.bf16.msra.mxu0 0
    %4163 = vmatpush.bf16.msra.mxu0 0
    %4164 = vmatpush.bf16.msra.mxu0 0
    %4165 = vmatpush.bf16.msra.mxu0 0
    %4166 = vmatpush.bf16.msra.mxu0 %v3629
    %4167 = vmatmul.bf16.gmra.mxu0 %v3806
    %v4168 = vpop.f32.mrf.mxu0
    %v4169 = vadd.f32 %v4156, %v4168
    %v4170 = vpop.f32.mrf.mxu0
    %4171 = vdwg.mxu0
    %v4172 = vmul.f32 %v3857, 0.5
    %v4173 = vmul.f32 %v3909, 0.5
    %v4174 = vmul.f32 %v3961, 0.5
    %v4175 = vmul.f32 %v4013, 0.5
    %v4176 = vmul.f32 %v4065, 0.5
    %v4177 = vmul.f32 %v4117, 0.5
    %v4178 = vmul.f32 %v4169, 0.5
    %v4179 = vtanh.pop %v4172
    %v4180 = vtanh.pop %v4173
    %v4181 = vtanh.pop %v4174
    %v4182 = vtanh.pop %v4175
    %v4183 = vtanh.pop %v4176
    %v4184 = vtanh.pop %v4177
    %v4185 = vtanh.pop %v4178
    %v4186 = vadd.f32 %v4179, 1.0
    %v4187 = vadd.f32 %v4180, 1.0
    %v4188 = vadd.f32 %v4181, 1.0
    %v4189 = vadd.f32 %v4182, 1.0
    %v4190 = vadd.f32 %v4183, 1.0
    %v4191 = vadd.f32 %v4184, 1.0
    %v4192 = vadd.f32 %v4185, 1.0
    %v4193 = vmul.f32 %v4186, 0.5
    %v4194 = vmul.f32 %v4187, 0.5
    %v4195 = vmul.f32 %v4188, 0.5
    %v4196 = vmul.f32 %v4189, 0.5
    %v4197 = vmul.f32 %v4190, 0.5
    %v4198 = vmul.f32 %v4191, 0.5
    %v4199 = vmul.f32 %v4192, 0.5
    %v4200 = vpack.c.bf16 %v4194, %v4193
    %v4201 = vpack.c.bf16 %v4196, %v4195
    %v4202 = vpack.c.bf16 %v4198, %v4197
    %v4203 = vpack.c.bf16 %v4199, %v4199
    %4204 = vst [vmem:[#allocation2] sm:$0xff] %v4200
    %4205 = vst [vmem:[#allocation2 + $0x8] sm:$0xff] %v4201
    %4206 = vst [vmem:[#allocation2 + $0x10] sm:$0xff] %v4202
    %4207 = vst [vmem:[#allocation2 + $0x18] sm:$0xf] %v4203
    // Predicated region
    $region58: #{tpu_custom_call.1} parent=1 // pred_check
      _
    $region59: #{tpu_custom_call.1} parent=1 // pred_check_branch
      %4209 = sbr.rel (0) target = $region61
    $region60: #{tpu_custom_call.1} parent=1 // pred_region
      %4211 = vsyncadd [#allocation3], 0
      %s4213 = sshll.u32 [#allocation2], 4
      %s4214 = int_to_ptr.vmem [resolvable:$true] %s4213
      %s4215 = sshll.u32 %s14, 4
      %s4216 = int_to_ptr.hbm [resolvable:$true] %s4215
      %4218 = dma.vmem_to_hbm [thread:$0]  %s4214, 448, %s4216, [#allocation3]
    $region61: #{tpu_custom_call.1} parent=1 // pred_fallthru
      _
    // Predicated region
    $region62: #{tpu_custom_call.1} parent=1 // pred_check
      _
    $region63: #{tpu_custom_call.1} parent=1 // pred_check_branch
      %4220 = sbr.rel (0) target = $region65
    $region64: #{tpu_custom_call.1} parent=1 // pred_region
      _
    $region65: #{tpu_custom_call.1} parent=1 // pred_fallthru
      _
    // Predicated region
    $region66: #{tpu_custom_call.1} parent=1 // pred_check
      _
    $region67: #{tpu_custom_call.1} parent=1 // pred_check_branch
      %4222 = sbr.rel (0) target = $region69
    $region68: #{tpu_custom_call.1} parent=1 // pred_region
      %4224 = dma.done [#allocation3], 448
    $region69: #{tpu_custom_call.1} parent=1 // pred_fallthru
      _
    // Predicated region
    $region70: #{tpu_custom_call.1} parent=1 // pred_check
      _
    $region71: #{tpu_custom_call.1} parent=1 // pred_check_branch
      %4226 = sbr.rel (0) target = $region73
    $region72: #{tpu_custom_call.1} parent=1 // pred_region
      _
    $region73: #{tpu_custom_call.1} parent=1 // pred_fallthru
      _
    %4227 = vsyncpa [#allocation3], 1

</llo_original>
